<compile_context>
chip_gen: v7x
topology: tpu7x:2x2x1
jax: 0.10.0
libtpu: 0.0.40
codegen_flags: <defaults>
</compile_context>

<pallas_src>
import functools

import jax
import jax.numpy as jnp
from jax.experimental import pallas as pl
from jax.experimental.pallas import tpu as pltpu

LN_EPS = 1e-5  # torch.nn.LayerNorm default


def _round_up(x, m):
    return ((x + m - 1) // m) * m


def _pick_tile_e(E, target=4096):
    """Edge-tile size: scales with E, multiple of 128, >= 4 grid steps when
    E allows (keeps both v7x TensorCores busy), capped to bound VMEM."""
    tile = _round_up(max(1, -(-E // 4)), 128)
    return max(128, min(target, tile))


# ---------------------------------------------------------------------------
# Kernel: activations are (H, tile_e) — features on sublanes, edges on lanes.
# LayerNorm therefore normalizes over axis 0 (the feature axis).
# ---------------------------------------------------------------------------
def _layernorm_features(h, gamma, beta):
    # Single-pass moments: var = E[x^2] - mean^2 (review suggestion).
    inv_h = 1.0 / h.shape[0]
    mean = jnp.sum(h, axis=0, keepdims=True) * inv_h            # (1, TE)
    meansq = jnp.sum(h * h, axis=0, keepdims=True) * inv_h      # (1, TE)
    var = meansq - mean * mean
    return (h - mean) * jax.lax.rsqrt(var + LN_EPS) * gamma + beta


def edge_mlp_kernel(idx_ref, pT_ref, w1t_ref, vec_ref, bo_ref, out_ref):
    # Packed per-feature vectors: cols = [b0, g0, be0, b1, g1, be1, wo, pad]
    vec = vec_ref[...]                                          # (H, 8)
    b0, g0, be0 = vec[:, 0:1], vec[:, 1:2], vec[:, 2:3]
    b1, g1, be1 = vec[:, 3:4], vec[:, 4:5], vec[:, 5:6]
    wo = vec[:, 6:7]                                            # (H, 1)
    bo = bo_ref[0, 0]                                           # SMEM scalar

    # In-kernel gather of the pre-projected node features via a one-hot matmul:
    # row r of the one-hot is node r (start half) or node r-N_pad (end half).
    idx = idx_ref[...]                                          # (2, TE) int32
    n2 = pT_ref.shape[1]                                        # 2 * N_pad
    te = idx.shape[1]
    rows = jax.lax.broadcasted_iota(jnp.int32, (n2, te), 0)
    hit = (rows == idx[0:1, :]) | (rows == idx[1:2, :])
    onehot = jnp.where(hit, 1.0, 0.0)                           # (2*N_pad, TE) f32

    # Layer 0: gather (== p_s[start] + p_e[end]) + bias -> LayerNorm -> Tanh.
    # HIGHEST precision keeps the one-hot selection exact in f32.
    h = jnp.dot(pT_ref[...], onehot,
                preferred_element_type=jnp.float32,
                precision=jax.lax.Precision.HIGHEST) + b0       # (H, TE)
    h = jnp.tanh(_layernorm_features(h, g0, be0))

    # Layer 1: Linear(H->H) -> LayerNorm -> Tanh (w1t = W1.T in this layout).
    h = jnp.dot(w1t_ref[...], h, preferred_element_type=jnp.float32) + b1
    h = jnp.tanh(_layernorm_features(h, g1, be1))

    # Output Linear(H->1) as VPU multiply + sublane reduce -> lane-dense row.
    out_ref[...] = jnp.sum(h * wo, axis=0, keepdims=True) + bo  # (1, TE)


# ---------------------------------------------------------------------------
# Wrapper
# ---------------------------------------------------------------------------
@functools.partial(jax.jit, static_argnames=("tile_e",))
def _edge_network_pallas(x, edge_index, params, *, tile_e):
    N, D = x.shape
    H = params["w1"].shape[0]
    E = edge_index.shape[1]

    # Fold concat + first Linear into per-node projections:
    #   concat([x_s, x_e]) @ W0 == x_s @ W0[:D] + x_e @ W0[D:]
    w0 = params["w0"]                                  # (2D, H)
    p_s = (x @ w0[:D]).T                               # (H, N)
    p_e = (x @ w0[D:]).T                               # (H, N)

    # Resident node-projection table: [p_s | p_e] padded to lane multiples.
    N_pad = _round_up(N, 128)
    pT = jnp.zeros((H, 2 * N_pad), jnp.float32)
    pT = pT.at[:, :N].set(p_s).at[:, N_pad:N_pad + N].set(p_e)

    # Edge indices streamed to the kernel (end indices shifted into the p_e
    # half of the table).  Padded edges gather node 0 and are sliced off.
    start = edge_index[0].astype(jnp.int32)
    end = edge_index[1].astype(jnp.int32) + N_pad
    idx = jnp.stack([start, end], axis=0)              # (2, E)
    E_pad = _round_up(E, tile_e)
    idx = jnp.pad(idx, ((0, 0), (0, E_pad - E)))

    # Pack the small per-feature vectors into one operand.
    vec = jnp.stack(
        [params["b0"], params["g0"], params["be0"],
         params["b1"], params["g1"], params["be1"],
         params["wo"], jnp.zeros_like(params["wo"])], axis=1)   # (H, 8)
    w1t = params["w1"].T                                        # (H, H)
    bo = jnp.full((1, 1), params["bo"], jnp.float32)            # SMEM scalar

    const = lambda i: (0, 0)   # resident tables: same block every grid step

    out = pl.pallas_call(
        edge_mlp_kernel,
        out_shape=jax.ShapeDtypeStruct((1, E_pad), jnp.float32),
        grid_spec=pltpu.PrefetchScalarGridSpec(
            num_scalar_prefetch=0,
            grid=(E_pad // tile_e,),
            in_specs=[
                pl.BlockSpec((2, tile_e), lambda i: (0, i)),        # edge indices
                pl.BlockSpec((H, 2 * N_pad), const),                # node proj table
                pl.BlockSpec((H, H), const),                        # W1^T
                pl.BlockSpec((H, 8), const),                        # packed vectors
                pl.BlockSpec(memory_space=pltpu.MemorySpace.SMEM),  # bo scalar
            ],
            out_specs=pl.BlockSpec((1, tile_e), lambda i: (0, i)),  # lane-dense
        ),
        compiler_params=pltpu.CompilerParams(
            dimension_semantics=("parallel",),   # shard edge axis across TCs (v7x)
            vmem_limit_bytes=32 * 1024 * 1024),
    )(idx, pT, w1t, vec, bo)

    return out[0, :E]   # .squeeze(-1), padding removed


def edge_network_forward(x, edge_index, params, tile_e=None):
    """x: [N, D] float32, edge_index: [2, E] int32.  Returns [E] float32."""
    E = int(edge_index.shape[1])
    if tile_e is None:
        tile_e = _pick_tile_e(E)
    return _edge_network_pallas(x, edge_index, params, tile_e=tile_e)


# ---------------------------------------------------------------------------
# Synthetic parameters & pure-JAX reference (original row-major semantics)
# ---------------------------------------------------------------------------
def init_params(key, input_dim, hidden_dim):
    """Deterministic synthetic parameters (nb_layers=2)."""
    ks = jax.random.split(key, 9)
    two_d, H = 2 * input_dim, hidden_dim
    return {
        "w0": jax.random.normal(ks[0], (two_d, H), jnp.float32) * 0.3,
        "b0": jax.random.normal(ks[1], (H,), jnp.float32) * 0.1,
        "g0": 1.0 + 0.1 * jax.random.normal(ks[2], (H,), jnp.float32),
        "be0": jax.random.normal(ks[3], (H,), jnp.float32) * 0.1,
        "w1": jax.random.normal(ks[4], (H, H), jnp.float32) * 0.2,
        "b1": jax.random.normal(ks[5], (H,), jnp.float32) * 0.1,
        "g1": 1.0 + 0.1 * jax.random.normal(ks[6], (H,), jnp.float32),
        "be1": jax.random.normal(ks[7], (H,), jnp.float32) * 0.1,
        "wo": jax.random.normal(ks[8], (H,), jnp.float32) * 0.2,
        "bo": jnp.float32(0.05),
    }


def _layernorm_rows(h, gamma, beta):
    mean = jnp.mean(h, axis=-1, keepdims=True)
    var = jnp.mean((h - mean) ** 2, axis=-1, keepdims=True)
    return (h - mean) * jax.lax.rsqrt(var + LN_EPS) * gamma + beta


def reference_forward(x, edge_index, params):
    """Pure-JAX reference matching the PyTorch module exactly."""
    start, end = edge_index[0], edge_index[1]
    e = jnp.concatenate([x[start], x[end]], axis=1)          # [E, 2D]
    h = e @ params["w0"] + params["b0"]
    h = jnp.tanh(_layernorm_rows(h, params["g0"], params["be0"]))
    h = h @ params["w1"] + params["b1"]
    h = jnp.tanh(_layernorm_rows(h, params["g1"], params["be1"]))
    return h @ params["wo"] + params["bo"]                   # [E]


if __name__ == "__main__":
    # Small synthetic graph: 64 nodes, input_dim=8, hidden_dim=32, nb_layers=2.
    # 2000 edges (not a multiple of the tile) exercises the padding path; the
    # auto-picked tile (512) gives a 4-step grid so both v7x TCs get work.
    input_dim, hidden_dim = 8, 32
    num_nodes, num_edges = 64, 2000

    key = jax.random.PRNGKey(0)
    kx, ke, kp = jax.random.split(key, 3)
    x = jax.random.normal(kx, (num_nodes, input_dim), jnp.float32)
    edge_index = jax.random.randint(ke, (2, num_edges), 0, num_nodes, jnp.int32)
    params = init_params(kp, input_dim, hidden_dim)

    out = edge_network_forward(x, edge_index, params)
    out = jax.block_until_ready(out)

    ref = reference_forward(x, edge_index, params)
    assert out.shape == (num_edges,)
    assert jnp.allclose(out, ref, atol=1e-4, rtol=1e-4), "mismatch vs reference"

    print("KERNEL_OK")
</pallas_src>

<mosaic_0001>
module attributes {stable_mosaic.version = 11 : i64} {
  func.func @edge_mlp_kernel(%arg0: i32, %arg1: memref<2x512xi32, #tpu.memory_space<vmem>>, %arg2: memref<32x256xf32, #tpu.memory_space<vmem>>, %arg3: memref<32x32xf32, #tpu.memory_space<vmem>>, %arg4: memref<32x8xf32, #tpu.memory_space<vmem>>, %arg5: memref<1x1xf32, #tpu.memory_space<smem>>, %arg6: memref<1x512xf32, #tpu.memory_space<vmem>>) attributes {dimension_semantics = [#tpu.dimension_semantics<parallel>], iteration_bounds = array<i64: 4>, scalar_prefetch = 0 : i64, scratch_operands = 0 : i64, tpu.core_type = #tpu.core_type<tc>, window_params = [{transform_indices = @transform_0, window_bounds = array<i64: 2, 512>}, {pipeline_mode = #tpu.pipeline_mode<synchronous>, transform_indices = @transform_1, window_bounds = array<i64: 32, 256>}, {pipeline_mode = #tpu.pipeline_mode<synchronous>, transform_indices = @transform_2, window_bounds = array<i64: 32, 32>}, {pipeline_mode = #tpu.pipeline_mode<synchronous>, transform_indices = @transform_3, window_bounds = array<i64: 32, 8>}, {transform_indices = @transform_4, window_bounds = array<i64: 1, 1>}, {transform_indices = @transform_5, window_bounds = array<i64: 1, 512>}]} {
    %c0 = arith.constant 0 : index
    %c0_0 = arith.constant 0 : index
    %0 = vector.load %arg4[%c0, %c0_0] : memref<32x8xf32, #tpu.memory_space<vmem>>, vector<32x8xf32>
    %1 = vector.extract_strided_slice %0 {offsets = [0, 0], sizes = [32, 1], strides = [1, 1]} : vector<32x8xf32> to vector<32x1xf32>
    %2 = vector.extract_strided_slice %0 {offsets = [0, 1], sizes = [32, 1], strides = [1, 1]} : vector<32x8xf32> to vector<32x1xf32>
    %3 = vector.extract_strided_slice %0 {offsets = [0, 2], sizes = [32, 1], strides = [1, 1]} : vector<32x8xf32> to vector<32x1xf32>
    %4 = vector.extract_strided_slice %0 {offsets = [0, 3], sizes = [32, 1], strides = [1, 1]} : vector<32x8xf32> to vector<32x1xf32>
    %5 = vector.extract_strided_slice %0 {offsets = [0, 4], sizes = [32, 1], strides = [1, 1]} : vector<32x8xf32> to vector<32x1xf32>
    %6 = vector.extract_strided_slice %0 {offsets = [0, 5], sizes = [32, 1], strides = [1, 1]} : vector<32x8xf32> to vector<32x1xf32>
    %7 = vector.extract_strided_slice %0 {offsets = [0, 6], sizes = [32, 1], strides = [1, 1]} : vector<32x8xf32> to vector<32x1xf32>
    %c0_1 = arith.constant 0 : index
    %c0_2 = arith.constant 0 : index
    %8 = memref.load %arg5[%c0_1, %c0_2] : memref<1x1xf32, #tpu.memory_space<smem>>
    %c0_3 = arith.constant 0 : index
    %c0_4 = arith.constant 0 : index
    %9 = vector.load %arg1[%c0_3, %c0_4] : memref<2x512xi32, #tpu.memory_space<vmem>>, vector<2x512xi32>
    %10 = tpu.iota {dimensions = array<i32: 0>} : vector<256x512xi32>
    %11 = vector.extract_strided_slice %9 {offsets = [0, 0], sizes = [1, 512], strides = [1, 1]} : vector<2x512xi32> to vector<1x512xi32>
    %12 = vector.broadcast %11 : vector<1x512xi32> to vector<256x512xi32>
    %13 = arith.cmpi eq, %10, %12 : vector<256x512xi32>
    %14 = vector.extract_strided_slice %9 {offsets = [1, 0], sizes = [1, 512], strides = [1, 1]} : vector<2x512xi32> to vector<1x512xi32>
    %15 = vector.broadcast %14 : vector<1x512xi32> to vector<256x512xi32>
    %16 = arith.cmpi eq, %10, %15 : vector<256x512xi32>
    %17 = arith.ori %13, %16 : vector<256x512xi1>
    %cst = arith.constant 1.000000e+00 : f32
    %cst_5 = arith.constant 0.000000e+00 : f32
    %18 = vector.broadcast %cst : f32 to vector<256x512xf32>
    %19 = vector.broadcast %cst_5 : f32 to vector<256x512xf32>
    %20 = arith.select %17, %18, %19 : vector<256x512xi1>, vector<256x512xf32>
    %c0_6 = arith.constant 0 : index
    %c0_7 = arith.constant 0 : index
    %21 = vector.load %arg2[%c0_6, %c0_7] : memref<32x256xf32, #tpu.memory_space<vmem>>, vector<32x256xf32>
    %cst_8 = arith.constant dense<0.000000e+00> : vector<32x512xf32>
    %22 = tpu.matmul %21, %20, %cst_8 {dimension_numbers = #tpu.dot_dimension_numbers<[1], [0], [0], [1], [0, 0, 1, 1], [], []>, precision = #tpu.contract_precision<fp32>} : vector<32x256xf32>, vector<256x512xf32>, vector<32x512xf32> -> vector<32x512xf32>
    %23 = vector.broadcast %1 : vector<32x1xf32> to vector<32x512xf32>
    %24 = arith.addf %22, %23 : vector<32x512xf32>
    %cst_9 = arith.constant dense<0.000000e+00> : vector<512xf32>
    %25 = vector.multi_reduction <add>, %24, %cst_9 [0] : vector<32x512xf32> to vector<512xf32>
    %26 = vector.shape_cast %25 : vector<512xf32> to vector<1x512xf32>
    %cst_10 = arith.constant 3.125000e-02 : f32
    %27 = vector.broadcast %cst_10 : f32 to vector<1x512xf32>
    %28 = arith.mulf %26, %27 : vector<1x512xf32>
    %29 = arith.mulf %24, %24 : vector<32x512xf32>
    %cst_11 = arith.constant dense<0.000000e+00> : vector<512xf32>
    %30 = vector.multi_reduction <add>, %29, %cst_11 [0] : vector<32x512xf32> to vector<512xf32>
    %31 = vector.shape_cast %30 : vector<512xf32> to vector<1x512xf32>
    %cst_12 = arith.constant 3.125000e-02 : f32
    %32 = vector.broadcast %cst_12 : f32 to vector<1x512xf32>
    %33 = arith.mulf %31, %32 : vector<1x512xf32>
    %34 = arith.mulf %28, %28 : vector<1x512xf32>
    %35 = arith.subf %33, %34 : vector<1x512xf32>
    %36 = vector.broadcast %28 : vector<1x512xf32> to vector<32x512xf32>
    %37 = arith.subf %24, %36 : vector<32x512xf32>
    %cst_13 = arith.constant 9.99999974E-6 : f32
    %38 = vector.broadcast %cst_13 : f32 to vector<1x512xf32>
    %39 = arith.addf %35, %38 : vector<1x512xf32>
    %40 = math.rsqrt %39 : vector<1x512xf32>
    %41 = vector.broadcast %40 : vector<1x512xf32> to vector<32x512xf32>
    %42 = arith.mulf %37, %41 : vector<32x512xf32>
    %43 = vector.broadcast %2 : vector<32x1xf32> to vector<32x512xf32>
    %44 = arith.mulf %42, %43 : vector<32x512xf32>
    %45 = vector.broadcast %3 : vector<32x1xf32> to vector<32x512xf32>
    %46 = arith.addf %44, %45 : vector<32x512xf32>
    %47 = math.tanh %46 : vector<32x512xf32>
    %c0_14 = arith.constant 0 : index
    %c0_15 = arith.constant 0 : index
    %48 = vector.load %arg3[%c0_14, %c0_15] : memref<32x32xf32, #tpu.memory_space<vmem>>, vector<32x32xf32>
    %cst_16 = arith.constant dense<0.000000e+00> : vector<32x512xf32>
    %49 = tpu.matmul %48, %47, %cst_16 {dimension_numbers = #tpu.dot_dimension_numbers<[1], [0], [0], [1], [0, 0, 1, 1], [], []>} : vector<32x32xf32>, vector<32x512xf32>, vector<32x512xf32> -> vector<32x512xf32>
    %50 = vector.broadcast %4 : vector<32x1xf32> to vector<32x512xf32>
    %51 = arith.addf %49, %50 : vector<32x512xf32>
    %cst_17 = arith.constant dense<0.000000e+00> : vector<512xf32>
    %52 = vector.multi_reduction <add>, %51, %cst_17 [0] : vector<32x512xf32> to vector<512xf32>
    %53 = vector.shape_cast %52 : vector<512xf32> to vector<1x512xf32>
    %cst_18 = arith.constant 3.125000e-02 : f32
    %54 = vector.broadcast %cst_18 : f32 to vector<1x512xf32>
    %55 = arith.mulf %53, %54 : vector<1x512xf32>
    %56 = arith.mulf %51, %51 : vector<32x512xf32>
    %cst_19 = arith.constant dense<0.000000e+00> : vector<512xf32>
    %57 = vector.multi_reduction <add>, %56, %cst_19 [0] : vector<32x512xf32> to vector<512xf32>
    %58 = vector.shape_cast %57 : vector<512xf32> to vector<1x512xf32>
    %cst_20 = arith.constant 3.125000e-02 : f32
    %59 = vector.broadcast %cst_20 : f32 to vector<1x512xf32>
    %60 = arith.mulf %58, %59 : vector<1x512xf32>
    %61 = arith.mulf %55, %55 : vector<1x512xf32>
    %62 = arith.subf %60, %61 : vector<1x512xf32>
    %63 = vector.broadcast %55 : vector<1x512xf32> to vector<32x512xf32>
    %64 = arith.subf %51, %63 : vector<32x512xf32>
    %cst_21 = arith.constant 9.99999974E-6 : f32
    %65 = vector.broadcast %cst_21 : f32 to vector<1x512xf32>
    %66 = arith.addf %62, %65 : vector<1x512xf32>
    %67 = math.rsqrt %66 : vector<1x512xf32>
    %68 = vector.broadcast %67 : vector<1x512xf32> to vector<32x512xf32>
    %69 = arith.mulf %64, %68 : vector<32x512xf32>
    %70 = vector.broadcast %5 : vector<32x1xf32> to vector<32x512xf32>
    %71 = arith.mulf %69, %70 : vector<32x512xf32>
    %72 = vector.broadcast %6 : vector<32x1xf32> to vector<32x512xf32>
    %73 = arith.addf %71, %72 : vector<32x512xf32>
    %74 = math.tanh %73 : vector<32x512xf32>
    %75 = vector.broadcast %7 : vector<32x1xf32> to vector<32x512xf32>
    %76 = arith.mulf %74, %75 : vector<32x512xf32>
    %cst_22 = arith.constant dense<0.000000e+00> : vector<512xf32>
    %77 = vector.multi_reduction <add>, %76, %cst_22 [0] : vector<32x512xf32> to vector<512xf32>
    %78 = vector.shape_cast %77 : vector<512xf32> to vector<1x512xf32>
    %79 = vector.broadcast %8 : f32 to vector<1x512xf32>
    %80 = arith.addf %78, %79 : vector<1x512xf32>
    %c0_23 = arith.constant 0 : index
    %c0_24 = arith.constant 0 : index
    %81 = vector.load %arg6[%c0_23, %c0_24] : memref<1x512xf32, #tpu.memory_space<vmem>>, vector<1x512xf32>
    tpu.vector_store %arg6[%c0_23, %c0_24], %80 {strides = array<i32>} : memref<1x512xf32, #tpu.memory_space<vmem>>, vector<1x512xf32>,
    return
  }
  func.func @transform_0(%arg0: i32) -> (i32, i32) {
    %c0_i32 = arith.constant 0 : i32
    %c0_i32_0 = arith.constant 0 : i32
    return %c0_i32, %arg0 : i32, i32
  }
  func.func @transform_1(%arg0: i32) -> (i32, i32) {
    %c0_i32 = arith.constant 0 : i32
    %c0_i32_0 = arith.constant 0 : i32
    %c0_i32_1 = arith.constant 0 : i32
    return %c0_i32, %c0_i32_0 : i32, i32
  }
  func.func @transform_2(%arg0: i32) -> (i32, i32) {
    %c0_i32 = arith.constant 0 : i32
    %c0_i32_0 = arith.constant 0 : i32
    %c0_i32_1 = arith.constant 0 : i32
    return %c0_i32, %c0_i32_0 : i32, i32
  }
  func.func @transform_3(%arg0: i32) -> (i32, i32) {
    %c0_i32 = arith.constant 0 : i32
    %c0_i32_0 = arith.constant 0 : i32
    %c0_i32_1 = arith.constant 0 : i32
    return %c0_i32, %c0_i32_0 : i32, i32
  }
  func.func @transform_4(%arg0: i32) -> (i32, i32) {
    %c0_i32 = arith.constant 0 : i32
    %c0_i32_0 = arith.constant 0 : i32
    %c0_i32_1 = arith.constant 0 : i32
    return %c0_i32, %c0_i32_0 : i32, i32
  }
  func.func @transform_5(%arg0: i32) -> (i32, i32) {
    %c0_i32 = arith.constant 0 : i32
    %c0_i32_0 = arith.constant 0 : i32
    return %c0_i32, %arg0 : i32, i32
  }
}

</mosaic_0001>

<llo_original>
// kernel: _edge_network_pallas.1
$region0: #{_edge_network_pallas.1}
  #allocation0 [shape = 'u32[]', space=smem, size = 0x4, offset = 0x4, fixed_abs, tag = 'smem constant byte address 0x4 - core index']
  #allocation1 [shape = 'u32[144,128]{1,0:T(1,128)}', space=vmem, size = 0x12000, scoped, tag = 'internal scratch']
  #allocation2 [shape = 'f32[1,1]{1,0:T(1,128)S(6)}', space=smem, size = 0x200, scoped, tag = 'scoped memory for _edge_network_pallas.1']
  %s0 = inlined_call_operand.vmem [shape: s32[2,2048], index: 0, kind: input, shape index: {}]
  %s1 = inlined_call_operand.vmem [shape: f32[32,256], index: 1, kind: input, shape index: {}]
  %s2 = inlined_call_operand.vmem [shape: f32[32,32], index: 2, kind: input, shape index: {}]
  %s3 = inlined_call_operand.vmem [shape: f32[32,8], index: 3, kind: input, shape index: {}]
  %s4 = inlined_call_operand.<no memory space> [shape: f32[1,1], index: 4, kind: input, shape index: {}]
  %s5 = inlined_call_operand.hbm [shape: f32[1,2048], index: 5, kind: output, shape index: {}]
  %s6 = sld [smem:[#allocation0]]
  $region53: #{_edge_network_pallas.1} parent=0
    _
  %s8 = ssub.s32 1, %s6
  %s9 = scalar_select 0, %s8, %s6
  %10 = sst [smem:[#allocation2]] %s4
  $region1: #{_edge_network_pallas.1} parent=0
    #allocation3 [shape = 'u8[4096]{0}', space=vmem, size = 0x1000, scoped, tag = 'output window, operand 0']
    #allocation4 [shape = 's32[2]{0}', space=sflag, size = 0x8, scoped, tag = 'scoped memory for _edge_network_pallas.1']
    %11 = vsyncpa [#allocation4], 0
    %s12 = scalar_lea.sflag [#allocation4], 1
    %13 = vsyncpa %s12, 0
    loop: start=0, step=1, limit=6
    $region2: #{_edge_network_pallas.1} parent=1 // loop_pre_header
      _
    $region3: #{_edge_network_pallas.1} parent=1 // loop_header
      %s15 = sphi 0, %s19
      %p16 = scmp.ge.s32.totalorder %s15, 6
      %s25 = sphi 0, %s27
      %s28 = sphi 0, %s25
      %s29 = sphi 0, %s28
      %s45 = sphi 0, %s29
      %s49 = sphi 0, %s49
      %s51 = sphi 0, %s49
      %s52 = sphi 0, %s51
      %s66 = sphi 0, %s52
      %s70 = sphi 0, %s70
      %s72 = sphi 0, %s70
      %s73 = sphi 0, %s72
      %s87 = sphi 0, %s73
      %s91 = sphi 0, %s91
      %s93 = sphi 0, %s91
      %s94 = sphi 0, %s93
      %s108 = sphi 0, %s94
      %s112 = sphi 0, %s112
      %s114 = sphi 0, %s112
      %s115 = sphi 0, %s114
      %s129 = sphi 0, %s115
      %s135 = sphi 0, %s137
      %s138 = sphi 0, %s135
      %s139 = sphi 0, %s138
      %s155 = sphi 0, %s139
    $region4: #{_edge_network_pallas.1} parent=1 // loop_header_branch
      %18 = sbr.rel (%p16) target = $region8
    $region5: #{_edge_network_pallas.1} parent=1 // loop_body
      %s20 = ssub.s32 %s15, 1
      %s21 = ssub.s32 %s15, 2
      %s22 = sadd.s32 %s15, 1
      %s23 = ssub.s32 %s15, %s22
      %p24 = scmp.eq.s32.totalorder %s23, 0
      %s26 = sadd.s32 %s25, 1
      %s27 = scalar_select %p24, %s25, %s26
      %p30 = pneg %p24
      %p31 = scmp.eq.s32.totalorder %s15, 3
      %p32 = por %p30, %p31
      %p33 = scmp.ne.s32.totalorder %s25, %s28
      %p34 = scmp.eq.s32.totalorder %s15, 0
      %p35 = por %p33, %p34
      %p36 = scmp.ne.s32.totalorder %s25, %s28
      %p37 = scmp.eq.s32.totalorder %s20, 3
      %p38 = por %p36, %p37
      %p39 = scmp.ne.s32.totalorder %s28, %s29
      %p40 = scmp.eq.s32.totalorder %s20, 0
      %p41 = por %p39, %p40
      %p42 = scmp.ne.s32.totalorder %s28, %s29
      %p43 = scmp.eq.s32.totalorder %s21, 3
      %p44 = por %p42, %p43
      %p46 = scmp.ne.s32.totalorder %s29, %s45
      %p47 = scmp.eq.s32.totalorder %s21, 0
      %p48 = por %p46, %p47
      %s50 = sadd.s32 %s49, 1
      %p53 = scmp.eq.s32.totalorder %s15, 3
      %p54 = scmp.ne.s32.totalorder %s49, %s51
      %p55 = scmp.eq.s32.totalorder %s15, 0
      %p56 = por %p54, %p55
      %p57 = scmp.ne.s32.totalorder %s49, %s51
      %p58 = scmp.eq.s32.totalorder %s20, 3
      %p59 = por %p57, %p58
      %p60 = scmp.ne.s32.totalorder %s51, %s52
      %p61 = scmp.eq.s32.totalorder %s20, 0
      %p62 = por %p60, %p61
      %p63 = scmp.ne.s32.totalorder %s51, %s52
      %p64 = scmp.eq.s32.totalorder %s21, 3
      %p65 = por %p63, %p64
      %p67 = scmp.ne.s32.totalorder %s52, %s66
      %p68 = scmp.eq.s32.totalorder %s21, 0
      %p69 = por %p67, %p68
      %s71 = sadd.s32 %s70, 1
      %p74 = scmp.eq.s32.totalorder %s15, 3
      %p75 = scmp.ne.s32.totalorder %s70, %s72
      %p76 = scmp.eq.s32.totalorder %s15, 0
      %p77 = por %p75, %p76
      %p78 = scmp.ne.s32.totalorder %s70, %s72
      %p79 = scmp.eq.s32.totalorder %s20, 3
      %p80 = por %p78, %p79
      %p81 = scmp.ne.s32.totalorder %s72, %s73
      %p82 = scmp.eq.s32.totalorder %s20, 0
      %p83 = por %p81, %p82
      %p84 = scmp.ne.s32.totalorder %s72, %s73
      %p85 = scmp.eq.s32.totalorder %s21, 3
      %p86 = por %p84, %p85
      %p88 = scmp.ne.s32.totalorder %s73, %s87
      %p89 = scmp.eq.s32.totalorder %s21, 0
      %p90 = por %p88, %p89
      %s92 = sadd.s32 %s91, 1
      %p95 = scmp.eq.s32.totalorder %s15, 3
      %p96 = scmp.ne.s32.totalorder %s91, %s93
      %p97 = scmp.eq.s32.totalorder %s15, 0
      %p98 = por %p96, %p97
      %p99 = scmp.ne.s32.totalorder %s91, %s93
      %p100 = scmp.eq.s32.totalorder %s20, 3
      %p101 = por %p99, %p100
      %p102 = scmp.ne.s32.totalorder %s93, %s94
      %p103 = scmp.eq.s32.totalorder %s20, 0
      %p104 = por %p102, %p103
      %p105 = scmp.ne.s32.totalorder %s93, %s94
      %p106 = scmp.eq.s32.totalorder %s21, 3
      %p107 = por %p105, %p106
      %p109 = scmp.ne.s32.totalorder %s94, %s108
      %p110 = scmp.eq.s32.totalorder %s21, 0
      %p111 = por %p109, %p110
      %s113 = sadd.s32 %s112, 1
      %p116 = scmp.eq.s32.totalorder %s15, 3
      %p117 = scmp.ne.s32.totalorder %s112, %s114
      %p118 = scmp.eq.s32.totalorder %s15, 0
      %p119 = por %p117, %p118
      %p120 = scmp.ne.s32.totalorder %s112, %s114
      %p121 = scmp.eq.s32.totalorder %s20, 3
      %p122 = por %p120, %p121
      %p123 = scmp.ne.s32.totalorder %s114, %s115
      %p124 = scmp.eq.s32.totalorder %s20, 0
      %p125 = por %p123, %p124
      %p126 = scmp.ne.s32.totalorder %s114, %s115
      %p127 = scmp.eq.s32.totalorder %s21, 3
      %p128 = por %p126, %p127
      %p130 = scmp.ne.s32.totalorder %s115, %s129
      %p131 = scmp.eq.s32.totalorder %s21, 0
      %p132 = por %p130, %p131
      %s133 = ssub.s32 %s15, %s22
      %p134 = scmp.eq.s32.totalorder %s133, 0
      %s136 = sadd.s32 %s135, 1
      %s137 = scalar_select %p134, %s135, %s136
      %p140 = pneg %p134
      %p141 = scmp.eq.s32.totalorder %s15, 3
      %p142 = por %p140, %p141
      %p143 = scmp.ne.s32.totalorder %s135, %s138
      %p144 = scmp.eq.s32.totalorder %s15, 0
      %p145 = por %p143, %p144
      %p146 = scmp.ne.s32.totalorder %s135, %s138
      %p147 = scmp.eq.s32.totalorder %s20, 3
      %p148 = por %p146, %p147
      %p149 = scmp.ne.s32.totalorder %s138, %s139
      %p150 = scmp.eq.s32.totalorder %s20, 0
      %p151 = por %p149, %p150
      %p152 = scmp.ne.s32.totalorder %s138, %s139
      %p153 = scmp.eq.s32.totalorder %s21, 3
      %p154 = por %p152, %p153
      %p156 = scmp.ne.s32.totalorder %s139, %s155
      %p157 = scmp.eq.s32.totalorder %s21, 0
      %p158 = por %p156, %p157
      %p159 = scmp.le.s32.totalorder 1, %s15
      %p160 = scmp.lt.s32.totalorder %s15, 5
      %p161 = pnand %p159, %p160
      %p162 = pneg %p161
      // Predicated region
      $region9: #{_edge_network_pallas.1} parent=5 // pred_check
        _
      $region10: #{_edge_network_pallas.1} parent=5 // pred_check_branch
        %164 = sbr.rel (%p161) target = $region12
      $region11: #{_edge_network_pallas.1} parent=5 // pred_region
        %s165 = ssub.s32 %s15, 1
        // Predicated region
        $region13: #{_edge_network_pallas.1} parent=11 // pred_check
          %p166 = pneg %p62
        $region14: #{_edge_network_pallas.1} parent=11 // pred_check_branch
          %168 = sbr.rel (%p166) target = $region16
        $region15: #{_edge_network_pallas.1} parent=11 // pred_region
          _
        $region16: #{_edge_network_pallas.1} parent=11 // pred_fallthru
          _
        // Predicated region
        $region17: #{_edge_network_pallas.1} parent=11 // pred_check
          %p169 = pneg %p83
        $region18: #{_edge_network_pallas.1} parent=11 // pred_check_branch
          %171 = sbr.rel (%p169) target = $region20
        $region19: #{_edge_network_pallas.1} parent=11 // pred_region
          _
        $region20: #{_edge_network_pallas.1} parent=11 // pred_fallthru
          _
        // Predicated region
        $region21: #{_edge_network_pallas.1} parent=11 // pred_check
          %p172 = pneg %p104
        $region22: #{_edge_network_pallas.1} parent=11 // pred_check_branch
          %174 = sbr.rel (%p172) target = $region24
        $region23: #{_edge_network_pallas.1} parent=11 // pred_region
          _
        $region24: #{_edge_network_pallas.1} parent=11 // pred_fallthru
          _
        // Predicated region
        $region25: #{_edge_network_pallas.1} parent=11 // pred_check
          %p175 = pneg %p125
        $region26: #{_edge_network_pallas.1} parent=11 // pred_check_branch
          %177 = sbr.rel (%p175) target = $region28
        $region27: #{_edge_network_pallas.1} parent=11 // pred_region
          _
        $region28: #{_edge_network_pallas.1} parent=11 // pred_fallthru
          _
      $region12: #{_edge_network_pallas.1} parent=5 // pred_fallthru
        _
      %p178 = scmp.lt.s32.totalorder %s15, 4
      // Predicated region
      $region29: #{_edge_network_pallas.1} parent=5 // pred_check
        %p179 = pneg %p178
      $region30: #{_edge_network_pallas.1} parent=5 // pred_check_branch
        %181 = sbr.rel (%p179) target = $region32
      $region31: #{_edge_network_pallas.1} parent=5 // pred_region
        // Predicated region
        $region33: #{_edge_network_pallas.1} parent=31 // pred_check
          %p182 = pneg %p35
        $region34: #{_edge_network_pallas.1} parent=31 // pred_check_branch
          %184 = sbr.rel (%p182) target = $region36
        $region35: #{_edge_network_pallas.1} parent=31 // pred_region
          %s185 = smul.u32 4, %s15
          %p186 = scmp.lt.s32.totalorder %s185, 15
          %s187 = scalar_select %p186, %s185, 15
          %s188 = smul.addr %s187, 2
          %s189 = scalar_lea.vmem %s0, %s188
          %s190 = smul.u32 4, %s15
        $region36: #{_edge_network_pallas.1} parent=31 // pred_fallthru
          _
      $region32: #{_edge_network_pallas.1} parent=5 // pred_fallthru
        _
      %p191 = scmp.le.s32.totalorder 1, %s15
      %p192 = scmp.lt.s32.totalorder %s15, 5
      %p193 = pnand %p191, %p192
      %p194 = pneg %p193
      // Predicated region
      $region37: #{_edge_network_pallas.1} parent=5 // pred_check
        _
      $region38: #{_edge_network_pallas.1} parent=5 // pred_check_branch
        %196 = sbr.rel (%p193) target = $region40
      $region39: #{_edge_network_pallas.1} parent=5 // pred_region
        %s197 = ssub.s32 %s15, 1
        %s198 = smul.u32 4, %s20
        %p199 = scmp.lt.s32.totalorder %s198, 15
        %s200 = scalar_select %p199, %s198, 15
        %s201 = smul.addr %s200, 2
        %s202 = scalar_lea.vmem %s0, %s201
        %p203 = pneg %p41
        %p204 = pneg %p38
        %p205 = pneg %p62
        %p206 = pneg %p59
        %p207 = pneg %p83
        %p208 = pneg %p80
        %p209 = pneg %p104
        %p210 = pneg %p101
        %p211 = pneg %p125
        %p212 = pneg %p122
        %p213 = pneg %p151
        %p214 = pneg %p148
        %s215 = sand.u32 %s138, 1
        %s216 = scalar_lea.sflag [#allocation4], %s215
        %s217 = sand.u32 %s138, 1
        %s218 = smul.addr %s217, 4
        %s219 = scalar_lea.vmem [#allocation3], %s218
        %s220 = smul.u32 4, %s20
        %p221 = scmp.lt.s32.totalorder %s220, 15
        %s222 = scalar_select %p221, %s220, 15
        %s223 = smul.addr %s222, 2
        %s224 = scalar_lea.vmem %s0, %s223
        %s225 = smul.u32 4, %s20
        %s226 = smul.u32 4, %s20
        %v227 = vld [vmem:[%s3] sm:$0xff]
        %v228 = vld [vmem:[%s3 + $0x8] sm:$0xff]
        %v229 = vld [vmem:[%s3 + $0x10] sm:$0xff]
        %v230 = vld [vmem:[%s3 + $0x18] sm:$0xff]
        %s231 = sld [smem:[#allocation2]]
        %v232 = vld [vmem:[%s224] sm:$0xff]
        %v233 = vlaneseq
        %v234 = vshrl.u32 %v233, 7
        %v235 = vadd.s32 %v234, 8
        %v236 = vadd.s32 %v234, 16
        %v237 = vadd.s32 %v234, 24
        %v238 = vadd.s32 %v234, 32
        %v239 = vadd.s32 %v234, 40
        %v240 = vadd.s32 %v234, 48
        %v241 = vadd.s32 %v234, 56
        %v242 = vadd.s32 %v234, 64
        %v243 = vadd.s32 %v234, 72
        %v244 = vadd.s32 %v234, 80
        %v245 = vadd.s32 %v234, 88
        %v246 = vadd.s32 %v234, 96
        %v247 = vadd.s32 %v234, 104
        %v248 = vadd.s32 %v234, 112
        %v249 = vadd.s32 %v234, 120
        %v250 = vadd.s32 %v234, 128
        %v251 = vadd.s32 %v234, 136
        %v252 = vadd.s32 %v234, 144
        %v253 = vadd.s32 %v234, 152
        %v254 = vadd.s32 %v234, 160
        %v255 = vadd.s32 %v234, 168
        %v256 = vadd.s32 %v234, 176
        %v257 = vadd.s32 %v234, 184
        %v258 = vadd.s32 %v234, 192
        %v259 = vadd.s32 %v234, 200
        %v260 = vadd.s32 %v234, 208
        %v261 = vadd.s32 %v234, 216
        %v262 = vadd.s32 %v234, 224
        %v263 = vadd.s32 %v234, 232
        %v264 = vadd.s32 %v234, 240
        %v265 = vadd.s32 %v234, 248
        %v266 = vlaneseq
        %v267 = vshrl.u32 %v266, 7
        %v268 = vsub.s32 0, %v267
        %v269 = vrot.slane %v232, %v268
        %v270 = vlaneseq
        %v271 = vshrl.u32 %v270, 7
        %v272 = vsub.s32 2, %v271
        %v273 = vrot.slane %v232, %v272
        %v274 = vlaneseq
        %v275 = vshrl.u32 %v274, 7
        %v276 = vsub.s32 4, %v275
        %v277 = vrot.slane %v232, %v276
        %v278 = vlaneseq
        %v279 = vshrl.u32 %v278, 7
        %v280 = vsub.s32 6, %v279
        %v281 = vrot.slane %v232, %v280
        %v282 = vlaneseq
        %v283 = vshrl.u32 %v282, 7
        %v284 = vsub.s32 0, %v283
        %v285 = vrot.slane %v269, %v284
        %v286 = vlaneseq
        %v287 = vshrl.u32 %v286, 7
        %v288 = vsub.s32 0, %v287
        %v289 = vrot.slane %v273, %v288
        %v290 = vlaneseq
        %v291 = vshrl.u32 %v290, 7
        %v292 = vsub.s32 0, %v291
        %v293 = vrot.slane %v277, %v292
        %v294 = vlaneseq
        %v295 = vshrl.u32 %v294, 7
        %v296 = vsub.s32 0, %v295
        %v297 = vrot.slane %v281, %v296
        %vm298 = vcmp.eq.s32.totalorder %v234, %v285
        %vm299 = vcmp.eq.s32.totalorder %v234, %v289
        %vm300 = vcmp.eq.s32.totalorder %v234, %v293
        %vm301 = vcmp.eq.s32.totalorder %v234, %v297
        %vm302 = vcmp.eq.s32.totalorder %v235, %v285
        %vm303 = vcmp.eq.s32.totalorder %v235, %v289
        %vm304 = vcmp.eq.s32.totalorder %v235, %v293
        %vm305 = vcmp.eq.s32.totalorder %v235, %v297
        %vm306 = vcmp.eq.s32.totalorder %v236, %v285
        %vm307 = vcmp.eq.s32.totalorder %v236, %v289
        %vm308 = vcmp.eq.s32.totalorder %v236, %v293
        %vm309 = vcmp.eq.s32.totalorder %v236, %v297
        %vm310 = vcmp.eq.s32.totalorder %v237, %v285
        %vm311 = vcmp.eq.s32.totalorder %v237, %v289
        %vm312 = vcmp.eq.s32.totalorder %v237, %v293
        %vm313 = vcmp.eq.s32.totalorder %v237, %v297
        %vm314 = vcmp.eq.s32.totalorder %v238, %v285
        %vm315 = vcmp.eq.s32.totalorder %v238, %v289
        %vm316 = vcmp.eq.s32.totalorder %v238, %v293
        %vm317 = vcmp.eq.s32.totalorder %v238, %v297
        %vm318 = vcmp.eq.s32.totalorder %v239, %v285
        %vm319 = vcmp.eq.s32.totalorder %v239, %v289
        %vm320 = vcmp.eq.s32.totalorder %v239, %v293
        %vm321 = vcmp.eq.s32.totalorder %v239, %v297
        %vm322 = vcmp.eq.s32.totalorder %v240, %v285
        %vm323 = vcmp.eq.s32.totalorder %v240, %v289
        %vm324 = vcmp.eq.s32.totalorder %v240, %v293
        %vm325 = vcmp.eq.s32.totalorder %v240, %v297
        %vm326 = vcmp.eq.s32.totalorder %v241, %v285
        %vm327 = vcmp.eq.s32.totalorder %v241, %v289
        %vm328 = vcmp.eq.s32.totalorder %v241, %v293
        %vm329 = vcmp.eq.s32.totalorder %v241, %v297
        %vm330 = vcmp.eq.s32.totalorder %v242, %v285
        %vm331 = vcmp.eq.s32.totalorder %v242, %v289
        %vm332 = vcmp.eq.s32.totalorder %v242, %v293
        %vm333 = vcmp.eq.s32.totalorder %v242, %v297
        %vm334 = vcmp.eq.s32.totalorder %v243, %v285
        %vm335 = vcmp.eq.s32.totalorder %v243, %v289
        %vm336 = vcmp.eq.s32.totalorder %v243, %v293
        %vm337 = vcmp.eq.s32.totalorder %v243, %v297
        %vm338 = vcmp.eq.s32.totalorder %v244, %v285
        %vm339 = vcmp.eq.s32.totalorder %v244, %v289
        %vm340 = vcmp.eq.s32.totalorder %v244, %v293
        %vm341 = vcmp.eq.s32.totalorder %v244, %v297
        %vm342 = vcmp.eq.s32.totalorder %v245, %v285
        %vm343 = vcmp.eq.s32.totalorder %v245, %v289
        %vm344 = vcmp.eq.s32.totalorder %v245, %v293
        %vm345 = vcmp.eq.s32.totalorder %v245, %v297
        %vm346 = vcmp.eq.s32.totalorder %v246, %v285
        %vm347 = vcmp.eq.s32.totalorder %v246, %v289
        %vm348 = vcmp.eq.s32.totalorder %v246, %v293
        %vm349 = vcmp.eq.s32.totalorder %v246, %v297
        %vm350 = vcmp.eq.s32.totalorder %v247, %v285
        %vm351 = vcmp.eq.s32.totalorder %v247, %v289
        %vm352 = vcmp.eq.s32.totalorder %v247, %v293
        %vm353 = vcmp.eq.s32.totalorder %v247, %v297
        %vm354 = vcmp.eq.s32.totalorder %v248, %v285
        %vm355 = vcmp.eq.s32.totalorder %v248, %v289
        %vm356 = vcmp.eq.s32.totalorder %v248, %v293
        %vm357 = vcmp.eq.s32.totalorder %v248, %v297
        %vm358 = vcmp.eq.s32.totalorder %v249, %v285
        %vm359 = vcmp.eq.s32.totalorder %v249, %v289
        %vm360 = vcmp.eq.s32.totalorder %v249, %v293
        %vm361 = vcmp.eq.s32.totalorder %v249, %v297
        %vm362 = vcmp.eq.s32.totalorder %v250, %v285
        %vm363 = vcmp.eq.s32.totalorder %v250, %v289
        %vm364 = vcmp.eq.s32.totalorder %v250, %v293
        %vm365 = vcmp.eq.s32.totalorder %v250, %v297
        %vm366 = vcmp.eq.s32.totalorder %v251, %v285
        %vm367 = vcmp.eq.s32.totalorder %v251, %v289
        %vm368 = vcmp.eq.s32.totalorder %v251, %v293
        %vm369 = vcmp.eq.s32.totalorder %v251, %v297
        %vm370 = vcmp.eq.s32.totalorder %v252, %v285
        %vm371 = vcmp.eq.s32.totalorder %v252, %v289
        %vm372 = vcmp.eq.s32.totalorder %v252, %v293
        %vm373 = vcmp.eq.s32.totalorder %v252, %v297
        %vm374 = vcmp.eq.s32.totalorder %v253, %v285
        %vm375 = vcmp.eq.s32.totalorder %v253, %v289
        %vm376 = vcmp.eq.s32.totalorder %v253, %v293
        %vm377 = vcmp.eq.s32.totalorder %v253, %v297
        %vm378 = vcmp.eq.s32.totalorder %v254, %v285
        %vm379 = vcmp.eq.s32.totalorder %v254, %v289
        %vm380 = vcmp.eq.s32.totalorder %v254, %v293
        %vm381 = vcmp.eq.s32.totalorder %v254, %v297
        %vm382 = vcmp.eq.s32.totalorder %v255, %v285
        %vm383 = vcmp.eq.s32.totalorder %v255, %v289
        %vm384 = vcmp.eq.s32.totalorder %v255, %v293
        %vm385 = vcmp.eq.s32.totalorder %v255, %v297
        %vm386 = vcmp.eq.s32.totalorder %v256, %v285
        %vm387 = vcmp.eq.s32.totalorder %v256, %v289
        %vm388 = vcmp.eq.s32.totalorder %v256, %v293
        %vm389 = vcmp.eq.s32.totalorder %v256, %v297
        %vm390 = vcmp.eq.s32.totalorder %v257, %v285
        %vm391 = vcmp.eq.s32.totalorder %v257, %v289
        %vm392 = vcmp.eq.s32.totalorder %v257, %v293
        %vm393 = vcmp.eq.s32.totalorder %v257, %v297
        %vm394 = vcmp.eq.s32.totalorder %v258, %v285
        %vm395 = vcmp.eq.s32.totalorder %v258, %v289
        %vm396 = vcmp.eq.s32.totalorder %v258, %v293
        %vm397 = vcmp.eq.s32.totalorder %v258, %v297
        %vm398 = vcmp.eq.s32.totalorder %v259, %v285
        %vm399 = vcmp.eq.s32.totalorder %v259, %v289
        %vm400 = vcmp.eq.s32.totalorder %v259, %v293
        %vm401 = vcmp.eq.s32.totalorder %v259, %v297
        %vm402 = vcmp.eq.s32.totalorder %v260, %v285
        %vm403 = vcmp.eq.s32.totalorder %v260, %v289
        %vm404 = vcmp.eq.s32.totalorder %v260, %v293
        %vm405 = vcmp.eq.s32.totalorder %v260, %v297
        %vm406 = vcmp.eq.s32.totalorder %v261, %v285
        %vm407 = vcmp.eq.s32.totalorder %v261, %v289
        %vm408 = vcmp.eq.s32.totalorder %v261, %v293
        %vm409 = vcmp.eq.s32.totalorder %v261, %v297
        %vm410 = vcmp.eq.s32.totalorder %v262, %v285
        %vm411 = vcmp.eq.s32.totalorder %v262, %v289
        %vm412 = vcmp.eq.s32.totalorder %v262, %v293
        %vm413 = vcmp.eq.s32.totalorder %v262, %v297
        %vm414 = vcmp.eq.s32.totalorder %v263, %v285
        %vm415 = vcmp.eq.s32.totalorder %v263, %v289
        %vm416 = vcmp.eq.s32.totalorder %v263, %v293
        %vm417 = vcmp.eq.s32.totalorder %v263, %v297
        %vm418 = vcmp.eq.s32.totalorder %v264, %v285
        %vm419 = vcmp.eq.s32.totalorder %v264, %v289
        %vm420 = vcmp.eq.s32.totalorder %v264, %v293
        %vm421 = vcmp.eq.s32.totalorder %v264, %v297
        %vm422 = vcmp.eq.s32.totalorder %v265, %v285
        %vm423 = vcmp.eq.s32.totalorder %v265, %v289
        %vm424 = vcmp.eq.s32.totalorder %v265, %v293
        %vm425 = vcmp.eq.s32.totalorder %v265, %v297
        %v426 = vlaneseq
        %v427 = vshrl.u32 %v426, 7
        %v428 = vsub.s32 1, %v427
        %v429 = vrot.slane %v232, %v428
        %v430 = vlaneseq
        %v431 = vshrl.u32 %v430, 7
        %v432 = vsub.s32 3, %v431
        %v433 = vrot.slane %v232, %v432
        %v434 = vlaneseq
        %v435 = vshrl.u32 %v434, 7
        %v436 = vsub.s32 5, %v435
        %v437 = vrot.slane %v232, %v436
        %v438 = vlaneseq
        %v439 = vshrl.u32 %v438, 7
        %v440 = vsub.s32 7, %v439
        %v441 = vrot.slane %v232, %v440
        %v442 = vlaneseq
        %v443 = vshrl.u32 %v442, 7
        %v444 = vsub.s32 1, %v443
        %v445 = vrot.slane %v429, %v444
        %v446 = vlaneseq
        %v447 = vshrl.u32 %v446, 7
        %v448 = vsub.s32 1, %v447
        %v449 = vrot.slane %v433, %v448
        %v450 = vlaneseq
        %v451 = vshrl.u32 %v450, 7
        %v452 = vsub.s32 1, %v451
        %v453 = vrot.slane %v437, %v452
        %v454 = vlaneseq
        %v455 = vshrl.u32 %v454, 7
        %v456 = vsub.s32 1, %v455
        %v457 = vrot.slane %v441, %v456
        %vm458 = vcmp.eq.s32.totalorder %v234, %v445
        %vm459 = vcmp.eq.s32.totalorder %v234, %v449
        %vm460 = vcmp.eq.s32.totalorder %v234, %v453
        %vm461 = vcmp.eq.s32.totalorder %v234, %v457
        %vm462 = vcmp.eq.s32.totalorder %v235, %v445
        %vm463 = vcmp.eq.s32.totalorder %v235, %v449
        %vm464 = vcmp.eq.s32.totalorder %v235, %v453
        %vm465 = vcmp.eq.s32.totalorder %v235, %v457
        %vm466 = vcmp.eq.s32.totalorder %v236, %v445
        %vm467 = vcmp.eq.s32.totalorder %v236, %v449
        %vm468 = vcmp.eq.s32.totalorder %v236, %v453
        %vm469 = vcmp.eq.s32.totalorder %v236, %v457
        %vm470 = vcmp.eq.s32.totalorder %v237, %v445
        %vm471 = vcmp.eq.s32.totalorder %v237, %v449
        %vm472 = vcmp.eq.s32.totalorder %v237, %v453
        %vm473 = vcmp.eq.s32.totalorder %v237, %v457
        %vm474 = vcmp.eq.s32.totalorder %v238, %v445
        %vm475 = vcmp.eq.s32.totalorder %v238, %v449
        %vm476 = vcmp.eq.s32.totalorder %v238, %v453
        %vm477 = vcmp.eq.s32.totalorder %v238, %v457
        %vm478 = vcmp.eq.s32.totalorder %v239, %v445
        %vm479 = vcmp.eq.s32.totalorder %v239, %v449
        %vm480 = vcmp.eq.s32.totalorder %v239, %v453
        %vm481 = vcmp.eq.s32.totalorder %v239, %v457
        %vm482 = vcmp.eq.s32.totalorder %v240, %v445
        %vm483 = vcmp.eq.s32.totalorder %v240, %v449
        %vm484 = vcmp.eq.s32.totalorder %v240, %v453
        %vm485 = vcmp.eq.s32.totalorder %v240, %v457
        %vm486 = vcmp.eq.s32.totalorder %v241, %v445
        %vm487 = vcmp.eq.s32.totalorder %v241, %v449
        %vm488 = vcmp.eq.s32.totalorder %v241, %v453
        %vm489 = vcmp.eq.s32.totalorder %v241, %v457
        %vm490 = vcmp.eq.s32.totalorder %v242, %v445
        %vm491 = vcmp.eq.s32.totalorder %v242, %v449
        %vm492 = vcmp.eq.s32.totalorder %v242, %v453
        %vm493 = vcmp.eq.s32.totalorder %v242, %v457
        %vm494 = vcmp.eq.s32.totalorder %v243, %v445
        %vm495 = vcmp.eq.s32.totalorder %v243, %v449
        %vm496 = vcmp.eq.s32.totalorder %v243, %v453
        %vm497 = vcmp.eq.s32.totalorder %v243, %v457
        %vm498 = vcmp.eq.s32.totalorder %v244, %v445
        %vm499 = vcmp.eq.s32.totalorder %v244, %v449
        %vm500 = vcmp.eq.s32.totalorder %v244, %v453
        %vm501 = vcmp.eq.s32.totalorder %v244, %v457
        %vm502 = vcmp.eq.s32.totalorder %v245, %v445
        %vm503 = vcmp.eq.s32.totalorder %v245, %v449
        %vm504 = vcmp.eq.s32.totalorder %v245, %v453
        %vm505 = vcmp.eq.s32.totalorder %v245, %v457
        %vm506 = vcmp.eq.s32.totalorder %v246, %v445
        %vm507 = vcmp.eq.s32.totalorder %v246, %v449
        %vm508 = vcmp.eq.s32.totalorder %v246, %v453
        %vm509 = vcmp.eq.s32.totalorder %v246, %v457
        %vm510 = vcmp.eq.s32.totalorder %v247, %v445
        %vm511 = vcmp.eq.s32.totalorder %v247, %v449
        %vm512 = vcmp.eq.s32.totalorder %v247, %v453
        %vm513 = vcmp.eq.s32.totalorder %v247, %v457
        %vm514 = vcmp.eq.s32.totalorder %v248, %v445
        %vm515 = vcmp.eq.s32.totalorder %v248, %v449
        %vm516 = vcmp.eq.s32.totalorder %v248, %v453
        %vm517 = vcmp.eq.s32.totalorder %v248, %v457
        %vm518 = vcmp.eq.s32.totalorder %v249, %v445
        %vm519 = vcmp.eq.s32.totalorder %v249, %v449
        %vm520 = vcmp.eq.s32.totalorder %v249, %v453
        %vm521 = vcmp.eq.s32.totalorder %v249, %v457
        %vm522 = vcmp.eq.s32.totalorder %v250, %v445
        %vm523 = vcmp.eq.s32.totalorder %v250, %v449
        %vm524 = vcmp.eq.s32.totalorder %v250, %v453
        %vm525 = vcmp.eq.s32.totalorder %v250, %v457
        %vm526 = vcmp.eq.s32.totalorder %v251, %v445
        %vm527 = vcmp.eq.s32.totalorder %v251, %v449
        %vm528 = vcmp.eq.s32.totalorder %v251, %v453
        %vm529 = vcmp.eq.s32.totalorder %v251, %v457
        %vm530 = vcmp.eq.s32.totalorder %v252, %v445
        %vm531 = vcmp.eq.s32.totalorder %v252, %v449
        %vm532 = vcmp.eq.s32.totalorder %v252, %v453
        %vm533 = vcmp.eq.s32.totalorder %v252, %v457
        %vm534 = vcmp.eq.s32.totalorder %v253, %v445
        %vm535 = vcmp.eq.s32.totalorder %v253, %v449
        %vm536 = vcmp.eq.s32.totalorder %v253, %v453
        %vm537 = vcmp.eq.s32.totalorder %v253, %v457
        %vm538 = vcmp.eq.s32.totalorder %v254, %v445
        %vm539 = vcmp.eq.s32.totalorder %v254, %v449
        %vm540 = vcmp.eq.s32.totalorder %v254, %v453
        %vm541 = vcmp.eq.s32.totalorder %v254, %v457
        %vm542 = vcmp.eq.s32.totalorder %v255, %v445
        %vm543 = vcmp.eq.s32.totalorder %v255, %v449
        %vm544 = vcmp.eq.s32.totalorder %v255, %v453
        %vm545 = vcmp.eq.s32.totalorder %v255, %v457
        %vm546 = vcmp.eq.s32.totalorder %v256, %v445
        %vm547 = vcmp.eq.s32.totalorder %v256, %v449
        %vm548 = vcmp.eq.s32.totalorder %v256, %v453
        %vm549 = vcmp.eq.s32.totalorder %v256, %v457
        %vm550 = vcmp.eq.s32.totalorder %v257, %v445
        %vm551 = vcmp.eq.s32.totalorder %v257, %v449
        %vm552 = vcmp.eq.s32.totalorder %v257, %v453
        %vm553 = vcmp.eq.s32.totalorder %v257, %v457
        %vm554 = vcmp.eq.s32.totalorder %v258, %v445
        %vm555 = vcmp.eq.s32.totalorder %v258, %v449
        %vm556 = vcmp.eq.s32.totalorder %v258, %v453
        %vm557 = vcmp.eq.s32.totalorder %v258, %v457
        %vm558 = vcmp.eq.s32.totalorder %v259, %v445
        %vm559 = vcmp.eq.s32.totalorder %v259, %v449
        %vm560 = vcmp.eq.s32.totalorder %v259, %v453
        %vm561 = vcmp.eq.s32.totalorder %v259, %v457
        %vm562 = vcmp.eq.s32.totalorder %v260, %v445
        %vm563 = vcmp.eq.s32.totalorder %v260, %v449
        %vm564 = vcmp.eq.s32.totalorder %v260, %v453
        %vm565 = vcmp.eq.s32.totalorder %v260, %v457
        %vm566 = vcmp.eq.s32.totalorder %v261, %v445
        %vm567 = vcmp.eq.s32.totalorder %v261, %v449
        %vm568 = vcmp.eq.s32.totalorder %v261, %v453
        %vm569 = vcmp.eq.s32.totalorder %v261, %v457
        %vm570 = vcmp.eq.s32.totalorder %v262, %v445
        %vm571 = vcmp.eq.s32.totalorder %v262, %v449
        %vm572 = vcmp.eq.s32.totalorder %v262, %v453
        %vm573 = vcmp.eq.s32.totalorder %v262, %v457
        %vm574 = vcmp.eq.s32.totalorder %v263, %v445
        %vm575 = vcmp.eq.s32.totalorder %v263, %v449
        %vm576 = vcmp.eq.s32.totalorder %v263, %v453
        %vm577 = vcmp.eq.s32.totalorder %v263, %v457
        %vm578 = vcmp.eq.s32.totalorder %v264, %v445
        %vm579 = vcmp.eq.s32.totalorder %v264, %v449
        %vm580 = vcmp.eq.s32.totalorder %v264, %v453
        %vm581 = vcmp.eq.s32.totalorder %v264, %v457
        %vm582 = vcmp.eq.s32.totalorder %v265, %v445
        %vm583 = vcmp.eq.s32.totalorder %v265, %v449
        %vm584 = vcmp.eq.s32.totalorder %v265, %v453
        %vm585 = vcmp.eq.s32.totalorder %v265, %v457
        %vm586 = vmor %vm298, %vm458
        %vm587 = vmor %vm299, %vm459
        %vm588 = vmor %vm300, %vm460
        %vm589 = vmor %vm301, %vm461
        %vm590 = vmor %vm302, %vm462
        %vm591 = vmor %vm303, %vm463
        %vm592 = vmor %vm304, %vm464
        %vm593 = vmor %vm305, %vm465
        %vm594 = vmor %vm306, %vm466
        %vm595 = vmor %vm307, %vm467
        %vm596 = vmor %vm308, %vm468
        %vm597 = vmor %vm309, %vm469
        %vm598 = vmor %vm310, %vm470
        %vm599 = vmor %vm311, %vm471
        %vm600 = vmor %vm312, %vm472
        %vm601 = vmor %vm313, %vm473
        %vm602 = vmor %vm314, %vm474
        %vm603 = vmor %vm315, %vm475
        %vm604 = vmor %vm316, %vm476
        %vm605 = vmor %vm317, %vm477
        %vm606 = vmor %vm318, %vm478
        %vm607 = vmor %vm319, %vm479
        %vm608 = vmor %vm320, %vm480
        %vm609 = vmor %vm321, %vm481
        %vm610 = vmor %vm322, %vm482
        %vm611 = vmor %vm323, %vm483
        %vm612 = vmor %vm324, %vm484
        %vm613 = vmor %vm325, %vm485
        %vm614 = vmor %vm326, %vm486
        %vm615 = vmor %vm327, %vm487
        %vm616 = vmor %vm328, %vm488
        %vm617 = vmor %vm329, %vm489
        %vm618 = vmor %vm330, %vm490
        %vm619 = vmor %vm331, %vm491
        %vm620 = vmor %vm332, %vm492
        %vm621 = vmor %vm333, %vm493
        %vm622 = vmor %vm334, %vm494
        %vm623 = vmor %vm335, %vm495
        %vm624 = vmor %vm336, %vm496
        %vm625 = vmor %vm337, %vm497
        %vm626 = vmor %vm338, %vm498
        %vm627 = vmor %vm339, %vm499
        %vm628 = vmor %vm340, %vm500
        %vm629 = vmor %vm341, %vm501
        %vm630 = vmor %vm342, %vm502
        %vm631 = vmor %vm343, %vm503
        %vm632 = vmor %vm344, %vm504
        %vm633 = vmor %vm345, %vm505
        %vm634 = vmor %vm346, %vm506
        %vm635 = vmor %vm347, %vm507
        %vm636 = vmor %vm348, %vm508
        %vm637 = vmor %vm349, %vm509
        %vm638 = vmor %vm350, %vm510
        %vm639 = vmor %vm351, %vm511
        %vm640 = vmor %vm352, %vm512
        %vm641 = vmor %vm353, %vm513
        %vm642 = vmor %vm354, %vm514
        %vm643 = vmor %vm355, %vm515
        %vm644 = vmor %vm356, %vm516
        %vm645 = vmor %vm357, %vm517
        %vm646 = vmor %vm358, %vm518
        %vm647 = vmor %vm359, %vm519
        %vm648 = vmor %vm360, %vm520
        %vm649 = vmor %vm361, %vm521
        %vm650 = vmor %vm362, %vm522
        %vm651 = vmor %vm363, %vm523
        %vm652 = vmor %vm364, %vm524
        %vm653 = vmor %vm365, %vm525
        %vm654 = vmor %vm366, %vm526
        %vm655 = vmor %vm367, %vm527
        %vm656 = vmor %vm368, %vm528
        %vm657 = vmor %vm369, %vm529
        %vm658 = vmor %vm370, %vm530
        %vm659 = vmor %vm371, %vm531
        %vm660 = vmor %vm372, %vm532
        %vm661 = vmor %vm373, %vm533
        %vm662 = vmor %vm374, %vm534
        %vm663 = vmor %vm375, %vm535
        %vm664 = vmor %vm376, %vm536
        %vm665 = vmor %vm377, %vm537
        %vm666 = vmor %vm378, %vm538
        %vm667 = vmor %vm379, %vm539
        %vm668 = vmor %vm380, %vm540
        %vm669 = vmor %vm381, %vm541
        %vm670 = vmor %vm382, %vm542
        %vm671 = vmor %vm383, %vm543
        %vm672 = vmor %vm384, %vm544
        %vm673 = vmor %vm385, %vm545
        %vm674 = vmor %vm386, %vm546
        %vm675 = vmor %vm387, %vm547
        %vm676 = vmor %vm388, %vm548
        %vm677 = vmor %vm389, %vm549
        %vm678 = vmor %vm390, %vm550
        %vm679 = vmor %vm391, %vm551
        %vm680 = vmor %vm392, %vm552
        %vm681 = vmor %vm393, %vm553
        %vm682 = vmor %vm394, %vm554
        %vm683 = vmor %vm395, %vm555
        %vm684 = vmor %vm396, %vm556
        %vm685 = vmor %vm397, %vm557
        %vm686 = vmor %vm398, %vm558
        %vm687 = vmor %vm399, %vm559
        %vm688 = vmor %vm400, %vm560
        %vm689 = vmor %vm401, %vm561
        %vm690 = vmor %vm402, %vm562
        %vm691 = vmor %vm403, %vm563
        %vm692 = vmor %vm404, %vm564
        %vm693 = vmor %vm405, %vm565
        %vm694 = vmor %vm406, %vm566
        %vm695 = vmor %vm407, %vm567
        %vm696 = vmor %vm408, %vm568
        %vm697 = vmor %vm409, %vm569
        %vm698 = vmor %vm410, %vm570
        %vm699 = vmor %vm411, %vm571
        %vm700 = vmor %vm412, %vm572
        %vm701 = vmor %vm413, %vm573
        %vm702 = vmor %vm414, %vm574
        %vm703 = vmor %vm415, %vm575
        %vm704 = vmor %vm416, %vm576
        %vm705 = vmor %vm417, %vm577
        %vm706 = vmor %vm418, %vm578
        %vm707 = vmor %vm419, %vm579
        %vm708 = vmor %vm420, %vm580
        %vm709 = vmor %vm421, %vm581
        %vm710 = vmor %vm422, %vm582
        %vm711 = vmor %vm423, %vm583
        %vm712 = vmor %vm424, %vm584
        %vm713 = vmor %vm425, %vm585
        %v714 = vsel %vm586, 1.0, 0.0
        %v715 = vsel %vm587, 1.0, 0.0
        %v716 = vsel %vm588, 1.0, 0.0
        %v717 = vsel %vm589, 1.0, 0.0
        %v718 = vsel %vm590, 1.0, 0.0
        %v719 = vsel %vm591, 1.0, 0.0
        %v720 = vsel %vm592, 1.0, 0.0
        %v721 = vsel %vm593, 1.0, 0.0
        %v722 = vsel %vm594, 1.0, 0.0
        %v723 = vsel %vm595, 1.0, 0.0
        %v724 = vsel %vm596, 1.0, 0.0
        %v725 = vsel %vm597, 1.0, 0.0
        %v726 = vsel %vm598, 1.0, 0.0
        %v727 = vsel %vm599, 1.0, 0.0
        %v728 = vsel %vm600, 1.0, 0.0
        %v729 = vsel %vm601, 1.0, 0.0
        %v730 = vsel %vm602, 1.0, 0.0
        %v731 = vsel %vm603, 1.0, 0.0
        %v732 = vsel %vm604, 1.0, 0.0
        %v733 = vsel %vm605, 1.0, 0.0
        %v734 = vsel %vm606, 1.0, 0.0
        %v735 = vsel %vm607, 1.0, 0.0
        %v736 = vsel %vm608, 1.0, 0.0
        %v737 = vsel %vm609, 1.0, 0.0
        %v738 = vsel %vm610, 1.0, 0.0
        %v739 = vsel %vm611, 1.0, 0.0
        %v740 = vsel %vm612, 1.0, 0.0
        %v741 = vsel %vm613, 1.0, 0.0
        %v742 = vsel %vm614, 1.0, 0.0
        %v743 = vsel %vm615, 1.0, 0.0
        %v744 = vsel %vm616, 1.0, 0.0
        %v745 = vsel %vm617, 1.0, 0.0
        %v746 = vsel %vm618, 1.0, 0.0
        %v747 = vsel %vm619, 1.0, 0.0
        %v748 = vsel %vm620, 1.0, 0.0
        %v749 = vsel %vm621, 1.0, 0.0
        %v750 = vsel %vm622, 1.0, 0.0
        %v751 = vsel %vm623, 1.0, 0.0
        %v752 = vsel %vm624, 1.0, 0.0
        %v753 = vsel %vm625, 1.0, 0.0
        %v754 = vsel %vm626, 1.0, 0.0
        %v755 = vsel %vm627, 1.0, 0.0
        %v756 = vsel %vm628, 1.0, 0.0
        %v757 = vsel %vm629, 1.0, 0.0
        %v758 = vsel %vm630, 1.0, 0.0
        %v759 = vsel %vm631, 1.0, 0.0
        %v760 = vsel %vm632, 1.0, 0.0
        %v761 = vsel %vm633, 1.0, 0.0
        %v762 = vsel %vm634, 1.0, 0.0
        %v763 = vsel %vm635, 1.0, 0.0
        %v764 = vsel %vm636, 1.0, 0.0
        %v765 = vsel %vm637, 1.0, 0.0
        %v766 = vsel %vm638, 1.0, 0.0
        %v767 = vsel %vm639, 1.0, 0.0
        %v768 = vsel %vm640, 1.0, 0.0
        %v769 = vsel %vm641, 1.0, 0.0
        %v770 = vsel %vm642, 1.0, 0.0
        %v771 = vsel %vm643, 1.0, 0.0
        %v772 = vsel %vm644, 1.0, 0.0
        %v773 = vsel %vm645, 1.0, 0.0
        %v774 = vsel %vm646, 1.0, 0.0
        %v775 = vsel %vm647, 1.0, 0.0
        %v776 = vsel %vm648, 1.0, 0.0
        %v777 = vsel %vm649, 1.0, 0.0
        %v778 = vsel %vm650, 1.0, 0.0
        %v779 = vsel %vm651, 1.0, 0.0
        %v780 = vsel %vm652, 1.0, 0.0
        %v781 = vsel %vm653, 1.0, 0.0
        %v782 = vsel %vm654, 1.0, 0.0
        %v783 = vsel %vm655, 1.0, 0.0
        %v784 = vsel %vm656, 1.0, 0.0
        %v785 = vsel %vm657, 1.0, 0.0
        %v786 = vsel %vm658, 1.0, 0.0
        %v787 = vsel %vm659, 1.0, 0.0
        %v788 = vsel %vm660, 1.0, 0.0
        %v789 = vsel %vm661, 1.0, 0.0
        %v790 = vsel %vm662, 1.0, 0.0
        %v791 = vsel %vm663, 1.0, 0.0
        %v792 = vsel %vm664, 1.0, 0.0
        %v793 = vsel %vm665, 1.0, 0.0
        %v794 = vsel %vm666, 1.0, 0.0
        %v795 = vsel %vm667, 1.0, 0.0
        %v796 = vsel %vm668, 1.0, 0.0
        %v797 = vsel %vm669, 1.0, 0.0
        %v798 = vsel %vm670, 1.0, 0.0
        %v799 = vsel %vm671, 1.0, 0.0
        %v800 = vsel %vm672, 1.0, 0.0
        %v801 = vsel %vm673, 1.0, 0.0
        %v802 = vsel %vm674, 1.0, 0.0
        %v803 = vsel %vm675, 1.0, 0.0
        %v804 = vsel %vm676, 1.0, 0.0
        %v805 = vsel %vm677, 1.0, 0.0
        %v806 = vsel %vm678, 1.0, 0.0
        %v807 = vsel %vm679, 1.0, 0.0
        %v808 = vsel %vm680, 1.0, 0.0
        %v809 = vsel %vm681, 1.0, 0.0
        %v810 = vsel %vm682, 1.0, 0.0
        %v811 = vsel %vm683, 1.0, 0.0
        %v812 = vsel %vm684, 1.0, 0.0
        %v813 = vsel %vm685, 1.0, 0.0
        %v814 = vsel %vm686, 1.0, 0.0
        %v815 = vsel %vm687, 1.0, 0.0
        %v816 = vsel %vm688, 1.0, 0.0
        %v817 = vsel %vm689, 1.0, 0.0
        %v818 = vsel %vm690, 1.0, 0.0
        %v819 = vsel %vm691, 1.0, 0.0
        %v820 = vsel %vm692, 1.0, 0.0
        %v821 = vsel %vm693, 1.0, 0.0
        %v822 = vsel %vm694, 1.0, 0.0
        %v823 = vsel %vm695, 1.0, 0.0
        %v824 = vsel %vm696, 1.0, 0.0
        %v825 = vsel %vm697, 1.0, 0.0
        %v826 = vsel %vm698, 1.0, 0.0
        %v827 = vsel %vm699, 1.0, 0.0
        %v828 = vsel %vm700, 1.0, 0.0
        %v829 = vsel %vm701, 1.0, 0.0
        %v830 = vsel %vm702, 1.0, 0.0
        %v831 = vsel %vm703, 1.0, 0.0
        %v832 = vsel %vm704, 1.0, 0.0
        %v833 = vsel %vm705, 1.0, 0.0
        %v834 = vsel %vm706, 1.0, 0.0
        %v835 = vsel %vm707, 1.0, 0.0
        %v836 = vsel %vm708, 1.0, 0.0
        %v837 = vsel %vm709, 1.0, 0.0
        %v838 = vsel %vm710, 1.0, 0.0
        %v839 = vsel %vm711, 1.0, 0.0
        %v840 = vsel %vm712, 1.0, 0.0
        %v841 = vsel %vm713, 1.0, 0.0
        %v842 = vld [vmem:[%s1] sm:$0xff]
        %v843 = vld [vmem:[%s1 + $0x8] sm:$0xff]
        %v844 = vld [vmem:[%s1 + $0x10] sm:$0xff]
        %v845 = vld [vmem:[%s1 + $0x18] sm:$0xff]
        %v846 = vld [vmem:[%s1 + $0x20] sm:$0xff]
        %v847 = vld [vmem:[%s1 + $0x28] sm:$0xff]
        %v848 = vld [vmem:[%s1 + $0x30] sm:$0xff]
        %v849 = vld [vmem:[%s1 + $0x38] sm:$0xff]
        %851 = vset.pattern.permute.xlu0 0
        %852 = vperm.xlu0 %851, %v227
        %v853 = vpop.permute.xlu0 %852
        %856 = vset.pattern.permute.xlu0 0
        %857 = vperm.xlu0 %856, %v228
        %v858 = vpop.permute.xlu0 %857
        %861 = vset.pattern.permute.xlu0 0
        %862 = vperm.xlu0 %861, %v229
        %v863 = vpop.permute.xlu0 %862
        %866 = vset.pattern.permute.xlu0 0
        %867 = vperm.xlu0 %866, %v230
        %v868 = vpop.permute.xlu0 %867
        %870 = vmatprep.subr.mxu0 %v715
        %871 = vmatpush1.msra.mxu0 %v714
        %872 = vmatprep.subr.mxu0 %v719
        %873 = vmatpush1.msra.mxu0 %v718
        %874 = vmatprep.subr.mxu0 %v723
        %875 = vmatpush1.msra.mxu0 %v722
        %876 = vmatprep.subr.mxu0 %v727
        %877 = vmatpush1.msra.mxu0 %v726
        %878 = vmatprep.subr.mxu0 %v731
        %879 = vmatpush1.msra.mxu0 %v730
        %880 = vmatprep.subr.mxu0 %v735
        %881 = vmatpush1.msra.mxu0 %v734
        %882 = vmatprep.subr.mxu0 %v739
        %883 = vmatpush1.msra.mxu0 %v738
        %884 = vmatprep.subr.mxu0 %v743
        %885 = vmatpush1.msra.mxu0 %v742
        %886 = vmatprep.subr.mxu0 %v747
        %887 = vmatpush1.msra.mxu0 %v746
        %888 = vmatprep.subr.mxu0 %v751
        %889 = vmatpush1.msra.mxu0 %v750
        %890 = vmatprep.subr.mxu0 %v755
        %891 = vmatpush1.msra.mxu0 %v754
        %892 = vmatprep.subr.mxu0 %v759
        %893 = vmatpush1.msra.mxu0 %v758
        %894 = vmatprep.subr.mxu0 %v763
        %895 = vmatpush1.msra.mxu0 %v762
        %896 = vmatprep.subr.mxu0 %v767
        %897 = vmatpush1.msra.mxu0 %v766
        %898 = vmatprep.subr.mxu0 %v771
        %899 = vmatpush1.msra.mxu0 %v770
        %900 = vmatprep.subr.mxu0 %v775
        %901 = vmatpush1.msra.mxu0 %v774
        %902 = vmatprep.subr.mxu0 %v779
        %903 = vmatpush1.msra.mxu0 %v778
        %904 = vmatprep.subr.mxu0 %v783
        %905 = vmatpush1.msra.mxu0 %v782
        %906 = vmatprep.subr.mxu0 %v787
        %907 = vmatpush1.msra.mxu0 %v786
        %908 = vmatprep.subr.mxu0 %v791
        %909 = vmatpush1.msra.mxu0 %v790
        %910 = vmatprep.subr.mxu0 %v795
        %911 = vmatpush1.msra.mxu0 %v794
        %912 = vmatprep.subr.mxu0 %v799
        %913 = vmatpush1.msra.mxu0 %v798
        %914 = vmatprep.subr.mxu0 %v803
        %915 = vmatpush1.msra.mxu0 %v802
        %916 = vmatprep.subr.mxu0 %v807
        %917 = vmatpush1.msra.mxu0 %v806
        %918 = vmatprep.subr.mxu0 %v811
        %919 = vmatpush1.msra.mxu0 %v810
        %920 = vmatprep.subr.mxu0 %v815
        %921 = vmatpush1.msra.mxu0 %v814
        %922 = vmatprep.subr.mxu0 %v819
        %923 = vmatpush1.msra.mxu0 %v818
        %924 = vmatprep.subr.mxu0 %v823
        %925 = vmatpush1.msra.mxu0 %v822
        %926 = vmatprep.subr.mxu0 %v827
        %927 = vmatpush1.msra.mxu0 %v826
        %928 = vmatprep.subr.mxu0 %v831
        %929 = vmatpush1.msra.mxu0 %v830
        %930 = vmatprep.subr.mxu0 %v835
        %931 = vmatpush1.msra.mxu0 %v834
        %932 = vmatprep.subr.mxu0 %v839
        %933 = vmatpush1.msra.mxu0 %v838
        %v934 = vand.u32 %v843, 4294901760
        %v935 = vsub.f32 %v843, %v934
        %v936 = vand.u32 %v935, 4294901760
        %v937 = vsub.f32 %v935, %v936
        %v938 = vand.u32 %v937, 4294901760
        %939 = vmatprep.mubr.f32.mxu0 %v938
        %v940 = vand.u32 %v842, 4294901760
        %v941 = vsub.f32 %v842, %v940
        %v942 = vand.u32 %v941, 4294901760
        %v943 = vsub.f32 %v941, %v942
        %v944 = vand.u32 %v943, 4294901760
        %945 = vmatmul.mubr.f32.gmra.mrb[0].mxu0 %v944
        %v946 = vpop.f32.mrb[0].mxu0
        %v947 = vadd.f32 %v853, %v946
        %v948 = vpop.f32.mrb[0].mxu0
        %v949 = vadd.f32 %v853, %v948
        %v950 = vand.u32 %v845, 4294901760
        %v951 = vsub.f32 %v845, %v950
        %v952 = vand.u32 %v951, 4294901760
        %v953 = vsub.f32 %v951, %v952
        %v954 = vand.u32 %v953, 4294901760
        %955 = vmatprep.mubr.f32.mxu0 %v954
        %v956 = vand.u32 %v844, 4294901760
        %v957 = vsub.f32 %v844, %v956
        %v958 = vand.u32 %v957, 4294901760
        %v959 = vsub.f32 %v957, %v958
        %v960 = vand.u32 %v959, 4294901760
        %961 = vmatmul.mubr.f32.gmra.mrb[0].mxu0 %v960
        %v962 = vpop.f32.mrb[0].mxu0
        %v963 = vadd.f32 %v858, %v962
        %v964 = vpop.f32.mrb[0].mxu0
        %v965 = vadd.f32 %v858, %v964
        %v966 = vand.u32 %v847, 4294901760
        %v967 = vsub.f32 %v847, %v966
        %v968 = vand.u32 %v967, 4294901760
        %v969 = vsub.f32 %v967, %v968
        %v970 = vand.u32 %v969, 4294901760
        %971 = vmatprep.mubr.f32.mxu0 %v970
        %v972 = vand.u32 %v846, 4294901760
        %v973 = vsub.f32 %v846, %v972
        %v974 = vand.u32 %v973, 4294901760
        %v975 = vsub.f32 %v973, %v974
        %v976 = vand.u32 %v975, 4294901760
        %977 = vmatmul.mubr.f32.gmra.mrb[0].mxu0 %v976
        %v978 = vpop.f32.mrb[0].mxu0
        %v979 = vadd.f32 %v863, %v978
        %v980 = vpop.f32.mrb[0].mxu0
        %v981 = vadd.f32 %v863, %v980
        %v982 = vand.u32 %v849, 4294901760
        %v983 = vsub.f32 %v849, %v982
        %v984 = vand.u32 %v983, 4294901760
        %v985 = vsub.f32 %v983, %v984
        %v986 = vand.u32 %v985, 4294901760
        %987 = vmatprep.mubr.f32.mxu0 %v986
        %v988 = vand.u32 %v848, 4294901760
        %v989 = vsub.f32 %v848, %v988
        %v990 = vand.u32 %v989, 4294901760
        %v991 = vsub.f32 %v989, %v990
        %v992 = vand.u32 %v991, 4294901760
        %993 = vmatmul.mubr.f32.gmra.mrb[0].mxu0 %v992
        %v994 = vpop.f32.mrb[0].mxu0
        %v995 = vadd.f32 %v868, %v994
        %v996 = vpop.f32.mrb[0].mxu0
        %v997 = vadd.f32 %v868, %v996
        %998 = vdwg.mxu0
        %v999 = vsub.f32 %v715, %v715
        %v1000 = vand.u32 %v999, 4294901760
        %v1001 = vsub.f32 %v999, %v1000
        %v1002 = vand.u32 %v1001, 4294901760
        %1003 = vmatprep.subr.mxu0 %v1002
        %v1004 = vsub.f32 %v714, %v714
        %v1005 = vand.u32 %v1004, 4294901760
        %v1006 = vsub.f32 %v1004, %v1005
        %v1007 = vand.u32 %v1006, 4294901760
        %1008 = vmatpush1.msra.mxu0 %v1007
        %v1009 = vsub.f32 %v719, %v719
        %v1010 = vand.u32 %v1009, 4294901760
        %v1011 = vsub.f32 %v1009, %v1010
        %v1012 = vand.u32 %v1011, 4294901760
        %1013 = vmatprep.subr.mxu0 %v1012
        %v1014 = vsub.f32 %v718, %v718
        %v1015 = vand.u32 %v1014, 4294901760
        %v1016 = vsub.f32 %v1014, %v1015
        %v1017 = vand.u32 %v1016, 4294901760
        %1018 = vmatpush1.msra.mxu0 %v1017
        %v1019 = vsub.f32 %v723, %v723
        %v1020 = vand.u32 %v1019, 4294901760
        %v1021 = vsub.f32 %v1019, %v1020
        %v1022 = vand.u32 %v1021, 4294901760
        %1023 = vmatprep.subr.mxu0 %v1022
        %v1024 = vsub.f32 %v722, %v722
        %v1025 = vand.u32 %v1024, 4294901760
        %v1026 = vsub.f32 %v1024, %v1025
        %v1027 = vand.u32 %v1026, 4294901760
        %1028 = vmatpush1.msra.mxu0 %v1027
        %v1029 = vsub.f32 %v727, %v727
        %v1030 = vand.u32 %v1029, 4294901760
        %v1031 = vsub.f32 %v1029, %v1030
        %v1032 = vand.u32 %v1031, 4294901760
        %1033 = vmatprep.subr.mxu0 %v1032
        %v1034 = vsub.f32 %v726, %v726
        %v1035 = vand.u32 %v1034, 4294901760
        %v1036 = vsub.f32 %v1034, %v1035
        %v1037 = vand.u32 %v1036, 4294901760
        %1038 = vmatpush1.msra.mxu0 %v1037
        %v1039 = vsub.f32 %v731, %v731
        %v1040 = vand.u32 %v1039, 4294901760
        %v1041 = vsub.f32 %v1039, %v1040
        %v1042 = vand.u32 %v1041, 4294901760
        %1043 = vmatprep.subr.mxu0 %v1042
        %v1044 = vsub.f32 %v730, %v730
        %v1045 = vand.u32 %v1044, 4294901760
        %v1046 = vsub.f32 %v1044, %v1045
        %v1047 = vand.u32 %v1046, 4294901760
        %1048 = vmatpush1.msra.mxu0 %v1047
        %v1049 = vsub.f32 %v735, %v735
        %v1050 = vand.u32 %v1049, 4294901760
        %v1051 = vsub.f32 %v1049, %v1050
        %v1052 = vand.u32 %v1051, 4294901760
        %1053 = vmatprep.subr.mxu0 %v1052
        %v1054 = vsub.f32 %v734, %v734
        %v1055 = vand.u32 %v1054, 4294901760
        %v1056 = vsub.f32 %v1054, %v1055
        %v1057 = vand.u32 %v1056, 4294901760
        %1058 = vmatpush1.msra.mxu0 %v1057
        %v1059 = vsub.f32 %v739, %v739
        %v1060 = vand.u32 %v1059, 4294901760
        %v1061 = vsub.f32 %v1059, %v1060
        %v1062 = vand.u32 %v1061, 4294901760
        %1063 = vmatprep.subr.mxu0 %v1062
        %v1064 = vsub.f32 %v738, %v738
        %v1065 = vand.u32 %v1064, 4294901760
        %v1066 = vsub.f32 %v1064, %v1065
        %v1067 = vand.u32 %v1066, 4294901760
        %1068 = vmatpush1.msra.mxu0 %v1067
        %v1069 = vsub.f32 %v743, %v743
        %v1070 = vand.u32 %v1069, 4294901760
        %v1071 = vsub.f32 %v1069, %v1070
        %v1072 = vand.u32 %v1071, 4294901760
        %1073 = vmatprep.subr.mxu0 %v1072
        %v1074 = vsub.f32 %v742, %v742
        %v1075 = vand.u32 %v1074, 4294901760
        %v1076 = vsub.f32 %v1074, %v1075
        %v1077 = vand.u32 %v1076, 4294901760
        %1078 = vmatpush1.msra.mxu0 %v1077
        %v1079 = vsub.f32 %v747, %v747
        %v1080 = vand.u32 %v1079, 4294901760
        %v1081 = vsub.f32 %v1079, %v1080
        %v1082 = vand.u32 %v1081, 4294901760
        %1083 = vmatprep.subr.mxu0 %v1082
        %v1084 = vsub.f32 %v746, %v746
        %v1085 = vand.u32 %v1084, 4294901760
        %v1086 = vsub.f32 %v1084, %v1085
        %v1087 = vand.u32 %v1086, 4294901760
        %1088 = vmatpush1.msra.mxu0 %v1087
        %v1089 = vsub.f32 %v751, %v751
        %v1090 = vand.u32 %v1089, 4294901760
        %v1091 = vsub.f32 %v1089, %v1090
        %v1092 = vand.u32 %v1091, 4294901760
        %1093 = vmatprep.subr.mxu0 %v1092
        %v1094 = vsub.f32 %v750, %v750
        %v1095 = vand.u32 %v1094, 4294901760
        %v1096 = vsub.f32 %v1094, %v1095
        %v1097 = vand.u32 %v1096, 4294901760
        %1098 = vmatpush1.msra.mxu0 %v1097
        %v1099 = vsub.f32 %v755, %v755
        %v1100 = vand.u32 %v1099, 4294901760
        %v1101 = vsub.f32 %v1099, %v1100
        %v1102 = vand.u32 %v1101, 4294901760
        %1103 = vmatprep.subr.mxu0 %v1102
        %v1104 = vsub.f32 %v754, %v754
        %v1105 = vand.u32 %v1104, 4294901760
        %v1106 = vsub.f32 %v1104, %v1105
        %v1107 = vand.u32 %v1106, 4294901760
        %1108 = vmatpush1.msra.mxu0 %v1107
        %v1109 = vsub.f32 %v759, %v759
        %v1110 = vand.u32 %v1109, 4294901760
        %v1111 = vsub.f32 %v1109, %v1110
        %v1112 = vand.u32 %v1111, 4294901760
        %1113 = vmatprep.subr.mxu0 %v1112
        %v1114 = vsub.f32 %v758, %v758
        %v1115 = vand.u32 %v1114, 4294901760
        %v1116 = vsub.f32 %v1114, %v1115
        %v1117 = vand.u32 %v1116, 4294901760
        %1118 = vmatpush1.msra.mxu0 %v1117
        %v1119 = vsub.f32 %v763, %v763
        %v1120 = vand.u32 %v1119, 4294901760
        %v1121 = vsub.f32 %v1119, %v1120
        %v1122 = vand.u32 %v1121, 4294901760
        %1123 = vmatprep.subr.mxu0 %v1122
        %v1124 = vsub.f32 %v762, %v762
        %v1125 = vand.u32 %v1124, 4294901760
        %v1126 = vsub.f32 %v1124, %v1125
        %v1127 = vand.u32 %v1126, 4294901760
        %1128 = vmatpush1.msra.mxu0 %v1127
        %v1129 = vsub.f32 %v767, %v767
        %v1130 = vand.u32 %v1129, 4294901760
        %v1131 = vsub.f32 %v1129, %v1130
        %v1132 = vand.u32 %v1131, 4294901760
        %1133 = vmatprep.subr.mxu0 %v1132
        %v1134 = vsub.f32 %v766, %v766
        %v1135 = vand.u32 %v1134, 4294901760
        %v1136 = vsub.f32 %v1134, %v1135
        %v1137 = vand.u32 %v1136, 4294901760
        %1138 = vmatpush1.msra.mxu0 %v1137
        %v1139 = vsub.f32 %v771, %v771
        %v1140 = vand.u32 %v1139, 4294901760
        %v1141 = vsub.f32 %v1139, %v1140
        %v1142 = vand.u32 %v1141, 4294901760
        %1143 = vmatprep.subr.mxu0 %v1142
        %v1144 = vsub.f32 %v770, %v770
        %v1145 = vand.u32 %v1144, 4294901760
        %v1146 = vsub.f32 %v1144, %v1145
        %v1147 = vand.u32 %v1146, 4294901760
        %1148 = vmatpush1.msra.mxu0 %v1147
        %v1149 = vsub.f32 %v775, %v775
        %v1150 = vand.u32 %v1149, 4294901760
        %v1151 = vsub.f32 %v1149, %v1150
        %v1152 = vand.u32 %v1151, 4294901760
        %1153 = vmatprep.subr.mxu0 %v1152
        %v1154 = vsub.f32 %v774, %v774
        %v1155 = vand.u32 %v1154, 4294901760
        %v1156 = vsub.f32 %v1154, %v1155
        %v1157 = vand.u32 %v1156, 4294901760
        %1158 = vmatpush1.msra.mxu0 %v1157
        %v1159 = vsub.f32 %v779, %v779
        %v1160 = vand.u32 %v1159, 4294901760
        %v1161 = vsub.f32 %v1159, %v1160
        %v1162 = vand.u32 %v1161, 4294901760
        %1163 = vmatprep.subr.mxu0 %v1162
        %v1164 = vsub.f32 %v778, %v778
        %v1165 = vand.u32 %v1164, 4294901760
        %v1166 = vsub.f32 %v1164, %v1165
        %v1167 = vand.u32 %v1166, 4294901760
        %1168 = vmatpush1.msra.mxu0 %v1167
        %v1169 = vsub.f32 %v783, %v783
        %v1170 = vand.u32 %v1169, 4294901760
        %v1171 = vsub.f32 %v1169, %v1170
        %v1172 = vand.u32 %v1171, 4294901760
        %1173 = vmatprep.subr.mxu0 %v1172
        %v1174 = vsub.f32 %v782, %v782
        %v1175 = vand.u32 %v1174, 4294901760
        %v1176 = vsub.f32 %v1174, %v1175
        %v1177 = vand.u32 %v1176, 4294901760
        %1178 = vmatpush1.msra.mxu0 %v1177
        %v1179 = vsub.f32 %v787, %v787
        %v1180 = vand.u32 %v1179, 4294901760
        %v1181 = vsub.f32 %v1179, %v1180
        %v1182 = vand.u32 %v1181, 4294901760
        %1183 = vmatprep.subr.mxu0 %v1182
        %v1184 = vsub.f32 %v786, %v786
        %v1185 = vand.u32 %v1184, 4294901760
        %v1186 = vsub.f32 %v1184, %v1185
        %v1187 = vand.u32 %v1186, 4294901760
        %1188 = vmatpush1.msra.mxu0 %v1187
        %v1189 = vsub.f32 %v791, %v791
        %v1190 = vand.u32 %v1189, 4294901760
        %v1191 = vsub.f32 %v1189, %v1190
        %v1192 = vand.u32 %v1191, 4294901760
        %1193 = vmatprep.subr.mxu0 %v1192
        %v1194 = vsub.f32 %v790, %v790
        %v1195 = vand.u32 %v1194, 4294901760
        %v1196 = vsub.f32 %v1194, %v1195
        %v1197 = vand.u32 %v1196, 4294901760
        %1198 = vmatpush1.msra.mxu0 %v1197
        %v1199 = vsub.f32 %v795, %v795
        %v1200 = vand.u32 %v1199, 4294901760
        %v1201 = vsub.f32 %v1199, %v1200
        %v1202 = vand.u32 %v1201, 4294901760
        %1203 = vmatprep.subr.mxu0 %v1202
        %v1204 = vsub.f32 %v794, %v794
        %v1205 = vand.u32 %v1204, 4294901760
        %v1206 = vsub.f32 %v1204, %v1205
        %v1207 = vand.u32 %v1206, 4294901760
        %1208 = vmatpush1.msra.mxu0 %v1207
        %v1209 = vsub.f32 %v799, %v799
        %v1210 = vand.u32 %v1209, 4294901760
        %v1211 = vsub.f32 %v1209, %v1210
        %v1212 = vand.u32 %v1211, 4294901760
        %1213 = vmatprep.subr.mxu0 %v1212
        %v1214 = vsub.f32 %v798, %v798
        %v1215 = vand.u32 %v1214, 4294901760
        %v1216 = vsub.f32 %v1214, %v1215
        %v1217 = vand.u32 %v1216, 4294901760
        %1218 = vmatpush1.msra.mxu0 %v1217
        %v1219 = vsub.f32 %v803, %v803
        %v1220 = vand.u32 %v1219, 4294901760
        %v1221 = vsub.f32 %v1219, %v1220
        %v1222 = vand.u32 %v1221, 4294901760
        %1223 = vmatprep.subr.mxu0 %v1222
        %v1224 = vsub.f32 %v802, %v802
        %v1225 = vand.u32 %v1224, 4294901760
        %v1226 = vsub.f32 %v1224, %v1225
        %v1227 = vand.u32 %v1226, 4294901760
        %1228 = vmatpush1.msra.mxu0 %v1227
        %v1229 = vsub.f32 %v807, %v807
        %v1230 = vand.u32 %v1229, 4294901760
        %v1231 = vsub.f32 %v1229, %v1230
        %v1232 = vand.u32 %v1231, 4294901760
        %1233 = vmatprep.subr.mxu0 %v1232
        %v1234 = vsub.f32 %v806, %v806
        %v1235 = vand.u32 %v1234, 4294901760
        %v1236 = vsub.f32 %v1234, %v1235
        %v1237 = vand.u32 %v1236, 4294901760
        %1238 = vmatpush1.msra.mxu0 %v1237
        %v1239 = vsub.f32 %v811, %v811
        %v1240 = vand.u32 %v1239, 4294901760
        %v1241 = vsub.f32 %v1239, %v1240
        %v1242 = vand.u32 %v1241, 4294901760
        %1243 = vmatprep.subr.mxu0 %v1242
        %v1244 = vsub.f32 %v810, %v810
        %v1245 = vand.u32 %v1244, 4294901760
        %v1246 = vsub.f32 %v1244, %v1245
        %v1247 = vand.u32 %v1246, 4294901760
        %1248 = vmatpush1.msra.mxu0 %v1247
        %v1249 = vsub.f32 %v815, %v815
        %v1250 = vand.u32 %v1249, 4294901760
        %v1251 = vsub.f32 %v1249, %v1250
        %v1252 = vand.u32 %v1251, 4294901760
        %1253 = vmatprep.subr.mxu0 %v1252
        %v1254 = vsub.f32 %v814, %v814
        %v1255 = vand.u32 %v1254, 4294901760
        %v1256 = vsub.f32 %v1254, %v1255
        %v1257 = vand.u32 %v1256, 4294901760
        %1258 = vmatpush1.msra.mxu0 %v1257
        %v1259 = vsub.f32 %v819, %v819
        %v1260 = vand.u32 %v1259, 4294901760
        %v1261 = vsub.f32 %v1259, %v1260
        %v1262 = vand.u32 %v1261, 4294901760
        %1263 = vmatprep.subr.mxu0 %v1262
        %v1264 = vsub.f32 %v818, %v818
        %v1265 = vand.u32 %v1264, 4294901760
        %v1266 = vsub.f32 %v1264, %v1265
        %v1267 = vand.u32 %v1266, 4294901760
        %1268 = vmatpush1.msra.mxu0 %v1267
        %v1269 = vsub.f32 %v823, %v823
        %v1270 = vand.u32 %v1269, 4294901760
        %v1271 = vsub.f32 %v1269, %v1270
        %v1272 = vand.u32 %v1271, 4294901760
        %1273 = vmatprep.subr.mxu0 %v1272
        %v1274 = vsub.f32 %v822, %v822
        %v1275 = vand.u32 %v1274, 4294901760
        %v1276 = vsub.f32 %v1274, %v1275
        %v1277 = vand.u32 %v1276, 4294901760
        %1278 = vmatpush1.msra.mxu0 %v1277
        %v1279 = vsub.f32 %v827, %v827
        %v1280 = vand.u32 %v1279, 4294901760
        %v1281 = vsub.f32 %v1279, %v1280
        %v1282 = vand.u32 %v1281, 4294901760
        %1283 = vmatprep.subr.mxu0 %v1282
        %v1284 = vsub.f32 %v826, %v826
        %v1285 = vand.u32 %v1284, 4294901760
        %v1286 = vsub.f32 %v1284, %v1285
        %v1287 = vand.u32 %v1286, 4294901760
        %1288 = vmatpush1.msra.mxu0 %v1287
        %v1289 = vsub.f32 %v831, %v831
        %v1290 = vand.u32 %v1289, 4294901760
        %v1291 = vsub.f32 %v1289, %v1290
        %v1292 = vand.u32 %v1291, 4294901760
        %1293 = vmatprep.subr.mxu0 %v1292
        %v1294 = vsub.f32 %v830, %v830
        %v1295 = vand.u32 %v1294, 4294901760
        %v1296 = vsub.f32 %v1294, %v1295
        %v1297 = vand.u32 %v1296, 4294901760
        %1298 = vmatpush1.msra.mxu0 %v1297
        %v1299 = vsub.f32 %v835, %v835
        %v1300 = vand.u32 %v1299, 4294901760
        %v1301 = vsub.f32 %v1299, %v1300
        %v1302 = vand.u32 %v1301, 4294901760
        %1303 = vmatprep.subr.mxu0 %v1302
        %v1304 = vsub.f32 %v834, %v834
        %v1305 = vand.u32 %v1304, 4294901760
        %v1306 = vsub.f32 %v1304, %v1305
        %v1307 = vand.u32 %v1306, 4294901760
        %1308 = vmatpush1.msra.mxu0 %v1307
        %v1309 = vsub.f32 %v839, %v839
        %v1310 = vand.u32 %v1309, 4294901760
        %v1311 = vsub.f32 %v1309, %v1310
        %v1312 = vand.u32 %v1311, 4294901760
        %1313 = vmatprep.subr.mxu0 %v1312
        %v1314 = vsub.f32 %v838, %v838
        %v1315 = vand.u32 %v1314, 4294901760
        %v1316 = vsub.f32 %v1314, %v1315
        %v1317 = vand.u32 %v1316, 4294901760
        %1318 = vmatpush1.msra.mxu0 %v1317
        %v1319 = vand.u32 %v843, 4294901760
        %1320 = vmatprep.mubr.f32.mxu0 %v1319
        %v1321 = vand.u32 %v842, 4294901760
        %1322 = vmatmul.mubr.f32.gmra.mrb[0].mxu0 %v1321
        %v1323 = vpop.f32.mrb[0].mxu0
        %v1324 = vadd.f32 %v947, %v1323
        %v1325 = vpop.f32.mrb[0].mxu0
        %v1326 = vadd.f32 %v949, %v1325
        %v1327 = vand.u32 %v845, 4294901760
        %1328 = vmatprep.mubr.f32.mxu0 %v1327
        %v1329 = vand.u32 %v844, 4294901760
        %1330 = vmatmul.mubr.f32.gmra.mrb[0].mxu0 %v1329
        %v1331 = vpop.f32.mrb[0].mxu0
        %v1332 = vadd.f32 %v963, %v1331
        %v1333 = vpop.f32.mrb[0].mxu0
        %v1334 = vadd.f32 %v965, %v1333
        %v1335 = vand.u32 %v847, 4294901760
        %1336 = vmatprep.mubr.f32.mxu0 %v1335
        %v1337 = vand.u32 %v846, 4294901760
        %1338 = vmatmul.mubr.f32.gmra.mrb[0].mxu0 %v1337
        %v1339 = vpop.f32.mrb[0].mxu0
        %v1340 = vadd.f32 %v979, %v1339
        %v1341 = vpop.f32.mrb[0].mxu0
        %v1342 = vadd.f32 %v981, %v1341
        %v1343 = vand.u32 %v849, 4294901760
        %1344 = vmatprep.mubr.f32.mxu0 %v1343
        %v1345 = vand.u32 %v848, 4294901760
        %1346 = vmatmul.mubr.f32.gmra.mrb[0].mxu0 %v1345
        %v1347 = vpop.f32.mrb[0].mxu0
        %v1348 = vadd.f32 %v995, %v1347
        %v1349 = vpop.f32.mrb[0].mxu0
        %v1350 = vadd.f32 %v997, %v1349
        %1351 = vdwg.mxu0
        %v1352 = vsub.f32 %v715, %v715
        %1353 = vmatprep.subr.mxu0 %v1352
        %v1354 = vsub.f32 %v714, %v714
        %1355 = vmatpush1.msra.mxu0 %v1354
        %v1356 = vsub.f32 %v719, %v719
        %1357 = vmatprep.subr.mxu0 %v1356
        %v1358 = vsub.f32 %v718, %v718
        %1359 = vmatpush1.msra.mxu0 %v1358
        %v1360 = vsub.f32 %v723, %v723
        %1361 = vmatprep.subr.mxu0 %v1360
        %v1362 = vsub.f32 %v722, %v722
        %1363 = vmatpush1.msra.mxu0 %v1362
        %v1364 = vsub.f32 %v727, %v727
        %1365 = vmatprep.subr.mxu0 %v1364
        %v1366 = vsub.f32 %v726, %v726
        %1367 = vmatpush1.msra.mxu0 %v1366
        %v1368 = vsub.f32 %v731, %v731
        %1369 = vmatprep.subr.mxu0 %v1368
        %v1370 = vsub.f32 %v730, %v730
        %1371 = vmatpush1.msra.mxu0 %v1370
        %v1372 = vsub.f32 %v735, %v735
        %1373 = vmatprep.subr.mxu0 %v1372
        %v1374 = vsub.f32 %v734, %v734
        %1375 = vmatpush1.msra.mxu0 %v1374
        %v1376 = vsub.f32 %v739, %v739
        %1377 = vmatprep.subr.mxu0 %v1376
        %v1378 = vsub.f32 %v738, %v738
        %1379 = vmatpush1.msra.mxu0 %v1378
        %v1380 = vsub.f32 %v743, %v743
        %1381 = vmatprep.subr.mxu0 %v1380
        %v1382 = vsub.f32 %v742, %v742
        %1383 = vmatpush1.msra.mxu0 %v1382
        %v1384 = vsub.f32 %v747, %v747
        %1385 = vmatprep.subr.mxu0 %v1384
        %v1386 = vsub.f32 %v746, %v746
        %1387 = vmatpush1.msra.mxu0 %v1386
        %v1388 = vsub.f32 %v751, %v751
        %1389 = vmatprep.subr.mxu0 %v1388
        %v1390 = vsub.f32 %v750, %v750
        %1391 = vmatpush1.msra.mxu0 %v1390
        %v1392 = vsub.f32 %v755, %v755
        %1393 = vmatprep.subr.mxu0 %v1392
        %v1394 = vsub.f32 %v754, %v754
        %1395 = vmatpush1.msra.mxu0 %v1394
        %v1396 = vsub.f32 %v759, %v759
        %1397 = vmatprep.subr.mxu0 %v1396
        %v1398 = vsub.f32 %v758, %v758
        %1399 = vmatpush1.msra.mxu0 %v1398
        %v1400 = vsub.f32 %v763, %v763
        %1401 = vmatprep.subr.mxu0 %v1400
        %v1402 = vsub.f32 %v762, %v762
        %1403 = vmatpush1.msra.mxu0 %v1402
        %v1404 = vsub.f32 %v767, %v767
        %1405 = vmatprep.subr.mxu0 %v1404
        %v1406 = vsub.f32 %v766, %v766
        %1407 = vmatpush1.msra.mxu0 %v1406
        %v1408 = vsub.f32 %v771, %v771
        %1409 = vmatprep.subr.mxu0 %v1408
        %v1410 = vsub.f32 %v770, %v770
        %1411 = vmatpush1.msra.mxu0 %v1410
        %v1412 = vsub.f32 %v775, %v775
        %1413 = vmatprep.subr.mxu0 %v1412
        %v1414 = vsub.f32 %v774, %v774
        %1415 = vmatpush1.msra.mxu0 %v1414
        %v1416 = vsub.f32 %v779, %v779
        %1417 = vmatprep.subr.mxu0 %v1416
        %v1418 = vsub.f32 %v778, %v778
        %1419 = vmatpush1.msra.mxu0 %v1418
        %v1420 = vsub.f32 %v783, %v783
        %1421 = vmatprep.subr.mxu0 %v1420
        %v1422 = vsub.f32 %v782, %v782
        %1423 = vmatpush1.msra.mxu0 %v1422
        %v1424 = vsub.f32 %v787, %v787
        %1425 = vmatprep.subr.mxu0 %v1424
        %v1426 = vsub.f32 %v786, %v786
        %1427 = vmatpush1.msra.mxu0 %v1426
        %v1428 = vsub.f32 %v791, %v791
        %1429 = vmatprep.subr.mxu0 %v1428
        %v1430 = vsub.f32 %v790, %v790
        %1431 = vmatpush1.msra.mxu0 %v1430
        %v1432 = vsub.f32 %v795, %v795
        %1433 = vmatprep.subr.mxu0 %v1432
        %v1434 = vsub.f32 %v794, %v794
        %1435 = vmatpush1.msra.mxu0 %v1434
        %v1436 = vsub.f32 %v799, %v799
        %1437 = vmatprep.subr.mxu0 %v1436
        %v1438 = vsub.f32 %v798, %v798
        %1439 = vmatpush1.msra.mxu0 %v1438
        %v1440 = vsub.f32 %v803, %v803
        %1441 = vmatprep.subr.mxu0 %v1440
        %v1442 = vsub.f32 %v802, %v802
        %1443 = vmatpush1.msra.mxu0 %v1442
        %v1444 = vsub.f32 %v807, %v807
        %1445 = vmatprep.subr.mxu0 %v1444
        %v1446 = vsub.f32 %v806, %v806
        %1447 = vmatpush1.msra.mxu0 %v1446
        %v1448 = vsub.f32 %v811, %v811
        %1449 = vmatprep.subr.mxu0 %v1448
        %v1450 = vsub.f32 %v810, %v810
        %1451 = vmatpush1.msra.mxu0 %v1450
        %v1452 = vsub.f32 %v815, %v815
        %1453 = vmatprep.subr.mxu0 %v1452
        %v1454 = vsub.f32 %v814, %v814
        %1455 = vmatpush1.msra.mxu0 %v1454
        %v1456 = vsub.f32 %v819, %v819
        %1457 = vmatprep.subr.mxu0 %v1456
        %v1458 = vsub.f32 %v818, %v818
        %1459 = vmatpush1.msra.mxu0 %v1458
        %v1460 = vsub.f32 %v823, %v823
        %1461 = vmatprep.subr.mxu0 %v1460
        %v1462 = vsub.f32 %v822, %v822
        %1463 = vmatpush1.msra.mxu0 %v1462
        %v1464 = vsub.f32 %v827, %v827
        %1465 = vmatprep.subr.mxu0 %v1464
        %v1466 = vsub.f32 %v826, %v826
        %1467 = vmatpush1.msra.mxu0 %v1466
        %v1468 = vsub.f32 %v831, %v831
        %1469 = vmatprep.subr.mxu0 %v1468
        %v1470 = vsub.f32 %v830, %v830
        %1471 = vmatpush1.msra.mxu0 %v1470
        %v1472 = vsub.f32 %v835, %v835
        %1473 = vmatprep.subr.mxu0 %v1472
        %v1474 = vsub.f32 %v834, %v834
        %1475 = vmatpush1.msra.mxu0 %v1474
        %v1476 = vsub.f32 %v839, %v839
        %1477 = vmatprep.subr.mxu0 %v1476
        %v1478 = vsub.f32 %v838, %v838
        %1479 = vmatpush1.msra.mxu0 %v1478
        %v1480 = vand.u32 %v843, 4294901760
        %v1481 = vsub.f32 %v843, %v1480
        %1482 = vmatprep.mubr.f32.mxu0 %v1481
        %v1483 = vand.u32 %v842, 4294901760
        %v1484 = vsub.f32 %v842, %v1483
        %1485 = vmatmul.mubr.f32.gmra.mrb[0].mxu0 %v1484
        %v1486 = vpop.f32.mrb[0].mxu0
        %v1487 = vadd.f32 %v1324, %v1486
        %v1488 = vpop.f32.mrb[0].mxu0
        %v1489 = vadd.f32 %v1326, %v1488
        %v1490 = vand.u32 %v845, 4294901760
        %v1491 = vsub.f32 %v845, %v1490
        %1492 = vmatprep.mubr.f32.mxu0 %v1491
        %v1493 = vand.u32 %v844, 4294901760
        %v1494 = vsub.f32 %v844, %v1493
        %1495 = vmatmul.mubr.f32.gmra.mrb[0].mxu0 %v1494
        %v1496 = vpop.f32.mrb[0].mxu0
        %v1497 = vadd.f32 %v1332, %v1496
        %v1498 = vpop.f32.mrb[0].mxu0
        %v1499 = vadd.f32 %v1334, %v1498
        %v1500 = vand.u32 %v847, 4294901760
        %v1501 = vsub.f32 %v847, %v1500
        %1502 = vmatprep.mubr.f32.mxu0 %v1501
        %v1503 = vand.u32 %v846, 4294901760
        %v1504 = vsub.f32 %v846, %v1503
        %1505 = vmatmul.mubr.f32.gmra.mrb[0].mxu0 %v1504
        %v1506 = vpop.f32.mrb[0].mxu0
        %v1507 = vadd.f32 %v1340, %v1506
        %v1508 = vpop.f32.mrb[0].mxu0
        %v1509 = vadd.f32 %v1342, %v1508
        %v1510 = vand.u32 %v849, 4294901760
        %v1511 = vsub.f32 %v849, %v1510
        %1512 = vmatprep.mubr.f32.mxu0 %v1511
        %v1513 = vand.u32 %v848, 4294901760
        %v1514 = vsub.f32 %v848, %v1513
        %1515 = vmatmul.mubr.f32.gmra.mrb[0].mxu0 %v1514
        %v1516 = vpop.f32.mrb[0].mxu0
        %v1517 = vadd.f32 %v1348, %v1516
        %v1518 = vpop.f32.mrb[0].mxu0
        %v1519 = vadd.f32 %v1350, %v1518
        %1520 = vdwg.mxu0
        %1521 = vmatprep.subr.mxu0 %v715
        %1522 = vmatpush1.msra.mxu0 %v714
        %1523 = vmatprep.subr.mxu0 %v719
        %1524 = vmatpush1.msra.mxu0 %v718
        %1525 = vmatprep.subr.mxu0 %v723
        %1526 = vmatpush1.msra.mxu0 %v722
        %1527 = vmatprep.subr.mxu0 %v727
        %1528 = vmatpush1.msra.mxu0 %v726
        %1529 = vmatprep.subr.mxu0 %v731
        %1530 = vmatpush1.msra.mxu0 %v730
        %1531 = vmatprep.subr.mxu0 %v735
        %1532 = vmatpush1.msra.mxu0 %v734
        %1533 = vmatprep.subr.mxu0 %v739
        %1534 = vmatpush1.msra.mxu0 %v738
        %1535 = vmatprep.subr.mxu0 %v743
        %1536 = vmatpush1.msra.mxu0 %v742
        %1537 = vmatprep.subr.mxu0 %v747
        %1538 = vmatpush1.msra.mxu0 %v746
        %1539 = vmatprep.subr.mxu0 %v751
        %1540 = vmatpush1.msra.mxu0 %v750
        %1541 = vmatprep.subr.mxu0 %v755
        %1542 = vmatpush1.msra.mxu0 %v754
        %1543 = vmatprep.subr.mxu0 %v759
        %1544 = vmatpush1.msra.mxu0 %v758
        %1545 = vmatprep.subr.mxu0 %v763
        %1546 = vmatpush1.msra.mxu0 %v762
        %1547 = vmatprep.subr.mxu0 %v767
        %1548 = vmatpush1.msra.mxu0 %v766
        %1549 = vmatprep.subr.mxu0 %v771
        %1550 = vmatpush1.msra.mxu0 %v770
        %1551 = vmatprep.subr.mxu0 %v775
        %1552 = vmatpush1.msra.mxu0 %v774
        %1553 = vmatprep.subr.mxu0 %v779
        %1554 = vmatpush1.msra.mxu0 %v778
        %1555 = vmatprep.subr.mxu0 %v783
        %1556 = vmatpush1.msra.mxu0 %v782
        %1557 = vmatprep.subr.mxu0 %v787
        %1558 = vmatpush1.msra.mxu0 %v786
        %1559 = vmatprep.subr.mxu0 %v791
        %1560 = vmatpush1.msra.mxu0 %v790
        %1561 = vmatprep.subr.mxu0 %v795
        %1562 = vmatpush1.msra.mxu0 %v794
        %1563 = vmatprep.subr.mxu0 %v799
        %1564 = vmatpush1.msra.mxu0 %v798
        %1565 = vmatprep.subr.mxu0 %v803
        %1566 = vmatpush1.msra.mxu0 %v802
        %1567 = vmatprep.subr.mxu0 %v807
        %1568 = vmatpush1.msra.mxu0 %v806
        %1569 = vmatprep.subr.mxu0 %v811
        %1570 = vmatpush1.msra.mxu0 %v810
        %1571 = vmatprep.subr.mxu0 %v815
        %1572 = vmatpush1.msra.mxu0 %v814
        %1573 = vmatprep.subr.mxu0 %v819
        %1574 = vmatpush1.msra.mxu0 %v818
        %1575 = vmatprep.subr.mxu0 %v823
        %1576 = vmatpush1.msra.mxu0 %v822
        %1577 = vmatprep.subr.mxu0 %v827
        %1578 = vmatpush1.msra.mxu0 %v826
        %1579 = vmatprep.subr.mxu0 %v831
        %1580 = vmatpush1.msra.mxu0 %v830
        %1581 = vmatprep.subr.mxu0 %v835
        %1582 = vmatpush1.msra.mxu0 %v834
        %1583 = vmatprep.subr.mxu0 %v839
        %1584 = vmatpush1.msra.mxu0 %v838
        %v1585 = vand.u32 %v843, 4294901760
        %v1586 = vsub.f32 %v843, %v1585
        %v1587 = vand.u32 %v1586, 4294901760
        %1588 = vmatprep.mubr.f32.mxu0 %v1587
        %v1589 = vand.u32 %v842, 4294901760
        %v1590 = vsub.f32 %v842, %v1589
        %v1591 = vand.u32 %v1590, 4294901760
        %1592 = vmatmul.mubr.f32.gmra.mrb[0].mxu0 %v1591
        %v1593 = vpop.f32.mrb[0].mxu0
        %v1594 = vadd.f32 %v1487, %v1593
        %v1595 = vpop.f32.mrb[0].mxu0
        %v1596 = vadd.f32 %v1489, %v1595
        %v1597 = vand.u32 %v845, 4294901760
        %v1598 = vsub.f32 %v845, %v1597
        %v1599 = vand.u32 %v1598, 4294901760
        %1600 = vmatprep.mubr.f32.mxu0 %v1599
        %v1601 = vand.u32 %v844, 4294901760
        %v1602 = vsub.f32 %v844, %v1601
        %v1603 = vand.u32 %v1602, 4294901760
        %1604 = vmatmul.mubr.f32.gmra.mrb[0].mxu0 %v1603
        %v1605 = vpop.f32.mrb[0].mxu0
        %v1606 = vadd.f32 %v1497, %v1605
        %v1607 = vpop.f32.mrb[0].mxu0
        %v1608 = vadd.f32 %v1499, %v1607
        %v1609 = vand.u32 %v847, 4294901760
        %v1610 = vsub.f32 %v847, %v1609
        %v1611 = vand.u32 %v1610, 4294901760
        %1612 = vmatprep.mubr.f32.mxu0 %v1611
        %v1613 = vand.u32 %v846, 4294901760
        %v1614 = vsub.f32 %v846, %v1613
        %v1615 = vand.u32 %v1614, 4294901760
        %1616 = vmatmul.mubr.f32.gmra.mrb[0].mxu0 %v1615
        %v1617 = vpop.f32.mrb[0].mxu0
        %v1618 = vadd.f32 %v1507, %v1617
        %v1619 = vpop.f32.mrb[0].mxu0
        %v1620 = vadd.f32 %v1509, %v1619
        %v1621 = vand.u32 %v849, 4294901760
        %v1622 = vsub.f32 %v849, %v1621
        %v1623 = vand.u32 %v1622, 4294901760
        %1624 = vmatprep.mubr.f32.mxu0 %v1623
        %v1625 = vand.u32 %v848, 4294901760
        %v1626 = vsub.f32 %v848, %v1625
        %v1627 = vand.u32 %v1626, 4294901760
        %1628 = vmatmul.mubr.f32.gmra.mrb[0].mxu0 %v1627
        %v1629 = vpop.f32.mrb[0].mxu0
        %v1630 = vadd.f32 %v1517, %v1629
        %v1631 = vpop.f32.mrb[0].mxu0
        %v1632 = vadd.f32 %v1519, %v1631
        %1633 = vdwg.mxu0
        %v1634 = vsub.f32 %v715, %v715
        %v1635 = vand.u32 %v1634, 4294901760
        %1636 = vmatprep.subr.mxu0 %v1635
        %v1637 = vsub.f32 %v714, %v714
        %v1638 = vand.u32 %v1637, 4294901760
        %1639 = vmatpush1.msra.mxu0 %v1638
        %v1640 = vsub.f32 %v719, %v719
        %v1641 = vand.u32 %v1640, 4294901760
        %1642 = vmatprep.subr.mxu0 %v1641
        %v1643 = vsub.f32 %v718, %v718
        %v1644 = vand.u32 %v1643, 4294901760
        %1645 = vmatpush1.msra.mxu0 %v1644
        %v1646 = vsub.f32 %v723, %v723
        %v1647 = vand.u32 %v1646, 4294901760
        %1648 = vmatprep.subr.mxu0 %v1647
        %v1649 = vsub.f32 %v722, %v722
        %v1650 = vand.u32 %v1649, 4294901760
        %1651 = vmatpush1.msra.mxu0 %v1650
        %v1652 = vsub.f32 %v727, %v727
        %v1653 = vand.u32 %v1652, 4294901760
        %1654 = vmatprep.subr.mxu0 %v1653
        %v1655 = vsub.f32 %v726, %v726
        %v1656 = vand.u32 %v1655, 4294901760
        %1657 = vmatpush1.msra.mxu0 %v1656
        %v1658 = vsub.f32 %v731, %v731
        %v1659 = vand.u32 %v1658, 4294901760
        %1660 = vmatprep.subr.mxu0 %v1659
        %v1661 = vsub.f32 %v730, %v730
        %v1662 = vand.u32 %v1661, 4294901760
        %1663 = vmatpush1.msra.mxu0 %v1662
        %v1664 = vsub.f32 %v735, %v735
        %v1665 = vand.u32 %v1664, 4294901760
        %1666 = vmatprep.subr.mxu0 %v1665
        %v1667 = vsub.f32 %v734, %v734
        %v1668 = vand.u32 %v1667, 4294901760
        %1669 = vmatpush1.msra.mxu0 %v1668
        %v1670 = vsub.f32 %v739, %v739
        %v1671 = vand.u32 %v1670, 4294901760
        %1672 = vmatprep.subr.mxu0 %v1671
        %v1673 = vsub.f32 %v738, %v738
        %v1674 = vand.u32 %v1673, 4294901760
        %1675 = vmatpush1.msra.mxu0 %v1674
        %v1676 = vsub.f32 %v743, %v743
        %v1677 = vand.u32 %v1676, 4294901760
        %1678 = vmatprep.subr.mxu0 %v1677
        %v1679 = vsub.f32 %v742, %v742
        %v1680 = vand.u32 %v1679, 4294901760
        %1681 = vmatpush1.msra.mxu0 %v1680
        %v1682 = vsub.f32 %v747, %v747
        %v1683 = vand.u32 %v1682, 4294901760
        %1684 = vmatprep.subr.mxu0 %v1683
        %v1685 = vsub.f32 %v746, %v746
        %v1686 = vand.u32 %v1685, 4294901760
        %1687 = vmatpush1.msra.mxu0 %v1686
        %v1688 = vsub.f32 %v751, %v751
        %v1689 = vand.u32 %v1688, 4294901760
        %1690 = vmatprep.subr.mxu0 %v1689
        %v1691 = vsub.f32 %v750, %v750
        %v1692 = vand.u32 %v1691, 4294901760
        %1693 = vmatpush1.msra.mxu0 %v1692
        %v1694 = vsub.f32 %v755, %v755
        %v1695 = vand.u32 %v1694, 4294901760
        %1696 = vmatprep.subr.mxu0 %v1695
        %v1697 = vsub.f32 %v754, %v754
        %v1698 = vand.u32 %v1697, 4294901760
        %1699 = vmatpush1.msra.mxu0 %v1698
        %v1700 = vsub.f32 %v759, %v759
        %v1701 = vand.u32 %v1700, 4294901760
        %1702 = vmatprep.subr.mxu0 %v1701
        %v1703 = vsub.f32 %v758, %v758
        %v1704 = vand.u32 %v1703, 4294901760
        %1705 = vmatpush1.msra.mxu0 %v1704
        %v1706 = vsub.f32 %v763, %v763
        %v1707 = vand.u32 %v1706, 4294901760
        %1708 = vmatprep.subr.mxu0 %v1707
        %v1709 = vsub.f32 %v762, %v762
        %v1710 = vand.u32 %v1709, 4294901760
        %1711 = vmatpush1.msra.mxu0 %v1710
        %v1712 = vsub.f32 %v767, %v767
        %v1713 = vand.u32 %v1712, 4294901760
        %1714 = vmatprep.subr.mxu0 %v1713
        %v1715 = vsub.f32 %v766, %v766
        %v1716 = vand.u32 %v1715, 4294901760
        %1717 = vmatpush1.msra.mxu0 %v1716
        %v1718 = vsub.f32 %v771, %v771
        %v1719 = vand.u32 %v1718, 4294901760
        %1720 = vmatprep.subr.mxu0 %v1719
        %v1721 = vsub.f32 %v770, %v770
        %v1722 = vand.u32 %v1721, 4294901760
        %1723 = vmatpush1.msra.mxu0 %v1722
        %v1724 = vsub.f32 %v775, %v775
        %v1725 = vand.u32 %v1724, 4294901760
        %1726 = vmatprep.subr.mxu0 %v1725
        %v1727 = vsub.f32 %v774, %v774
        %v1728 = vand.u32 %v1727, 4294901760
        %1729 = vmatpush1.msra.mxu0 %v1728
        %v1730 = vsub.f32 %v779, %v779
        %v1731 = vand.u32 %v1730, 4294901760
        %1732 = vmatprep.subr.mxu0 %v1731
        %v1733 = vsub.f32 %v778, %v778
        %v1734 = vand.u32 %v1733, 4294901760
        %1735 = vmatpush1.msra.mxu0 %v1734
        %v1736 = vsub.f32 %v783, %v783
        %v1737 = vand.u32 %v1736, 4294901760
        %1738 = vmatprep.subr.mxu0 %v1737
        %v1739 = vsub.f32 %v782, %v782
        %v1740 = vand.u32 %v1739, 4294901760
        %1741 = vmatpush1.msra.mxu0 %v1740
        %v1742 = vsub.f32 %v787, %v787
        %v1743 = vand.u32 %v1742, 4294901760
        %1744 = vmatprep.subr.mxu0 %v1743
        %v1745 = vsub.f32 %v786, %v786
        %v1746 = vand.u32 %v1745, 4294901760
        %1747 = vmatpush1.msra.mxu0 %v1746
        %v1748 = vsub.f32 %v791, %v791
        %v1749 = vand.u32 %v1748, 4294901760
        %1750 = vmatprep.subr.mxu0 %v1749
        %v1751 = vsub.f32 %v790, %v790
        %v1752 = vand.u32 %v1751, 4294901760
        %1753 = vmatpush1.msra.mxu0 %v1752
        %v1754 = vsub.f32 %v795, %v795
        %v1755 = vand.u32 %v1754, 4294901760
        %1756 = vmatprep.subr.mxu0 %v1755
        %v1757 = vsub.f32 %v794, %v794
        %v1758 = vand.u32 %v1757, 4294901760
        %1759 = vmatpush1.msra.mxu0 %v1758
        %v1760 = vsub.f32 %v799, %v799
        %v1761 = vand.u32 %v1760, 4294901760
        %1762 = vmatprep.subr.mxu0 %v1761
        %v1763 = vsub.f32 %v798, %v798
        %v1764 = vand.u32 %v1763, 4294901760
        %1765 = vmatpush1.msra.mxu0 %v1764
        %v1766 = vsub.f32 %v803, %v803
        %v1767 = vand.u32 %v1766, 4294901760
        %1768 = vmatprep.subr.mxu0 %v1767
        %v1769 = vsub.f32 %v802, %v802
        %v1770 = vand.u32 %v1769, 4294901760
        %1771 = vmatpush1.msra.mxu0 %v1770
        %v1772 = vsub.f32 %v807, %v807
        %v1773 = vand.u32 %v1772, 4294901760
        %1774 = vmatprep.subr.mxu0 %v1773
        %v1775 = vsub.f32 %v806, %v806
        %v1776 = vand.u32 %v1775, 4294901760
        %1777 = vmatpush1.msra.mxu0 %v1776
        %v1778 = vsub.f32 %v811, %v811
        %v1779 = vand.u32 %v1778, 4294901760
        %1780 = vmatprep.subr.mxu0 %v1779
        %v1781 = vsub.f32 %v810, %v810
        %v1782 = vand.u32 %v1781, 4294901760
        %1783 = vmatpush1.msra.mxu0 %v1782
        %v1784 = vsub.f32 %v815, %v815
        %v1785 = vand.u32 %v1784, 4294901760
        %1786 = vmatprep.subr.mxu0 %v1785
        %v1787 = vsub.f32 %v814, %v814
        %v1788 = vand.u32 %v1787, 4294901760
        %1789 = vmatpush1.msra.mxu0 %v1788
        %v1790 = vsub.f32 %v819, %v819
        %v1791 = vand.u32 %v1790, 4294901760
        %1792 = vmatprep.subr.mxu0 %v1791
        %v1793 = vsub.f32 %v818, %v818
        %v1794 = vand.u32 %v1793, 4294901760
        %1795 = vmatpush1.msra.mxu0 %v1794
        %v1796 = vsub.f32 %v823, %v823
        %v1797 = vand.u32 %v1796, 4294901760
        %1798 = vmatprep.subr.mxu0 %v1797
        %v1799 = vsub.f32 %v822, %v822
        %v1800 = vand.u32 %v1799, 4294901760
        %1801 = vmatpush1.msra.mxu0 %v1800
        %v1802 = vsub.f32 %v827, %v827
        %v1803 = vand.u32 %v1802, 4294901760
        %1804 = vmatprep.subr.mxu0 %v1803
        %v1805 = vsub.f32 %v826, %v826
        %v1806 = vand.u32 %v1805, 4294901760
        %1807 = vmatpush1.msra.mxu0 %v1806
        %v1808 = vsub.f32 %v831, %v831
        %v1809 = vand.u32 %v1808, 4294901760
        %1810 = vmatprep.subr.mxu0 %v1809
        %v1811 = vsub.f32 %v830, %v830
        %v1812 = vand.u32 %v1811, 4294901760
        %1813 = vmatpush1.msra.mxu0 %v1812
        %v1814 = vsub.f32 %v835, %v835
        %v1815 = vand.u32 %v1814, 4294901760
        %1816 = vmatprep.subr.mxu0 %v1815
        %v1817 = vsub.f32 %v834, %v834
        %v1818 = vand.u32 %v1817, 4294901760
        %1819 = vmatpush1.msra.mxu0 %v1818
        %v1820 = vsub.f32 %v839, %v839
        %v1821 = vand.u32 %v1820, 4294901760
        %1822 = vmatprep.subr.mxu0 %v1821
        %v1823 = vsub.f32 %v838, %v838
        %v1824 = vand.u32 %v1823, 4294901760
        %1825 = vmatpush1.msra.mxu0 %v1824
        %v1826 = vand.u32 %v843, 4294901760
        %1827 = vmatprep.mubr.f32.mxu0 %v1826
        %v1828 = vand.u32 %v842, 4294901760
        %1829 = vmatmul.mubr.f32.gmra.mrb[0].mxu0 %v1828
        %v1830 = vpop.f32.mrb[0].mxu0
        %v1831 = vadd.f32 %v1594, %v1830
        %v1832 = vpop.f32.mrb[0].mxu0
        %v1833 = vadd.f32 %v1596, %v1832
        %v1834 = vand.u32 %v845, 4294901760
        %1835 = vmatprep.mubr.f32.mxu0 %v1834
        %v1836 = vand.u32 %v844, 4294901760
        %1837 = vmatmul.mubr.f32.gmra.mrb[0].mxu0 %v1836
        %v1838 = vpop.f32.mrb[0].mxu0
        %v1839 = vadd.f32 %v1606, %v1838
        %v1840 = vpop.f32.mrb[0].mxu0
        %v1841 = vadd.f32 %v1608, %v1840
        %v1842 = vand.u32 %v847, 4294901760
        %1843 = vmatprep.mubr.f32.mxu0 %v1842
        %v1844 = vand.u32 %v846, 4294901760
        %1845 = vmatmul.mubr.f32.gmra.mrb[0].mxu0 %v1844
        %v1846 = vpop.f32.mrb[0].mxu0
        %v1847 = vadd.f32 %v1618, %v1846
        %v1848 = vpop.f32.mrb[0].mxu0
        %v1849 = vadd.f32 %v1620, %v1848
        %v1850 = vand.u32 %v849, 4294901760
        %1851 = vmatprep.mubr.f32.mxu0 %v1850
        %v1852 = vand.u32 %v848, 4294901760
        %1853 = vmatmul.mubr.f32.gmra.mrb[0].mxu0 %v1852
        %v1854 = vpop.f32.mrb[0].mxu0
        %v1855 = vadd.f32 %v1630, %v1854
        %v1856 = vpop.f32.mrb[0].mxu0
        %v1857 = vadd.f32 %v1632, %v1856
        %1858 = vdwg.mxu0
        %1859 = vmatprep.subr.mxu0 %v715
        %1860 = vmatpush1.msra.mxu0 %v714
        %1861 = vmatprep.subr.mxu0 %v719
        %1862 = vmatpush1.msra.mxu0 %v718
        %1863 = vmatprep.subr.mxu0 %v723
        %1864 = vmatpush1.msra.mxu0 %v722
        %1865 = vmatprep.subr.mxu0 %v727
        %1866 = vmatpush1.msra.mxu0 %v726
        %1867 = vmatprep.subr.mxu0 %v731
        %1868 = vmatpush1.msra.mxu0 %v730
        %1869 = vmatprep.subr.mxu0 %v735
        %1870 = vmatpush1.msra.mxu0 %v734
        %1871 = vmatprep.subr.mxu0 %v739
        %1872 = vmatpush1.msra.mxu0 %v738
        %1873 = vmatprep.subr.mxu0 %v743
        %1874 = vmatpush1.msra.mxu0 %v742
        %1875 = vmatprep.subr.mxu0 %v747
        %1876 = vmatpush1.msra.mxu0 %v746
        %1877 = vmatprep.subr.mxu0 %v751
        %1878 = vmatpush1.msra.mxu0 %v750
        %1879 = vmatprep.subr.mxu0 %v755
        %1880 = vmatpush1.msra.mxu0 %v754
        %1881 = vmatprep.subr.mxu0 %v759
        %1882 = vmatpush1.msra.mxu0 %v758
        %1883 = vmatprep.subr.mxu0 %v763
        %1884 = vmatpush1.msra.mxu0 %v762
        %1885 = vmatprep.subr.mxu0 %v767
        %1886 = vmatpush1.msra.mxu0 %v766
        %1887 = vmatprep.subr.mxu0 %v771
        %1888 = vmatpush1.msra.mxu0 %v770
        %1889 = vmatprep.subr.mxu0 %v775
        %1890 = vmatpush1.msra.mxu0 %v774
        %1891 = vmatprep.subr.mxu0 %v779
        %1892 = vmatpush1.msra.mxu0 %v778
        %1893 = vmatprep.subr.mxu0 %v783
        %1894 = vmatpush1.msra.mxu0 %v782
        %1895 = vmatprep.subr.mxu0 %v787
        %1896 = vmatpush1.msra.mxu0 %v786
        %1897 = vmatprep.subr.mxu0 %v791
        %1898 = vmatpush1.msra.mxu0 %v790
        %1899 = vmatprep.subr.mxu0 %v795
        %1900 = vmatpush1.msra.mxu0 %v794
        %1901 = vmatprep.subr.mxu0 %v799
        %1902 = vmatpush1.msra.mxu0 %v798
        %1903 = vmatprep.subr.mxu0 %v803
        %1904 = vmatpush1.msra.mxu0 %v802
        %1905 = vmatprep.subr.mxu0 %v807
        %1906 = vmatpush1.msra.mxu0 %v806
        %1907 = vmatprep.subr.mxu0 %v811
        %1908 = vmatpush1.msra.mxu0 %v810
        %1909 = vmatprep.subr.mxu0 %v815
        %1910 = vmatpush1.msra.mxu0 %v814
        %1911 = vmatprep.subr.mxu0 %v819
        %1912 = vmatpush1.msra.mxu0 %v818
        %1913 = vmatprep.subr.mxu0 %v823
        %1914 = vmatpush1.msra.mxu0 %v822
        %1915 = vmatprep.subr.mxu0 %v827
        %1916 = vmatpush1.msra.mxu0 %v826
        %1917 = vmatprep.subr.mxu0 %v831
        %1918 = vmatpush1.msra.mxu0 %v830
        %1919 = vmatprep.subr.mxu0 %v835
        %1920 = vmatpush1.msra.mxu0 %v834
        %1921 = vmatprep.subr.mxu0 %v839
        %1922 = vmatpush1.msra.mxu0 %v838
        %v1923 = vand.u32 %v843, 4294901760
        %1924 = vmatprep.mubr.f32.mxu0 %v1923
        %v1925 = vand.u32 %v842, 4294901760
        %1926 = vmatmul.mubr.f32.gmra.mrb[0].mxu0 %v1925
        %v1927 = vpop.f32.mrb[0].mxu0
        %v1928 = vadd.f32 %v1831, %v1927
        %v1929 = vpop.f32.mrb[0].mxu0
        %v1930 = vadd.f32 %v1833, %v1929
        %v1931 = vand.u32 %v845, 4294901760
        %1932 = vmatprep.mubr.f32.mxu0 %v1931
        %v1933 = vand.u32 %v844, 4294901760
        %1934 = vmatmul.mubr.f32.gmra.mrb[0].mxu0 %v1933
        %v1935 = vpop.f32.mrb[0].mxu0
        %v1936 = vadd.f32 %v1839, %v1935
        %v1937 = vpop.f32.mrb[0].mxu0
        %v1938 = vadd.f32 %v1841, %v1937
        %v1939 = vand.u32 %v847, 4294901760
        %1940 = vmatprep.mubr.f32.mxu0 %v1939
        %v1941 = vand.u32 %v846, 4294901760
        %1942 = vmatmul.mubr.f32.gmra.mrb[0].mxu0 %v1941
        %v1943 = vpop.f32.mrb[0].mxu0
        %v1944 = vadd.f32 %v1847, %v1943
        %v1945 = vpop.f32.mrb[0].mxu0
        %v1946 = vadd.f32 %v1849, %v1945
        %v1947 = vand.u32 %v849, 4294901760
        %1948 = vmatprep.mubr.f32.mxu0 %v1947
        %v1949 = vand.u32 %v848, 4294901760
        %1950 = vmatmul.mubr.f32.gmra.mrb[0].mxu0 %v1949
        %v1951 = vpop.f32.mrb[0].mxu0
        %v1952 = vadd.f32 %v1855, %v1951
        %v1953 = vpop.f32.mrb[0].mxu0
        %v1954 = vadd.f32 %v1857, %v1953
        %1955 = vdwg.mxu0
        %1956 = vmatprep.subr.mxu0 %v717
        %1957 = vmatpush1.msra.mxu0 %v716
        %1958 = vmatprep.subr.mxu0 %v721
        %1959 = vmatpush1.msra.mxu0 %v720
        %1960 = vmatprep.subr.mxu0 %v725
        %1961 = vmatpush1.msra.mxu0 %v724
        %1962 = vmatprep.subr.mxu0 %v729
        %1963 = vmatpush1.msra.mxu0 %v728
        %1964 = vmatprep.subr.mxu0 %v733
        %1965 = vmatpush1.msra.mxu0 %v732
        %1966 = vmatprep.subr.mxu0 %v737
        %1967 = vmatpush1.msra.mxu0 %v736
        %1968 = vmatprep.subr.mxu0 %v741
        %1969 = vmatpush1.msra.mxu0 %v740
        %1970 = vmatprep.subr.mxu0 %v745
        %1971 = vmatpush1.msra.mxu0 %v744
        %1972 = vmatprep.subr.mxu0 %v749
        %1973 = vmatpush1.msra.mxu0 %v748
        %1974 = vmatprep.subr.mxu0 %v753
        %1975 = vmatpush1.msra.mxu0 %v752
        %1976 = vmatprep.subr.mxu0 %v757
        %1977 = vmatpush1.msra.mxu0 %v756
        %1978 = vmatprep.subr.mxu0 %v761
        %1979 = vmatpush1.msra.mxu0 %v760
        %1980 = vmatprep.subr.mxu0 %v765
        %1981 = vmatpush1.msra.mxu0 %v764
        %1982 = vmatprep.subr.mxu0 %v769
        %1983 = vmatpush1.msra.mxu0 %v768
        %1984 = vmatprep.subr.mxu0 %v773
        %1985 = vmatpush1.msra.mxu0 %v772
        %1986 = vmatprep.subr.mxu0 %v777
        %1987 = vmatpush1.msra.mxu0 %v776
        %1988 = vmatprep.subr.mxu0 %v781
        %1989 = vmatpush1.msra.mxu0 %v780
        %1990 = vmatprep.subr.mxu0 %v785
        %1991 = vmatpush1.msra.mxu0 %v784
        %1992 = vmatprep.subr.mxu0 %v789
        %1993 = vmatpush1.msra.mxu0 %v788
        %1994 = vmatprep.subr.mxu0 %v793
        %1995 = vmatpush1.msra.mxu0 %v792
        %1996 = vmatprep.subr.mxu0 %v797
        %1997 = vmatpush1.msra.mxu0 %v796
        %1998 = vmatprep.subr.mxu0 %v801
        %1999 = vmatpush1.msra.mxu0 %v800
        %2000 = vmatprep.subr.mxu0 %v805
        %2001 = vmatpush1.msra.mxu0 %v804
        %2002 = vmatprep.subr.mxu0 %v809
        %2003 = vmatpush1.msra.mxu0 %v808
        %2004 = vmatprep.subr.mxu0 %v813
        %2005 = vmatpush1.msra.mxu0 %v812
        %2006 = vmatprep.subr.mxu0 %v817
        %2007 = vmatpush1.msra.mxu0 %v816
        %2008 = vmatprep.subr.mxu0 %v821
        %2009 = vmatpush1.msra.mxu0 %v820
        %2010 = vmatprep.subr.mxu0 %v825
        %2011 = vmatpush1.msra.mxu0 %v824
        %2012 = vmatprep.subr.mxu0 %v829
        %2013 = vmatpush1.msra.mxu0 %v828
        %2014 = vmatprep.subr.mxu0 %v833
        %2015 = vmatpush1.msra.mxu0 %v832
        %2016 = vmatprep.subr.mxu0 %v837
        %2017 = vmatpush1.msra.mxu0 %v836
        %2018 = vmatprep.subr.mxu0 %v841
        %2019 = vmatpush1.msra.mxu0 %v840
        %v2020 = vand.u32 %v843, 4294901760
        %v2021 = vsub.f32 %v843, %v2020
        %v2022 = vand.u32 %v2021, 4294901760
        %v2023 = vsub.f32 %v2021, %v2022
        %v2024 = vand.u32 %v2023, 4294901760
        %2025 = vmatprep.mubr.f32.mxu0 %v2024
        %v2026 = vand.u32 %v842, 4294901760
        %v2027 = vsub.f32 %v842, %v2026
        %v2028 = vand.u32 %v2027, 4294901760
        %v2029 = vsub.f32 %v2027, %v2028
        %v2030 = vand.u32 %v2029, 4294901760
        %2031 = vmatmul.mubr.f32.gmra.mrb[0].mxu0 %v2030
        %v2032 = vpop.f32.mrb[0].mxu0
        %v2033 = vadd.f32 %v853, %v2032
        %v2034 = vpop.f32.mrb[0].mxu0
        %v2035 = vadd.f32 %v853, %v2034
        %v2036 = vand.u32 %v845, 4294901760
        %v2037 = vsub.f32 %v845, %v2036
        %v2038 = vand.u32 %v2037, 4294901760
        %v2039 = vsub.f32 %v2037, %v2038
        %v2040 = vand.u32 %v2039, 4294901760
        %2041 = vmatprep.mubr.f32.mxu0 %v2040
        %v2042 = vand.u32 %v844, 4294901760
        %v2043 = vsub.f32 %v844, %v2042
        %v2044 = vand.u32 %v2043, 4294901760
        %v2045 = vsub.f32 %v2043, %v2044
        %v2046 = vand.u32 %v2045, 4294901760
        %2047 = vmatmul.mubr.f32.gmra.mrb[0].mxu0 %v2046
        %v2048 = vpop.f32.mrb[0].mxu0
        %v2049 = vadd.f32 %v858, %v2048
        %v2050 = vpop.f32.mrb[0].mxu0
        %v2051 = vadd.f32 %v858, %v2050
        %v2052 = vand.u32 %v847, 4294901760
        %v2053 = vsub.f32 %v847, %v2052
        %v2054 = vand.u32 %v2053, 4294901760
        %v2055 = vsub.f32 %v2053, %v2054
        %v2056 = vand.u32 %v2055, 4294901760
        %2057 = vmatprep.mubr.f32.mxu0 %v2056
        %v2058 = vand.u32 %v846, 4294901760
        %v2059 = vsub.f32 %v846, %v2058
        %v2060 = vand.u32 %v2059, 4294901760
        %v2061 = vsub.f32 %v2059, %v2060
        %v2062 = vand.u32 %v2061, 4294901760
        %2063 = vmatmul.mubr.f32.gmra.mrb[0].mxu0 %v2062
        %v2064 = vpop.f32.mrb[0].mxu0
        %v2065 = vadd.f32 %v863, %v2064
        %v2066 = vpop.f32.mrb[0].mxu0
        %v2067 = vadd.f32 %v863, %v2066
        %v2068 = vand.u32 %v849, 4294901760
        %v2069 = vsub.f32 %v849, %v2068
        %v2070 = vand.u32 %v2069, 4294901760
        %v2071 = vsub.f32 %v2069, %v2070
        %v2072 = vand.u32 %v2071, 4294901760
        %2073 = vmatprep.mubr.f32.mxu0 %v2072
        %v2074 = vand.u32 %v848, 4294901760
        %v2075 = vsub.f32 %v848, %v2074
        %v2076 = vand.u32 %v2075, 4294901760
        %v2077 = vsub.f32 %v2075, %v2076
        %v2078 = vand.u32 %v2077, 4294901760
        %2079 = vmatmul.mubr.f32.gmra.mrb[0].mxu0 %v2078
        %v2080 = vpop.f32.mrb[0].mxu0
        %v2081 = vadd.f32 %v868, %v2080
        %v2082 = vpop.f32.mrb[0].mxu0
        %v2083 = vadd.f32 %v868, %v2082
        %2084 = vdwg.mxu0
        %v2085 = vsub.f32 %v717, %v717
        %v2086 = vand.u32 %v2085, 4294901760
        %v2087 = vsub.f32 %v2085, %v2086
        %v2088 = vand.u32 %v2087, 4294901760
        %2089 = vmatprep.subr.mxu0 %v2088
        %v2090 = vsub.f32 %v716, %v716
        %v2091 = vand.u32 %v2090, 4294901760
        %v2092 = vsub.f32 %v2090, %v2091
        %v2093 = vand.u32 %v2092, 4294901760
        %2094 = vmatpush1.msra.mxu0 %v2093
        %v2095 = vsub.f32 %v721, %v721
        %v2096 = vand.u32 %v2095, 4294901760
        %v2097 = vsub.f32 %v2095, %v2096
        %v2098 = vand.u32 %v2097, 4294901760
        %2099 = vmatprep.subr.mxu0 %v2098
        %v2100 = vsub.f32 %v720, %v720
        %v2101 = vand.u32 %v2100, 4294901760
        %v2102 = vsub.f32 %v2100, %v2101
        %v2103 = vand.u32 %v2102, 4294901760
        %2104 = vmatpush1.msra.mxu0 %v2103
        %v2105 = vsub.f32 %v725, %v725
        %v2106 = vand.u32 %v2105, 4294901760
        %v2107 = vsub.f32 %v2105, %v2106
        %v2108 = vand.u32 %v2107, 4294901760
        %2109 = vmatprep.subr.mxu0 %v2108
        %v2110 = vsub.f32 %v724, %v724
        %v2111 = vand.u32 %v2110, 4294901760
        %v2112 = vsub.f32 %v2110, %v2111
        %v2113 = vand.u32 %v2112, 4294901760
        %2114 = vmatpush1.msra.mxu0 %v2113
        %v2115 = vsub.f32 %v729, %v729
        %v2116 = vand.u32 %v2115, 4294901760
        %v2117 = vsub.f32 %v2115, %v2116
        %v2118 = vand.u32 %v2117, 4294901760
        %2119 = vmatprep.subr.mxu0 %v2118
        %v2120 = vsub.f32 %v728, %v728
        %v2121 = vand.u32 %v2120, 4294901760
        %v2122 = vsub.f32 %v2120, %v2121
        %v2123 = vand.u32 %v2122, 4294901760
        %2124 = vmatpush1.msra.mxu0 %v2123
        %v2125 = vsub.f32 %v733, %v733
        %v2126 = vand.u32 %v2125, 4294901760
        %v2127 = vsub.f32 %v2125, %v2126
        %v2128 = vand.u32 %v2127, 4294901760
        %2129 = vmatprep.subr.mxu0 %v2128
        %v2130 = vsub.f32 %v732, %v732
        %v2131 = vand.u32 %v2130, 4294901760
        %v2132 = vsub.f32 %v2130, %v2131
        %v2133 = vand.u32 %v2132, 4294901760
        %2134 = vmatpush1.msra.mxu0 %v2133
        %v2135 = vsub.f32 %v737, %v737
        %v2136 = vand.u32 %v2135, 4294901760
        %v2137 = vsub.f32 %v2135, %v2136
        %v2138 = vand.u32 %v2137, 4294901760
        %2139 = vmatprep.subr.mxu0 %v2138
        %v2140 = vsub.f32 %v736, %v736
        %v2141 = vand.u32 %v2140, 4294901760
        %v2142 = vsub.f32 %v2140, %v2141
        %v2143 = vand.u32 %v2142, 4294901760
        %2144 = vmatpush1.msra.mxu0 %v2143
        %v2145 = vsub.f32 %v741, %v741
        %v2146 = vand.u32 %v2145, 4294901760
        %v2147 = vsub.f32 %v2145, %v2146
        %v2148 = vand.u32 %v2147, 4294901760
        %2149 = vmatprep.subr.mxu0 %v2148
        %v2150 = vsub.f32 %v740, %v740
        %v2151 = vand.u32 %v2150, 4294901760
        %v2152 = vsub.f32 %v2150, %v2151
        %v2153 = vand.u32 %v2152, 4294901760
        %2154 = vmatpush1.msra.mxu0 %v2153
        %v2155 = vsub.f32 %v745, %v745
        %v2156 = vand.u32 %v2155, 4294901760
        %v2157 = vsub.f32 %v2155, %v2156
        %v2158 = vand.u32 %v2157, 4294901760
        %2159 = vmatprep.subr.mxu0 %v2158
        %v2160 = vsub.f32 %v744, %v744
        %v2161 = vand.u32 %v2160, 4294901760
        %v2162 = vsub.f32 %v2160, %v2161
        %v2163 = vand.u32 %v2162, 4294901760
        %2164 = vmatpush1.msra.mxu0 %v2163
        %v2165 = vsub.f32 %v749, %v749
        %v2166 = vand.u32 %v2165, 4294901760
        %v2167 = vsub.f32 %v2165, %v2166
        %v2168 = vand.u32 %v2167, 4294901760
        %2169 = vmatprep.subr.mxu0 %v2168
        %v2170 = vsub.f32 %v748, %v748
        %v2171 = vand.u32 %v2170, 4294901760
        %v2172 = vsub.f32 %v2170, %v2171
        %v2173 = vand.u32 %v2172, 4294901760
        %2174 = vmatpush1.msra.mxu0 %v2173
        %v2175 = vsub.f32 %v753, %v753
        %v2176 = vand.u32 %v2175, 4294901760
        %v2177 = vsub.f32 %v2175, %v2176
        %v2178 = vand.u32 %v2177, 4294901760
        %2179 = vmatprep.subr.mxu0 %v2178
        %v2180 = vsub.f32 %v752, %v752
        %v2181 = vand.u32 %v2180, 4294901760
        %v2182 = vsub.f32 %v2180, %v2181
        %v2183 = vand.u32 %v2182, 4294901760
        %2184 = vmatpush1.msra.mxu0 %v2183
        %v2185 = vsub.f32 %v757, %v757
        %v2186 = vand.u32 %v2185, 4294901760
        %v2187 = vsub.f32 %v2185, %v2186
        %v2188 = vand.u32 %v2187, 4294901760
        %2189 = vmatprep.subr.mxu0 %v2188
        %v2190 = vsub.f32 %v756, %v756
        %v2191 = vand.u32 %v2190, 4294901760
        %v2192 = vsub.f32 %v2190, %v2191
        %v2193 = vand.u32 %v2192, 4294901760
        %2194 = vmatpush1.msra.mxu0 %v2193
        %v2195 = vsub.f32 %v761, %v761
        %v2196 = vand.u32 %v2195, 4294901760
        %v2197 = vsub.f32 %v2195, %v2196
        %v2198 = vand.u32 %v2197, 4294901760
        %2199 = vmatprep.subr.mxu0 %v2198
        %v2200 = vsub.f32 %v760, %v760
        %v2201 = vand.u32 %v2200, 4294901760
        %v2202 = vsub.f32 %v2200, %v2201
        %v2203 = vand.u32 %v2202, 4294901760
        %2204 = vmatpush1.msra.mxu0 %v2203
        %v2205 = vsub.f32 %v765, %v765
        %v2206 = vand.u32 %v2205, 4294901760
        %v2207 = vsub.f32 %v2205, %v2206
        %v2208 = vand.u32 %v2207, 4294901760
        %2209 = vmatprep.subr.mxu0 %v2208
        %v2210 = vsub.f32 %v764, %v764
        %v2211 = vand.u32 %v2210, 4294901760
        %v2212 = vsub.f32 %v2210, %v2211
        %v2213 = vand.u32 %v2212, 4294901760
        %2214 = vmatpush1.msra.mxu0 %v2213
        %v2215 = vsub.f32 %v769, %v769
        %v2216 = vand.u32 %v2215, 4294901760
        %v2217 = vsub.f32 %v2215, %v2216
        %v2218 = vand.u32 %v2217, 4294901760
        %2219 = vmatprep.subr.mxu0 %v2218
        %v2220 = vsub.f32 %v768, %v768
        %v2221 = vand.u32 %v2220, 4294901760
        %v2222 = vsub.f32 %v2220, %v2221
        %v2223 = vand.u32 %v2222, 4294901760
        %2224 = vmatpush1.msra.mxu0 %v2223
        %v2225 = vsub.f32 %v773, %v773
        %v2226 = vand.u32 %v2225, 4294901760
        %v2227 = vsub.f32 %v2225, %v2226
        %v2228 = vand.u32 %v2227, 4294901760
        %2229 = vmatprep.subr.mxu0 %v2228
        %v2230 = vsub.f32 %v772, %v772
        %v2231 = vand.u32 %v2230, 4294901760
        %v2232 = vsub.f32 %v2230, %v2231
        %v2233 = vand.u32 %v2232, 4294901760
        %2234 = vmatpush1.msra.mxu0 %v2233
        %v2235 = vsub.f32 %v777, %v777
        %v2236 = vand.u32 %v2235, 4294901760
        %v2237 = vsub.f32 %v2235, %v2236
        %v2238 = vand.u32 %v2237, 4294901760
        %2239 = vmatprep.subr.mxu0 %v2238
        %v2240 = vsub.f32 %v776, %v776
        %v2241 = vand.u32 %v2240, 4294901760
        %v2242 = vsub.f32 %v2240, %v2241
        %v2243 = vand.u32 %v2242, 4294901760
        %2244 = vmatpush1.msra.mxu0 %v2243
        %v2245 = vsub.f32 %v781, %v781
        %v2246 = vand.u32 %v2245, 4294901760
        %v2247 = vsub.f32 %v2245, %v2246
        %v2248 = vand.u32 %v2247, 4294901760
        %2249 = vmatprep.subr.mxu0 %v2248
        %v2250 = vsub.f32 %v780, %v780
        %v2251 = vand.u32 %v2250, 4294901760
        %v2252 = vsub.f32 %v2250, %v2251
        %v2253 = vand.u32 %v2252, 4294901760
        %2254 = vmatpush1.msra.mxu0 %v2253
        %v2255 = vsub.f32 %v785, %v785
        %v2256 = vand.u32 %v2255, 4294901760
        %v2257 = vsub.f32 %v2255, %v2256
        %v2258 = vand.u32 %v2257, 4294901760
        %2259 = vmatprep.subr.mxu0 %v2258
        %v2260 = vsub.f32 %v784, %v784
        %v2261 = vand.u32 %v2260, 4294901760
        %v2262 = vsub.f32 %v2260, %v2261
        %v2263 = vand.u32 %v2262, 4294901760
        %2264 = vmatpush1.msra.mxu0 %v2263
        %v2265 = vsub.f32 %v789, %v789
        %v2266 = vand.u32 %v2265, 4294901760
        %v2267 = vsub.f32 %v2265, %v2266
        %v2268 = vand.u32 %v2267, 4294901760
        %2269 = vmatprep.subr.mxu0 %v2268
        %v2270 = vsub.f32 %v788, %v788
        %v2271 = vand.u32 %v2270, 4294901760
        %v2272 = vsub.f32 %v2270, %v2271
        %v2273 = vand.u32 %v2272, 4294901760
        %2274 = vmatpush1.msra.mxu0 %v2273
        %v2275 = vsub.f32 %v793, %v793
        %v2276 = vand.u32 %v2275, 4294901760
        %v2277 = vsub.f32 %v2275, %v2276
        %v2278 = vand.u32 %v2277, 4294901760
        %2279 = vmatprep.subr.mxu0 %v2278
        %v2280 = vsub.f32 %v792, %v792
        %v2281 = vand.u32 %v2280, 4294901760
        %v2282 = vsub.f32 %v2280, %v2281
        %v2283 = vand.u32 %v2282, 4294901760
        %2284 = vmatpush1.msra.mxu0 %v2283
        %v2285 = vsub.f32 %v797, %v797
        %v2286 = vand.u32 %v2285, 4294901760
        %v2287 = vsub.f32 %v2285, %v2286
        %v2288 = vand.u32 %v2287, 4294901760
        %2289 = vmatprep.subr.mxu0 %v2288
        %v2290 = vsub.f32 %v796, %v796
        %v2291 = vand.u32 %v2290, 4294901760
        %v2292 = vsub.f32 %v2290, %v2291
        %v2293 = vand.u32 %v2292, 4294901760
        %2294 = vmatpush1.msra.mxu0 %v2293
        %v2295 = vsub.f32 %v801, %v801
        %v2296 = vand.u32 %v2295, 4294901760
        %v2297 = vsub.f32 %v2295, %v2296
        %v2298 = vand.u32 %v2297, 4294901760
        %2299 = vmatprep.subr.mxu0 %v2298
        %v2300 = vsub.f32 %v800, %v800
        %v2301 = vand.u32 %v2300, 4294901760
        %v2302 = vsub.f32 %v2300, %v2301
        %v2303 = vand.u32 %v2302, 4294901760
        %2304 = vmatpush1.msra.mxu0 %v2303
        %v2305 = vsub.f32 %v805, %v805
        %v2306 = vand.u32 %v2305, 4294901760
        %v2307 = vsub.f32 %v2305, %v2306
        %v2308 = vand.u32 %v2307, 4294901760
        %2309 = vmatprep.subr.mxu0 %v2308
        %v2310 = vsub.f32 %v804, %v804
        %v2311 = vand.u32 %v2310, 4294901760
        %v2312 = vsub.f32 %v2310, %v2311
        %v2313 = vand.u32 %v2312, 4294901760
        %2314 = vmatpush1.msra.mxu0 %v2313
        %v2315 = vsub.f32 %v809, %v809
        %v2316 = vand.u32 %v2315, 4294901760
        %v2317 = vsub.f32 %v2315, %v2316
        %v2318 = vand.u32 %v2317, 4294901760
        %2319 = vmatprep.subr.mxu0 %v2318
        %v2320 = vsub.f32 %v808, %v808
        %v2321 = vand.u32 %v2320, 4294901760
        %v2322 = vsub.f32 %v2320, %v2321
        %v2323 = vand.u32 %v2322, 4294901760
        %2324 = vmatpush1.msra.mxu0 %v2323
        %v2325 = vsub.f32 %v813, %v813
        %v2326 = vand.u32 %v2325, 4294901760
        %v2327 = vsub.f32 %v2325, %v2326
        %v2328 = vand.u32 %v2327, 4294901760
        %2329 = vmatprep.subr.mxu0 %v2328
        %v2330 = vsub.f32 %v812, %v812
        %v2331 = vand.u32 %v2330, 4294901760
        %v2332 = vsub.f32 %v2330, %v2331
        %v2333 = vand.u32 %v2332, 4294901760
        %2334 = vmatpush1.msra.mxu0 %v2333
        %v2335 = vsub.f32 %v817, %v817
        %v2336 = vand.u32 %v2335, 4294901760
        %v2337 = vsub.f32 %v2335, %v2336
        %v2338 = vand.u32 %v2337, 4294901760
        %2339 = vmatprep.subr.mxu0 %v2338
        %v2340 = vsub.f32 %v816, %v816
        %v2341 = vand.u32 %v2340, 4294901760
        %v2342 = vsub.f32 %v2340, %v2341
        %v2343 = vand.u32 %v2342, 4294901760
        %2344 = vmatpush1.msra.mxu0 %v2343
        %v2345 = vsub.f32 %v821, %v821
        %v2346 = vand.u32 %v2345, 4294901760
        %v2347 = vsub.f32 %v2345, %v2346
        %v2348 = vand.u32 %v2347, 4294901760
        %2349 = vmatprep.subr.mxu0 %v2348
        %v2350 = vsub.f32 %v820, %v820
        %v2351 = vand.u32 %v2350, 4294901760
        %v2352 = vsub.f32 %v2350, %v2351
        %v2353 = vand.u32 %v2352, 4294901760
        %2354 = vmatpush1.msra.mxu0 %v2353
        %v2355 = vsub.f32 %v825, %v825
        %v2356 = vand.u32 %v2355, 4294901760
        %v2357 = vsub.f32 %v2355, %v2356
        %v2358 = vand.u32 %v2357, 4294901760
        %2359 = vmatprep.subr.mxu0 %v2358
        %v2360 = vsub.f32 %v824, %v824
        %v2361 = vand.u32 %v2360, 4294901760
        %v2362 = vsub.f32 %v2360, %v2361
        %v2363 = vand.u32 %v2362, 4294901760
        %2364 = vmatpush1.msra.mxu0 %v2363
        %v2365 = vsub.f32 %v829, %v829
        %v2366 = vand.u32 %v2365, 4294901760
        %v2367 = vsub.f32 %v2365, %v2366
        %v2368 = vand.u32 %v2367, 4294901760
        %2369 = vmatprep.subr.mxu0 %v2368
        %v2370 = vsub.f32 %v828, %v828
        %v2371 = vand.u32 %v2370, 4294901760
        %v2372 = vsub.f32 %v2370, %v2371
        %v2373 = vand.u32 %v2372, 4294901760
        %2374 = vmatpush1.msra.mxu0 %v2373
        %v2375 = vsub.f32 %v833, %v833
        %v2376 = vand.u32 %v2375, 4294901760
        %v2377 = vsub.f32 %v2375, %v2376
        %v2378 = vand.u32 %v2377, 4294901760
        %2379 = vmatprep.subr.mxu0 %v2378
        %v2380 = vsub.f32 %v832, %v832
        %v2381 = vand.u32 %v2380, 4294901760
        %v2382 = vsub.f32 %v2380, %v2381
        %v2383 = vand.u32 %v2382, 4294901760
        %2384 = vmatpush1.msra.mxu0 %v2383
        %v2385 = vsub.f32 %v837, %v837
        %v2386 = vand.u32 %v2385, 4294901760
        %v2387 = vsub.f32 %v2385, %v2386
        %v2388 = vand.u32 %v2387, 4294901760
        %2389 = vmatprep.subr.mxu0 %v2388
        %v2390 = vsub.f32 %v836, %v836
        %v2391 = vand.u32 %v2390, 4294901760
        %v2392 = vsub.f32 %v2390, %v2391
        %v2393 = vand.u32 %v2392, 4294901760
        %2394 = vmatpush1.msra.mxu0 %v2393
        %v2395 = vsub.f32 %v841, %v841
        %v2396 = vand.u32 %v2395, 4294901760
        %v2397 = vsub.f32 %v2395, %v2396
        %v2398 = vand.u32 %v2397, 4294901760
        %2399 = vmatprep.subr.mxu0 %v2398
        %v2400 = vsub.f32 %v840, %v840
        %v2401 = vand.u32 %v2400, 4294901760
        %v2402 = vsub.f32 %v2400, %v2401
        %v2403 = vand.u32 %v2402, 4294901760
        %2404 = vmatpush1.msra.mxu0 %v2403
        %v2405 = vand.u32 %v843, 4294901760
        %2406 = vmatprep.mubr.f32.mxu0 %v2405
        %v2407 = vand.u32 %v842, 4294901760
        %2408 = vmatmul.mubr.f32.gmra.mrb[0].mxu0 %v2407
        %v2409 = vpop.f32.mrb[0].mxu0
        %v2410 = vadd.f32 %v2033, %v2409
        %v2411 = vpop.f32.mrb[0].mxu0
        %v2412 = vadd.f32 %v2035, %v2411
        %v2413 = vand.u32 %v845, 4294901760
        %2414 = vmatprep.mubr.f32.mxu0 %v2413
        %v2415 = vand.u32 %v844, 4294901760
        %2416 = vmatmul.mubr.f32.gmra.mrb[0].mxu0 %v2415
        %v2417 = vpop.f32.mrb[0].mxu0
        %v2418 = vadd.f32 %v2049, %v2417
        %v2419 = vpop.f32.mrb[0].mxu0
        %v2420 = vadd.f32 %v2051, %v2419
        %v2421 = vand.u32 %v847, 4294901760
        %2422 = vmatprep.mubr.f32.mxu0 %v2421
        %v2423 = vand.u32 %v846, 4294901760
        %2424 = vmatmul.mubr.f32.gmra.mrb[0].mxu0 %v2423
        %v2425 = vpop.f32.mrb[0].mxu0
        %v2426 = vadd.f32 %v2065, %v2425
        %v2427 = vpop.f32.mrb[0].mxu0
        %v2428 = vadd.f32 %v2067, %v2427
        %v2429 = vand.u32 %v849, 4294901760
        %2430 = vmatprep.mubr.f32.mxu0 %v2429
        %v2431 = vand.u32 %v848, 4294901760
        %2432 = vmatmul.mubr.f32.gmra.mrb[0].mxu0 %v2431
        %v2433 = vpop.f32.mrb[0].mxu0
        %v2434 = vadd.f32 %v2081, %v2433
        %v2435 = vpop.f32.mrb[0].mxu0
        %v2436 = vadd.f32 %v2083, %v2435
        %2437 = vdwg.mxu0
        %v2438 = vsub.f32 %v717, %v717
        %2439 = vmatprep.subr.mxu0 %v2438
        %v2440 = vsub.f32 %v716, %v716
        %2441 = vmatpush1.msra.mxu0 %v2440
        %v2442 = vsub.f32 %v721, %v721
        %2443 = vmatprep.subr.mxu0 %v2442
        %v2444 = vsub.f32 %v720, %v720
        %2445 = vmatpush1.msra.mxu0 %v2444
        %v2446 = vsub.f32 %v725, %v725
        %2447 = vmatprep.subr.mxu0 %v2446
        %v2448 = vsub.f32 %v724, %v724
        %2449 = vmatpush1.msra.mxu0 %v2448
        %v2450 = vsub.f32 %v729, %v729
        %2451 = vmatprep.subr.mxu0 %v2450
        %v2452 = vsub.f32 %v728, %v728
        %2453 = vmatpush1.msra.mxu0 %v2452
        %v2454 = vsub.f32 %v733, %v733
        %2455 = vmatprep.subr.mxu0 %v2454
        %v2456 = vsub.f32 %v732, %v732
        %2457 = vmatpush1.msra.mxu0 %v2456
        %v2458 = vsub.f32 %v737, %v737
        %2459 = vmatprep.subr.mxu0 %v2458
        %v2460 = vsub.f32 %v736, %v736
        %2461 = vmatpush1.msra.mxu0 %v2460
        %v2462 = vsub.f32 %v741, %v741
        %2463 = vmatprep.subr.mxu0 %v2462
        %v2464 = vsub.f32 %v740, %v740
        %2465 = vmatpush1.msra.mxu0 %v2464
        %v2466 = vsub.f32 %v745, %v745
        %2467 = vmatprep.subr.mxu0 %v2466
        %v2468 = vsub.f32 %v744, %v744
        %2469 = vmatpush1.msra.mxu0 %v2468
        %v2470 = vsub.f32 %v749, %v749
        %2471 = vmatprep.subr.mxu0 %v2470
        %v2472 = vsub.f32 %v748, %v748
        %2473 = vmatpush1.msra.mxu0 %v2472
        %v2474 = vsub.f32 %v753, %v753
        %2475 = vmatprep.subr.mxu0 %v2474
        %v2476 = vsub.f32 %v752, %v752
        %2477 = vmatpush1.msra.mxu0 %v2476
        %v2478 = vsub.f32 %v757, %v757
        %2479 = vmatprep.subr.mxu0 %v2478
        %v2480 = vsub.f32 %v756, %v756
        %2481 = vmatpush1.msra.mxu0 %v2480
        %v2482 = vsub.f32 %v761, %v761
        %2483 = vmatprep.subr.mxu0 %v2482
        %v2484 = vsub.f32 %v760, %v760
        %2485 = vmatpush1.msra.mxu0 %v2484
        %v2486 = vsub.f32 %v765, %v765
        %2487 = vmatprep.subr.mxu0 %v2486
        %v2488 = vsub.f32 %v764, %v764
        %2489 = vmatpush1.msra.mxu0 %v2488
        %v2490 = vsub.f32 %v769, %v769
        %2491 = vmatprep.subr.mxu0 %v2490
        %v2492 = vsub.f32 %v768, %v768
        %2493 = vmatpush1.msra.mxu0 %v2492
        %v2494 = vsub.f32 %v773, %v773
        %2495 = vmatprep.subr.mxu0 %v2494
        %v2496 = vsub.f32 %v772, %v772
        %2497 = vmatpush1.msra.mxu0 %v2496
        %v2498 = vsub.f32 %v777, %v777
        %2499 = vmatprep.subr.mxu0 %v2498
        %v2500 = vsub.f32 %v776, %v776
        %2501 = vmatpush1.msra.mxu0 %v2500
        %v2502 = vsub.f32 %v781, %v781
        %2503 = vmatprep.subr.mxu0 %v2502
        %v2504 = vsub.f32 %v780, %v780
        %2505 = vmatpush1.msra.mxu0 %v2504
        %v2506 = vsub.f32 %v785, %v785
        %2507 = vmatprep.subr.mxu0 %v2506
        %v2508 = vsub.f32 %v784, %v784
        %2509 = vmatpush1.msra.mxu0 %v2508
        %v2510 = vsub.f32 %v789, %v789
        %2511 = vmatprep.subr.mxu0 %v2510
        %v2512 = vsub.f32 %v788, %v788
        %2513 = vmatpush1.msra.mxu0 %v2512
        %v2514 = vsub.f32 %v793, %v793
        %2515 = vmatprep.subr.mxu0 %v2514
        %v2516 = vsub.f32 %v792, %v792
        %2517 = vmatpush1.msra.mxu0 %v2516
        %v2518 = vsub.f32 %v797, %v797
        %2519 = vmatprep.subr.mxu0 %v2518
        %v2520 = vsub.f32 %v796, %v796
        %2521 = vmatpush1.msra.mxu0 %v2520
        %v2522 = vsub.f32 %v801, %v801
        %2523 = vmatprep.subr.mxu0 %v2522
        %v2524 = vsub.f32 %v800, %v800
        %2525 = vmatpush1.msra.mxu0 %v2524
        %v2526 = vsub.f32 %v805, %v805
        %2527 = vmatprep.subr.mxu0 %v2526
        %v2528 = vsub.f32 %v804, %v804
        %2529 = vmatpush1.msra.mxu0 %v2528
        %v2530 = vsub.f32 %v809, %v809
        %2531 = vmatprep.subr.mxu0 %v2530
        %v2532 = vsub.f32 %v808, %v808
        %2533 = vmatpush1.msra.mxu0 %v2532
        %v2534 = vsub.f32 %v813, %v813
        %2535 = vmatprep.subr.mxu0 %v2534
        %v2536 = vsub.f32 %v812, %v812
        %2537 = vmatpush1.msra.mxu0 %v2536
        %v2538 = vsub.f32 %v817, %v817
        %2539 = vmatprep.subr.mxu0 %v2538
        %v2540 = vsub.f32 %v816, %v816
        %2541 = vmatpush1.msra.mxu0 %v2540
        %v2542 = vsub.f32 %v821, %v821
        %2543 = vmatprep.subr.mxu0 %v2542
        %v2544 = vsub.f32 %v820, %v820
        %2545 = vmatpush1.msra.mxu0 %v2544
        %v2546 = vsub.f32 %v825, %v825
        %2547 = vmatprep.subr.mxu0 %v2546
        %v2548 = vsub.f32 %v824, %v824
        %2549 = vmatpush1.msra.mxu0 %v2548
        %v2550 = vsub.f32 %v829, %v829
        %2551 = vmatprep.subr.mxu0 %v2550
        %v2552 = vsub.f32 %v828, %v828
        %2553 = vmatpush1.msra.mxu0 %v2552
        %v2554 = vsub.f32 %v833, %v833
        %2555 = vmatprep.subr.mxu0 %v2554
        %v2556 = vsub.f32 %v832, %v832
        %2557 = vmatpush1.msra.mxu0 %v2556
        %v2558 = vsub.f32 %v837, %v837
        %2559 = vmatprep.subr.mxu0 %v2558
        %v2560 = vsub.f32 %v836, %v836
        %2561 = vmatpush1.msra.mxu0 %v2560
        %v2562 = vsub.f32 %v841, %v841
        %2563 = vmatprep.subr.mxu0 %v2562
        %v2564 = vsub.f32 %v840, %v840
        %2565 = vmatpush1.msra.mxu0 %v2564
        %v2566 = vand.u32 %v843, 4294901760
        %v2567 = vsub.f32 %v843, %v2566
        %2568 = vmatprep.mubr.f32.mxu0 %v2567
        %v2569 = vand.u32 %v842, 4294901760
        %v2570 = vsub.f32 %v842, %v2569
        %2571 = vmatmul.mubr.f32.gmra.mrb[0].mxu0 %v2570
        %v2572 = vpop.f32.mrb[0].mxu0
        %v2573 = vadd.f32 %v2410, %v2572
        %v2574 = vpop.f32.mrb[0].mxu0
        %v2575 = vadd.f32 %v2412, %v2574
        %v2576 = vand.u32 %v845, 4294901760
        %v2577 = vsub.f32 %v845, %v2576
        %2578 = vmatprep.mubr.f32.mxu0 %v2577
        %v2579 = vand.u32 %v844, 4294901760
        %v2580 = vsub.f32 %v844, %v2579
        %2581 = vmatmul.mubr.f32.gmra.mrb[0].mxu0 %v2580
        %v2582 = vpop.f32.mrb[0].mxu0
        %v2583 = vadd.f32 %v2418, %v2582
        %v2584 = vpop.f32.mrb[0].mxu0
        %v2585 = vadd.f32 %v2420, %v2584
        %v2586 = vand.u32 %v847, 4294901760
        %v2587 = vsub.f32 %v847, %v2586
        %2588 = vmatprep.mubr.f32.mxu0 %v2587
        %v2589 = vand.u32 %v846, 4294901760
        %v2590 = vsub.f32 %v846, %v2589
        %2591 = vmatmul.mubr.f32.gmra.mrb[0].mxu0 %v2590
        %v2592 = vpop.f32.mrb[0].mxu0
        %v2593 = vadd.f32 %v2426, %v2592
        %v2594 = vpop.f32.mrb[0].mxu0
        %v2595 = vadd.f32 %v2428, %v2594
        %v2596 = vand.u32 %v849, 4294901760
        %v2597 = vsub.f32 %v849, %v2596
        %2598 = vmatprep.mubr.f32.mxu0 %v2597
        %v2599 = vand.u32 %v848, 4294901760
        %v2600 = vsub.f32 %v848, %v2599
        %2601 = vmatmul.mubr.f32.gmra.mrb[0].mxu0 %v2600
        %v2602 = vpop.f32.mrb[0].mxu0
        %v2603 = vadd.f32 %v2434, %v2602
        %v2604 = vpop.f32.mrb[0].mxu0
        %v2605 = vadd.f32 %v2436, %v2604
        %2606 = vdwg.mxu0
        %2607 = vmatprep.subr.mxu0 %v717
        %2608 = vmatpush1.msra.mxu0 %v716
        %2609 = vmatprep.subr.mxu0 %v721
        %2610 = vmatpush1.msra.mxu0 %v720
        %2611 = vmatprep.subr.mxu0 %v725
        %2612 = vmatpush1.msra.mxu0 %v724
        %2613 = vmatprep.subr.mxu0 %v729
        %2614 = vmatpush1.msra.mxu0 %v728
        %2615 = vmatprep.subr.mxu0 %v733
        %2616 = vmatpush1.msra.mxu0 %v732
        %2617 = vmatprep.subr.mxu0 %v737
        %2618 = vmatpush1.msra.mxu0 %v736
        %2619 = vmatprep.subr.mxu0 %v741
        %2620 = vmatpush1.msra.mxu0 %v740
        %2621 = vmatprep.subr.mxu0 %v745
        %2622 = vmatpush1.msra.mxu0 %v744
        %2623 = vmatprep.subr.mxu0 %v749
        %2624 = vmatpush1.msra.mxu0 %v748
        %2625 = vmatprep.subr.mxu0 %v753
        %2626 = vmatpush1.msra.mxu0 %v752
        %2627 = vmatprep.subr.mxu0 %v757
        %2628 = vmatpush1.msra.mxu0 %v756
        %2629 = vmatprep.subr.mxu0 %v761
        %2630 = vmatpush1.msra.mxu0 %v760
        %2631 = vmatprep.subr.mxu0 %v765
        %2632 = vmatpush1.msra.mxu0 %v764
        %2633 = vmatprep.subr.mxu0 %v769
        %2634 = vmatpush1.msra.mxu0 %v768
        %2635 = vmatprep.subr.mxu0 %v773
        %2636 = vmatpush1.msra.mxu0 %v772
        %2637 = vmatprep.subr.mxu0 %v777
        %2638 = vmatpush1.msra.mxu0 %v776
        %2639 = vmatprep.subr.mxu0 %v781
        %2640 = vmatpush1.msra.mxu0 %v780
        %2641 = vmatprep.subr.mxu0 %v785
        %2642 = vmatpush1.msra.mxu0 %v784
        %2643 = vmatprep.subr.mxu0 %v789
        %2644 = vmatpush1.msra.mxu0 %v788
        %2645 = vmatprep.subr.mxu0 %v793
        %2646 = vmatpush1.msra.mxu0 %v792
        %2647 = vmatprep.subr.mxu0 %v797
        %2648 = vmatpush1.msra.mxu0 %v796
        %2649 = vmatprep.subr.mxu0 %v801
        %2650 = vmatpush1.msra.mxu0 %v800
        %2651 = vmatprep.subr.mxu0 %v805
        %2652 = vmatpush1.msra.mxu0 %v804
        %2653 = vmatprep.subr.mxu0 %v809
        %2654 = vmatpush1.msra.mxu0 %v808
        %2655 = vmatprep.subr.mxu0 %v813
        %2656 = vmatpush1.msra.mxu0 %v812
        %2657 = vmatprep.subr.mxu0 %v817
        %2658 = vmatpush1.msra.mxu0 %v816
        %2659 = vmatprep.subr.mxu0 %v821
        %2660 = vmatpush1.msra.mxu0 %v820
        %2661 = vmatprep.subr.mxu0 %v825
        %2662 = vmatpush1.msra.mxu0 %v824
        %2663 = vmatprep.subr.mxu0 %v829
        %2664 = vmatpush1.msra.mxu0 %v828
        %2665 = vmatprep.subr.mxu0 %v833
        %2666 = vmatpush1.msra.mxu0 %v832
        %2667 = vmatprep.subr.mxu0 %v837
        %2668 = vmatpush1.msra.mxu0 %v836
        %2669 = vmatprep.subr.mxu0 %v841
        %2670 = vmatpush1.msra.mxu0 %v840
        %v2671 = vand.u32 %v843, 4294901760
        %v2672 = vsub.f32 %v843, %v2671
        %v2673 = vand.u32 %v2672, 4294901760
        %2674 = vmatprep.mubr.f32.mxu0 %v2673
        %v2675 = vand.u32 %v842, 4294901760
        %v2676 = vsub.f32 %v842, %v2675
        %v2677 = vand.u32 %v2676, 4294901760
        %2678 = vmatmul.mubr.f32.gmra.mrb[0].mxu0 %v2677
        %v2679 = vpop.f32.mrb[0].mxu0
        %v2680 = vadd.f32 %v2573, %v2679
        %v2681 = vpop.f32.mrb[0].mxu0
        %v2682 = vadd.f32 %v2575, %v2681
        %v2683 = vand.u32 %v845, 4294901760
        %v2684 = vsub.f32 %v845, %v2683
        %v2685 = vand.u32 %v2684, 4294901760
        %2686 = vmatprep.mubr.f32.mxu0 %v2685
        %v2687 = vand.u32 %v844, 4294901760
        %v2688 = vsub.f32 %v844, %v2687
        %v2689 = vand.u32 %v2688, 4294901760
        %2690 = vmatmul.mubr.f32.gmra.mrb[0].mxu0 %v2689
        %v2691 = vpop.f32.mrb[0].mxu0
        %v2692 = vadd.f32 %v2583, %v2691
        %v2693 = vpop.f32.mrb[0].mxu0
        %v2694 = vadd.f32 %v2585, %v2693
        %v2695 = vand.u32 %v847, 4294901760
        %v2696 = vsub.f32 %v847, %v2695
        %v2697 = vand.u32 %v2696, 4294901760
        %2698 = vmatprep.mubr.f32.mxu0 %v2697
        %v2699 = vand.u32 %v846, 4294901760
        %v2700 = vsub.f32 %v846, %v2699
        %v2701 = vand.u32 %v2700, 4294901760
        %2702 = vmatmul.mubr.f32.gmra.mrb[0].mxu0 %v2701
        %v2703 = vpop.f32.mrb[0].mxu0
        %v2704 = vadd.f32 %v2593, %v2703
        %v2705 = vpop.f32.mrb[0].mxu0
        %v2706 = vadd.f32 %v2595, %v2705
        %v2707 = vand.u32 %v849, 4294901760
        %v2708 = vsub.f32 %v849, %v2707
        %v2709 = vand.u32 %v2708, 4294901760
        %2710 = vmatprep.mubr.f32.mxu0 %v2709
        %v2711 = vand.u32 %v848, 4294901760
        %v2712 = vsub.f32 %v848, %v2711
        %v2713 = vand.u32 %v2712, 4294901760
        %2714 = vmatmul.mubr.f32.gmra.mrb[0].mxu0 %v2713
        %v2715 = vpop.f32.mrb[0].mxu0
        %v2716 = vadd.f32 %v2603, %v2715
        %v2717 = vpop.f32.mrb[0].mxu0
        %v2718 = vadd.f32 %v2605, %v2717
        %2719 = vdwg.mxu0
        %v2720 = vsub.f32 %v717, %v717
        %v2721 = vand.u32 %v2720, 4294901760
        %2722 = vmatprep.subr.mxu0 %v2721
        %v2723 = vsub.f32 %v716, %v716
        %v2724 = vand.u32 %v2723, 4294901760
        %2725 = vmatpush1.msra.mxu0 %v2724
        %v2726 = vsub.f32 %v721, %v721
        %v2727 = vand.u32 %v2726, 4294901760
        %2728 = vmatprep.subr.mxu0 %v2727
        %v2729 = vsub.f32 %v720, %v720
        %v2730 = vand.u32 %v2729, 4294901760
        %2731 = vmatpush1.msra.mxu0 %v2730
        %v2732 = vsub.f32 %v725, %v725
        %v2733 = vand.u32 %v2732, 4294901760
        %2734 = vmatprep.subr.mxu0 %v2733
        %v2735 = vsub.f32 %v724, %v724
        %v2736 = vand.u32 %v2735, 4294901760
        %2737 = vmatpush1.msra.mxu0 %v2736
        %v2738 = vsub.f32 %v729, %v729
        %v2739 = vand.u32 %v2738, 4294901760
        %2740 = vmatprep.subr.mxu0 %v2739
        %v2741 = vsub.f32 %v728, %v728
        %v2742 = vand.u32 %v2741, 4294901760
        %2743 = vmatpush1.msra.mxu0 %v2742
        %v2744 = vsub.f32 %v733, %v733
        %v2745 = vand.u32 %v2744, 4294901760
        %2746 = vmatprep.subr.mxu0 %v2745
        %v2747 = vsub.f32 %v732, %v732
        %v2748 = vand.u32 %v2747, 4294901760
        %2749 = vmatpush1.msra.mxu0 %v2748
        %v2750 = vsub.f32 %v737, %v737
        %v2751 = vand.u32 %v2750, 4294901760
        %2752 = vmatprep.subr.mxu0 %v2751
        %v2753 = vsub.f32 %v736, %v736
        %v2754 = vand.u32 %v2753, 4294901760
        %2755 = vmatpush1.msra.mxu0 %v2754
        %v2756 = vsub.f32 %v741, %v741
        %v2757 = vand.u32 %v2756, 4294901760
        %2758 = vmatprep.subr.mxu0 %v2757
        %v2759 = vsub.f32 %v740, %v740
        %v2760 = vand.u32 %v2759, 4294901760
        %2761 = vmatpush1.msra.mxu0 %v2760
        %v2762 = vsub.f32 %v745, %v745
        %v2763 = vand.u32 %v2762, 4294901760
        %2764 = vmatprep.subr.mxu0 %v2763
        %v2765 = vsub.f32 %v744, %v744
        %v2766 = vand.u32 %v2765, 4294901760
        %2767 = vmatpush1.msra.mxu0 %v2766
        %v2768 = vsub.f32 %v749, %v749
        %v2769 = vand.u32 %v2768, 4294901760
        %2770 = vmatprep.subr.mxu0 %v2769
        %v2771 = vsub.f32 %v748, %v748
        %v2772 = vand.u32 %v2771, 4294901760
        %2773 = vmatpush1.msra.mxu0 %v2772
        %v2774 = vsub.f32 %v753, %v753
        %v2775 = vand.u32 %v2774, 4294901760
        %2776 = vmatprep.subr.mxu0 %v2775
        %v2777 = vsub.f32 %v752, %v752
        %v2778 = vand.u32 %v2777, 4294901760
        %2779 = vmatpush1.msra.mxu0 %v2778
        %v2780 = vsub.f32 %v757, %v757
        %v2781 = vand.u32 %v2780, 4294901760
        %2782 = vmatprep.subr.mxu0 %v2781
        %v2783 = vsub.f32 %v756, %v756
        %v2784 = vand.u32 %v2783, 4294901760
        %2785 = vmatpush1.msra.mxu0 %v2784
        %v2786 = vsub.f32 %v761, %v761
        %v2787 = vand.u32 %v2786, 4294901760
        %2788 = vmatprep.subr.mxu0 %v2787
        %v2789 = vsub.f32 %v760, %v760
        %v2790 = vand.u32 %v2789, 4294901760
        %2791 = vmatpush1.msra.mxu0 %v2790
        %v2792 = vsub.f32 %v765, %v765
        %v2793 = vand.u32 %v2792, 4294901760
        %2794 = vmatprep.subr.mxu0 %v2793
        %v2795 = vsub.f32 %v764, %v764
        %v2796 = vand.u32 %v2795, 4294901760
        %2797 = vmatpush1.msra.mxu0 %v2796
        %v2798 = vsub.f32 %v769, %v769
        %v2799 = vand.u32 %v2798, 4294901760
        %2800 = vmatprep.subr.mxu0 %v2799
        %v2801 = vsub.f32 %v768, %v768
        %v2802 = vand.u32 %v2801, 4294901760
        %2803 = vmatpush1.msra.mxu0 %v2802
        %v2804 = vsub.f32 %v773, %v773
        %v2805 = vand.u32 %v2804, 4294901760
        %2806 = vmatprep.subr.mxu0 %v2805
        %v2807 = vsub.f32 %v772, %v772
        %v2808 = vand.u32 %v2807, 4294901760
        %2809 = vmatpush1.msra.mxu0 %v2808
        %v2810 = vsub.f32 %v777, %v777
        %v2811 = vand.u32 %v2810, 4294901760
        %2812 = vmatprep.subr.mxu0 %v2811
        %v2813 = vsub.f32 %v776, %v776
        %v2814 = vand.u32 %v2813, 4294901760
        %2815 = vmatpush1.msra.mxu0 %v2814
        %v2816 = vsub.f32 %v781, %v781
        %v2817 = vand.u32 %v2816, 4294901760
        %2818 = vmatprep.subr.mxu0 %v2817
        %v2819 = vsub.f32 %v780, %v780
        %v2820 = vand.u32 %v2819, 4294901760
        %2821 = vmatpush1.msra.mxu0 %v2820
        %v2822 = vsub.f32 %v785, %v785
        %v2823 = vand.u32 %v2822, 4294901760
        %2824 = vmatprep.subr.mxu0 %v2823
        %v2825 = vsub.f32 %v784, %v784
        %v2826 = vand.u32 %v2825, 4294901760
        %2827 = vmatpush1.msra.mxu0 %v2826
        %v2828 = vsub.f32 %v789, %v789
        %v2829 = vand.u32 %v2828, 4294901760
        %2830 = vmatprep.subr.mxu0 %v2829
        %v2831 = vsub.f32 %v788, %v788
        %v2832 = vand.u32 %v2831, 4294901760
        %2833 = vmatpush1.msra.mxu0 %v2832
        %v2834 = vsub.f32 %v793, %v793
        %v2835 = vand.u32 %v2834, 4294901760
        %2836 = vmatprep.subr.mxu0 %v2835
        %v2837 = vsub.f32 %v792, %v792
        %v2838 = vand.u32 %v2837, 4294901760
        %2839 = vmatpush1.msra.mxu0 %v2838
        %v2840 = vsub.f32 %v797, %v797
        %v2841 = vand.u32 %v2840, 4294901760
        %2842 = vmatprep.subr.mxu0 %v2841
        %v2843 = vsub.f32 %v796, %v796
        %v2844 = vand.u32 %v2843, 4294901760
        %2845 = vmatpush1.msra.mxu0 %v2844
        %v2846 = vsub.f32 %v801, %v801
        %v2847 = vand.u32 %v2846, 4294901760
        %2848 = vmatprep.subr.mxu0 %v2847
        %v2849 = vsub.f32 %v800, %v800
        %v2850 = vand.u32 %v2849, 4294901760
        %2851 = vmatpush1.msra.mxu0 %v2850
        %v2852 = vsub.f32 %v805, %v805
        %v2853 = vand.u32 %v2852, 4294901760
        %2854 = vmatprep.subr.mxu0 %v2853
        %v2855 = vsub.f32 %v804, %v804
        %v2856 = vand.u32 %v2855, 4294901760
        %2857 = vmatpush1.msra.mxu0 %v2856
        %v2858 = vsub.f32 %v809, %v809
        %v2859 = vand.u32 %v2858, 4294901760
        %2860 = vmatprep.subr.mxu0 %v2859
        %v2861 = vsub.f32 %v808, %v808
        %v2862 = vand.u32 %v2861, 4294901760
        %2863 = vmatpush1.msra.mxu0 %v2862
        %v2864 = vsub.f32 %v813, %v813
        %v2865 = vand.u32 %v2864, 4294901760
        %2866 = vmatprep.subr.mxu0 %v2865
        %v2867 = vsub.f32 %v812, %v812
        %v2868 = vand.u32 %v2867, 4294901760
        %2869 = vmatpush1.msra.mxu0 %v2868
        %v2870 = vsub.f32 %v817, %v817
        %v2871 = vand.u32 %v2870, 4294901760
        %2872 = vmatprep.subr.mxu0 %v2871
        %v2873 = vsub.f32 %v816, %v816
        %v2874 = vand.u32 %v2873, 4294901760
        %2875 = vmatpush1.msra.mxu0 %v2874
        %v2876 = vsub.f32 %v821, %v821
        %v2877 = vand.u32 %v2876, 4294901760
        %2878 = vmatprep.subr.mxu0 %v2877
        %v2879 = vsub.f32 %v820, %v820
        %v2880 = vand.u32 %v2879, 4294901760
        %2881 = vmatpush1.msra.mxu0 %v2880
        %v2882 = vsub.f32 %v825, %v825
        %v2883 = vand.u32 %v2882, 4294901760
        %2884 = vmatprep.subr.mxu0 %v2883
        %v2885 = vsub.f32 %v824, %v824
        %v2886 = vand.u32 %v2885, 4294901760
        %2887 = vmatpush1.msra.mxu0 %v2886
        %v2888 = vsub.f32 %v829, %v829
        %v2889 = vand.u32 %v2888, 4294901760
        %2890 = vmatprep.subr.mxu0 %v2889
        %v2891 = vsub.f32 %v828, %v828
        %v2892 = vand.u32 %v2891, 4294901760
        %2893 = vmatpush1.msra.mxu0 %v2892
        %v2894 = vsub.f32 %v833, %v833
        %v2895 = vand.u32 %v2894, 4294901760
        %2896 = vmatprep.subr.mxu0 %v2895
        %v2897 = vsub.f32 %v832, %v832
        %v2898 = vand.u32 %v2897, 4294901760
        %2899 = vmatpush1.msra.mxu0 %v2898
        %v2900 = vsub.f32 %v837, %v837
        %v2901 = vand.u32 %v2900, 4294901760
        %2902 = vmatprep.subr.mxu0 %v2901
        %v2903 = vsub.f32 %v836, %v836
        %v2904 = vand.u32 %v2903, 4294901760
        %2905 = vmatpush1.msra.mxu0 %v2904
        %v2906 = vsub.f32 %v841, %v841
        %v2907 = vand.u32 %v2906, 4294901760
        %2908 = vmatprep.subr.mxu0 %v2907
        %v2909 = vsub.f32 %v840, %v840
        %v2910 = vand.u32 %v2909, 4294901760
        %2911 = vmatpush1.msra.mxu0 %v2910
        %v2912 = vand.u32 %v843, 4294901760
        %2913 = vmatprep.mubr.f32.mxu0 %v2912
        %v2914 = vand.u32 %v842, 4294901760
        %2915 = vmatmul.mubr.f32.gmra.mrb[0].mxu0 %v2914
        %v2916 = vpop.f32.mrb[0].mxu0
        %v2917 = vadd.f32 %v2680, %v2916
        %v2918 = vpop.f32.mrb[0].mxu0
        %v2919 = vadd.f32 %v2682, %v2918
        %v2920 = vand.u32 %v845, 4294901760
        %2921 = vmatprep.mubr.f32.mxu0 %v2920
        %v2922 = vand.u32 %v844, 4294901760
        %2923 = vmatmul.mubr.f32.gmra.mrb[0].mxu0 %v2922
        %v2924 = vpop.f32.mrb[0].mxu0
        %v2925 = vadd.f32 %v2692, %v2924
        %v2926 = vpop.f32.mrb[0].mxu0
        %v2927 = vadd.f32 %v2694, %v2926
        %v2928 = vand.u32 %v847, 4294901760
        %2929 = vmatprep.mubr.f32.mxu0 %v2928
        %v2930 = vand.u32 %v846, 4294901760
        %2931 = vmatmul.mubr.f32.gmra.mrb[0].mxu0 %v2930
        %v2932 = vpop.f32.mrb[0].mxu0
        %v2933 = vadd.f32 %v2704, %v2932
        %v2934 = vpop.f32.mrb[0].mxu0
        %v2935 = vadd.f32 %v2706, %v2934
        %v2936 = vand.u32 %v849, 4294901760
        %2937 = vmatprep.mubr.f32.mxu0 %v2936
        %v2938 = vand.u32 %v848, 4294901760
        %2939 = vmatmul.mubr.f32.gmra.mrb[0].mxu0 %v2938
        %v2940 = vpop.f32.mrb[0].mxu0
        %v2941 = vadd.f32 %v2716, %v2940
        %v2942 = vpop.f32.mrb[0].mxu0
        %v2943 = vadd.f32 %v2718, %v2942
        %2944 = vdwg.mxu0
        %2945 = vmatprep.subr.mxu0 %v717
        %2946 = vmatpush1.msra.mxu0 %v716
        %2947 = vmatprep.subr.mxu0 %v721
        %2948 = vmatpush1.msra.mxu0 %v720
        %2949 = vmatprep.subr.mxu0 %v725
        %2950 = vmatpush1.msra.mxu0 %v724
        %2951 = vmatprep.subr.mxu0 %v729
        %2952 = vmatpush1.msra.mxu0 %v728
        %2953 = vmatprep.subr.mxu0 %v733
        %2954 = vmatpush1.msra.mxu0 %v732
        %2955 = vmatprep.subr.mxu0 %v737
        %2956 = vmatpush1.msra.mxu0 %v736
        %2957 = vmatprep.subr.mxu0 %v741
        %2958 = vmatpush1.msra.mxu0 %v740
        %2959 = vmatprep.subr.mxu0 %v745
        %2960 = vmatpush1.msra.mxu0 %v744
        %2961 = vmatprep.subr.mxu0 %v749
        %2962 = vmatpush1.msra.mxu0 %v748
        %2963 = vmatprep.subr.mxu0 %v753
        %2964 = vmatpush1.msra.mxu0 %v752
        %2965 = vmatprep.subr.mxu0 %v757
        %2966 = vmatpush1.msra.mxu0 %v756
        %2967 = vmatprep.subr.mxu0 %v761
        %2968 = vmatpush1.msra.mxu0 %v760
        %2969 = vmatprep.subr.mxu0 %v765
        %2970 = vmatpush1.msra.mxu0 %v764
        %2971 = vmatprep.subr.mxu0 %v769
        %2972 = vmatpush1.msra.mxu0 %v768
        %2973 = vmatprep.subr.mxu0 %v773
        %2974 = vmatpush1.msra.mxu0 %v772
        %2975 = vmatprep.subr.mxu0 %v777
        %2976 = vmatpush1.msra.mxu0 %v776
        %2977 = vmatprep.subr.mxu0 %v781
        %2978 = vmatpush1.msra.mxu0 %v780
        %2979 = vmatprep.subr.mxu0 %v785
        %2980 = vmatpush1.msra.mxu0 %v784
        %2981 = vmatprep.subr.mxu0 %v789
        %2982 = vmatpush1.msra.mxu0 %v788
        %2983 = vmatprep.subr.mxu0 %v793
        %2984 = vmatpush1.msra.mxu0 %v792
        %2985 = vmatprep.subr.mxu0 %v797
        %2986 = vmatpush1.msra.mxu0 %v796
        %2987 = vmatprep.subr.mxu0 %v801
        %2988 = vmatpush1.msra.mxu0 %v800
        %2989 = vmatprep.subr.mxu0 %v805
        %2990 = vmatpush1.msra.mxu0 %v804
        %2991 = vmatprep.subr.mxu0 %v809
        %2992 = vmatpush1.msra.mxu0 %v808
        %2993 = vmatprep.subr.mxu0 %v813
        %2994 = vmatpush1.msra.mxu0 %v812
        %2995 = vmatprep.subr.mxu0 %v817
        %2996 = vmatpush1.msra.mxu0 %v816
        %2997 = vmatprep.subr.mxu0 %v821
        %2998 = vmatpush1.msra.mxu0 %v820
        %2999 = vmatprep.subr.mxu0 %v825
        %3000 = vmatpush1.msra.mxu0 %v824
        %3001 = vmatprep.subr.mxu0 %v829
        %3002 = vmatpush1.msra.mxu0 %v828
        %3003 = vmatprep.subr.mxu0 %v833
        %3004 = vmatpush1.msra.mxu0 %v832
        %3005 = vmatprep.subr.mxu0 %v837
        %3006 = vmatpush1.msra.mxu0 %v836
        %3007 = vmatprep.subr.mxu0 %v841
        %3008 = vmatpush1.msra.mxu0 %v840
        %v3009 = vand.u32 %v843, 4294901760
        %3010 = vmatprep.mubr.f32.mxu0 %v3009
        %v3011 = vand.u32 %v842, 4294901760
        %3012 = vmatmul.mubr.f32.gmra.mrb[0].mxu0 %v3011
        %v3013 = vpop.f32.mrb[0].mxu0
        %v3014 = vadd.f32 %v2917, %v3013
        %v3015 = vpop.f32.mrb[0].mxu0
        %v3016 = vadd.f32 %v2919, %v3015
        %v3017 = vand.u32 %v845, 4294901760
        %3018 = vmatprep.mubr.f32.mxu0 %v3017
        %v3019 = vand.u32 %v844, 4294901760
        %3020 = vmatmul.mubr.f32.gmra.mrb[0].mxu0 %v3019
        %v3021 = vpop.f32.mrb[0].mxu0
        %v3022 = vadd.f32 %v2925, %v3021
        %v3023 = vpop.f32.mrb[0].mxu0
        %v3024 = vadd.f32 %v2927, %v3023
        %v3025 = vand.u32 %v847, 4294901760
        %3026 = vmatprep.mubr.f32.mxu0 %v3025
        %v3027 = vand.u32 %v846, 4294901760
        %3028 = vmatmul.mubr.f32.gmra.mrb[0].mxu0 %v3027
        %v3029 = vpop.f32.mrb[0].mxu0
        %v3030 = vadd.f32 %v2933, %v3029
        %v3031 = vpop.f32.mrb[0].mxu0
        %v3032 = vadd.f32 %v2935, %v3031
        %v3033 = vand.u32 %v849, 4294901760
        %3034 = vmatprep.mubr.f32.mxu0 %v3033
        %v3035 = vand.u32 %v848, 4294901760
        %3036 = vmatmul.mubr.f32.gmra.mrb[0].mxu0 %v3035
        %v3037 = vpop.f32.mrb[0].mxu0
        %v3038 = vadd.f32 %v2941, %v3037
        %v3039 = vpop.f32.mrb[0].mxu0
        %v3040 = vadd.f32 %v2943, %v3039
        %3041 = vdwg.mxu0
        %v3042 = vadd.f32 %v1928, %v1936
        %v3043 = vadd.f32 %v3042, %v1944
        %v3044 = vadd.f32 %v3043, %v1952
        %v3045 = vrot.slane %v3044, 4
        %v3046 = vadd.f32 %v3044, %v3045
        %v3047 = vrot.slane %v3046, 2
        %v3048 = vadd.f32 %v3046, %v3047
        %v3049 = vrot.slane %v3048, 1
        %v3050 = vadd.f32 %v3048, %v3049
        %v3051 = vadd.f32 %v1930, %v1938
        %v3052 = vadd.f32 %v3051, %v1946
        %v3053 = vadd.f32 %v3052, %v1954
        %v3054 = vrot.slane %v3053, 4
        %v3055 = vadd.f32 %v3053, %v3054
        %v3056 = vrot.slane %v3055, 2
        %v3057 = vadd.f32 %v3055, %v3056
        %v3058 = vrot.slane %v3057, 1
        %v3059 = vadd.f32 %v3057, %v3058
        %v3060 = vadd.f32 %v3014, %v3022
        %v3061 = vadd.f32 %v3060, %v3030
        %v3062 = vadd.f32 %v3061, %v3038
        %v3063 = vrot.slane %v3062, 4
        %v3064 = vadd.f32 %v3062, %v3063
        %v3065 = vrot.slane %v3064, 2
        %v3066 = vadd.f32 %v3064, %v3065
        %v3067 = vrot.slane %v3066, 1
        %v3068 = vadd.f32 %v3066, %v3067
        %v3069 = vadd.f32 %v3016, %v3024
        %v3070 = vadd.f32 %v3069, %v3032
        %v3071 = vadd.f32 %v3070, %v3040
        %v3072 = vrot.slane %v3071, 4
        %v3073 = vadd.f32 %v3071, %v3072
        %v3074 = vrot.slane %v3073, 2
        %v3075 = vadd.f32 %v3073, %v3074
        %v3076 = vrot.slane %v3075, 1
        %v3077 = vadd.f32 %v3075, %v3076
        %v3078 = vmul.f32 %v3050, 0.03125
        %v3079 = vmul.f32 %v3059, 0.03125
        %v3080 = vmul.f32 %v3068, 0.03125
        %v3081 = vmul.f32 %v3077, 0.03125
        %v3082 = vmul.f32 %v1928, %v1928
        %v3083 = vmul.f32 %v1930, %v1930
        %v3084 = vmul.f32 %v3014, %v3014
        %v3085 = vmul.f32 %v3016, %v3016
        %v3086 = vmul.f32 %v1936, %v1936
        %v3087 = vmul.f32 %v1938, %v1938
        %v3088 = vmul.f32 %v3022, %v3022
        %v3089 = vmul.f32 %v3024, %v3024
        %v3090 = vmul.f32 %v1944, %v1944
        %v3091 = vmul.f32 %v1946, %v1946
        %v3092 = vmul.f32 %v3030, %v3030
        %v3093 = vmul.f32 %v3032, %v3032
        %v3094 = vmul.f32 %v1952, %v1952
        %v3095 = vmul.f32 %v1954, %v1954
        %v3096 = vmul.f32 %v3038, %v3038
        %v3097 = vmul.f32 %v3040, %v3040
        %v3098 = vadd.f32 %v3082, %v3086
        %v3099 = vadd.f32 %v3098, %v3090
        %v3100 = vadd.f32 %v3099, %v3094
        %v3101 = vrot.slane %v3100, 4
        %v3102 = vadd.f32 %v3100, %v3101
        %v3103 = vrot.slane %v3102, 2
        %v3104 = vadd.f32 %v3102, %v3103
        %v3105 = vrot.slane %v3104, 1
        %v3106 = vadd.f32 %v3104, %v3105
        %v3107 = vadd.f32 %v3083, %v3087
        %v3108 = vadd.f32 %v3107, %v3091
        %v3109 = vadd.f32 %v3108, %v3095
        %v3110 = vrot.slane %v3109, 4
        %v3111 = vadd.f32 %v3109, %v3110
        %v3112 = vrot.slane %v3111, 2
        %v3113 = vadd.f32 %v3111, %v3112
        %v3114 = vrot.slane %v3113, 1
        %v3115 = vadd.f32 %v3113, %v3114
        %v3116 = vadd.f32 %v3084, %v3088
        %v3117 = vadd.f32 %v3116, %v3092
        %v3118 = vadd.f32 %v3117, %v3096
        %v3119 = vrot.slane %v3118, 4
        %v3120 = vadd.f32 %v3118, %v3119
        %v3121 = vrot.slane %v3120, 2
        %v3122 = vadd.f32 %v3120, %v3121
        %v3123 = vrot.slane %v3122, 1
        %v3124 = vadd.f32 %v3122, %v3123
        %v3125 = vadd.f32 %v3085, %v3089
        %v3126 = vadd.f32 %v3125, %v3093
        %v3127 = vadd.f32 %v3126, %v3097
        %v3128 = vrot.slane %v3127, 4
        %v3129 = vadd.f32 %v3127, %v3128
        %v3130 = vrot.slane %v3129, 2
        %v3131 = vadd.f32 %v3129, %v3130
        %v3132 = vrot.slane %v3131, 1
        %v3133 = vadd.f32 %v3131, %v3132
        %v3134 = vmul.f32 %v3106, 0.03125
        %v3135 = vmul.f32 %v3115, 0.03125
        %v3136 = vmul.f32 %v3124, 0.03125
        %v3137 = vmul.f32 %v3133, 0.03125
        %v3138 = vmul.f32 %v3078, %v3078
        %v3139 = vmul.f32 %v3079, %v3079
        %v3140 = vmul.f32 %v3080, %v3080
        %v3141 = vmul.f32 %v3081, %v3081
        %v3142 = vsub.f32 %v3134, %v3138
        %v3143 = vsub.f32 %v3135, %v3139
        %v3144 = vsub.f32 %v3136, %v3140
        %v3145 = vsub.f32 %v3137, %v3141
        %v3146 = vsub.f32 %v1928, %v3078
        %v3147 = vsub.f32 %v1930, %v3079
        %v3148 = vsub.f32 %v3014, %v3080
        %v3149 = vsub.f32 %v3016, %v3081
        %v3150 = vsub.f32 %v1936, %v3078
        %v3151 = vsub.f32 %v1938, %v3079
        %v3152 = vsub.f32 %v3022, %v3080
        %v3153 = vsub.f32 %v3024, %v3081
        %v3154 = vsub.f32 %v1944, %v3078
        %v3155 = vsub.f32 %v1946, %v3079
        %v3156 = vsub.f32 %v3030, %v3080
        %v3157 = vsub.f32 %v3032, %v3081
        %v3158 = vsub.f32 %v1952, %v3078
        %v3159 = vsub.f32 %v1954, %v3079
        %v3160 = vsub.f32 %v3038, %v3080
        %v3161 = vsub.f32 %v3040, %v3081
        %v3162 = vadd.f32 %v3142, 1e-05
        %v3163 = vadd.f32 %v3143, 1e-05
        %v3164 = vadd.f32 %v3144, 1e-05
        %v3165 = vadd.f32 %v3145, 1e-05
        %v3166 = vrsqrt.pop %v3162
        %v3167 = vrsqrt.pop %v3163
        %v3168 = vrsqrt.pop %v3164
        %v3169 = vrsqrt.pop %v3165
        %v3170 = vmul.f32 %v3146, %v3166
        %v3171 = vmul.f32 %v3147, %v3167
        %v3172 = vmul.f32 %v3148, %v3168
        %v3173 = vmul.f32 %v3149, %v3169
        %v3174 = vmul.f32 %v3150, %v3166
        %v3175 = vmul.f32 %v3151, %v3167
        %v3176 = vmul.f32 %v3152, %v3168
        %v3177 = vmul.f32 %v3153, %v3169
        %v3178 = vmul.f32 %v3154, %v3166
        %v3179 = vmul.f32 %v3155, %v3167
        %v3180 = vmul.f32 %v3156, %v3168
        %v3181 = vmul.f32 %v3157, %v3169
        %v3182 = vmul.f32 %v3158, %v3166
        %v3183 = vmul.f32 %v3159, %v3167
        %v3184 = vmul.f32 %v3160, %v3168
        %v3185 = vmul.f32 %v3161, %v3169
        %3186 = vset.pattern.permute.xlu0 1
        %3187 = vperm.xlu0 %3186, %v227
        %v3188 = vpop.permute.xlu0 %3187
        %3190 = vset.pattern.permute.xlu0 1
        %3191 = vperm.xlu0 %3190, %v228
        %v3192 = vpop.permute.xlu0 %3191
        %3194 = vset.pattern.permute.xlu0 1
        %3195 = vperm.xlu0 %3194, %v229
        %v3196 = vpop.permute.xlu0 %3195
        %3198 = vset.pattern.permute.xlu0 1
        %3199 = vperm.xlu0 %3198, %v230
        %v3200 = vpop.permute.xlu0 %3199
        %v3202 = vmul.f32 %v3170, %v3188
        %v3203 = vmul.f32 %v3171, %v3188
        %v3204 = vmul.f32 %v3172, %v3188
        %v3205 = vmul.f32 %v3173, %v3188
        %v3206 = vmul.f32 %v3174, %v3192
        %v3207 = vmul.f32 %v3175, %v3192
        %v3208 = vmul.f32 %v3176, %v3192
        %v3209 = vmul.f32 %v3177, %v3192
        %v3210 = vmul.f32 %v3178, %v3196
        %v3211 = vmul.f32 %v3179, %v3196
        %v3212 = vmul.f32 %v3180, %v3196
        %v3213 = vmul.f32 %v3181, %v3196
        %v3214 = vmul.f32 %v3182, %v3200
        %v3215 = vmul.f32 %v3183, %v3200
        %v3216 = vmul.f32 %v3184, %v3200
        %v3217 = vmul.f32 %v3185, %v3200
        %3218 = vset.pattern.permute.xlu0 2
        %3219 = vperm.xlu0 %3218, %v227
        %v3220 = vpop.permute.xlu0 %3219
        %3222 = vset.pattern.permute.xlu0 2
        %3223 = vperm.xlu0 %3222, %v228
        %v3224 = vpop.permute.xlu0 %3223
        %3226 = vset.pattern.permute.xlu0 2
        %3227 = vperm.xlu0 %3226, %v229
        %v3228 = vpop.permute.xlu0 %3227
        %3230 = vset.pattern.permute.xlu0 2
        %3231 = vperm.xlu0 %3230, %v230
        %v3232 = vpop.permute.xlu0 %3231
        %v3234 = vadd.f32 %v3202, %v3220
        %v3235 = vadd.f32 %v3203, %v3220
        %v3236 = vadd.f32 %v3204, %v3220
        %v3237 = vadd.f32 %v3205, %v3220
        %v3238 = vadd.f32 %v3206, %v3224
        %v3239 = vadd.f32 %v3207, %v3224
        %v3240 = vadd.f32 %v3208, %v3224
        %v3241 = vadd.f32 %v3209, %v3224
        %v3242 = vadd.f32 %v3210, %v3228
        %v3243 = vadd.f32 %v3211, %v3228
        %v3244 = vadd.f32 %v3212, %v3228
        %v3245 = vadd.f32 %v3213, %v3228
        %v3246 = vadd.f32 %v3214, %v3232
        %v3247 = vadd.f32 %v3215, %v3232
        %v3248 = vadd.f32 %v3216, %v3232
        %v3249 = vadd.f32 %v3217, %v3232
        %v3250 = vtanh.pop %v3234
        %v3251 = vtanh.pop %v3235
        %v3252 = vtanh.pop %v3236
        %v3253 = vtanh.pop %v3237
        %v3254 = vtanh.pop %v3238
        %v3255 = vtanh.pop %v3239
        %v3256 = vtanh.pop %v3240
        %v3257 = vtanh.pop %v3241
        %v3258 = vtanh.pop %v3242
        %v3259 = vtanh.pop %v3243
        %v3260 = vtanh.pop %v3244
        %v3261 = vtanh.pop %v3245
        %v3262 = vtanh.pop %v3246
        %v3263 = vtanh.pop %v3247
        %v3264 = vtanh.pop %v3248
        %v3265 = vtanh.pop %v3249
        %v3266 = vld [vmem:[%s2] sm:$0xff]
        %v3267 = vld [vmem:[%s2 + $0x8] sm:$0xff]
        %v3268 = vld [vmem:[%s2 + $0x10] sm:$0xff]
        %v3269 = vld [vmem:[%s2 + $0x18] sm:$0xff]
        %3270 = vset.pattern.permute.xlu0 3
        %3271 = vperm.xlu0 %3270, %v227
        %v3272 = vpop.permute.xlu0 %3271
        %3274 = vset.pattern.permute.xlu0 3
        %3275 = vperm.xlu0 %3274, %v228
        %v3276 = vpop.permute.xlu0 %3275
        %3278 = vset.pattern.permute.xlu0 3
        %3279 = vperm.xlu0 %3278, %v229
        %v3280 = vpop.permute.xlu0 %3279
        %3282 = vset.pattern.permute.xlu0 3
        %3283 = vperm.xlu0 %3282, %v230
        %v3284 = vpop.permute.xlu0 %3283
        %vm3286 = vcmask 261120
        %v3288 = vsel %vm3286, %v3266, 0
        %v3291 = vsel %vm3286, %v3267, 0
        %v3294 = vsel %vm3286, %v3268, 0
        %v3297 = vsel %vm3286, %v3269, 0
        %3299 = vmatprep.subr.mxu0 %v3251
        %3300 = vmatpush1.msra.mxu0 %v3250
        %3301 = vmatprep.subr.mxu0 %v3255
        %3302 = vmatpush1.msra.mxu0 %v3254
        %3303 = vmatprep.subr.mxu0 %v3259
        %3304 = vmatpush1.msra.mxu0 %v3258
        %3305 = vmatprep.subr.mxu0 %v3263
        %3306 = vmatpush1.msra.mxu0 %v3262
        %3307 = vmatprep.subr.mxu0 0.0
        %3308 = vmatpush1.msra.mxu0 0.0
        %3309 = vmatprep.subr.mxu0 0.0
        %3310 = vmatpush1.msra.mxu0 0.0
        %3311 = vmatprep.subr.mxu0 0.0
        %3312 = vmatpush1.msra.mxu0 0.0
        %3313 = vmatprep.subr.mxu0 0.0
        %3314 = vmatpush1.msra.mxu0 0.0
        %3315 = vmatprep.subr.mxu0 0.0
        %3316 = vmatpush1.msra.mxu0 0.0
        %3317 = vmatprep.subr.mxu0 0.0
        %3318 = vmatpush1.msra.mxu0 0.0
        %3319 = vmatprep.subr.mxu0 0.0
        %3320 = vmatpush1.msra.mxu0 0.0
        %3321 = vmatprep.subr.mxu0 0.0
        %3322 = vmatpush1.msra.mxu0 0.0
        %3323 = vmatprep.subr.mxu0 0.0
        %3324 = vmatpush1.msra.mxu0 0.0
        %3325 = vmatprep.subr.mxu0 0.0
        %3326 = vmatpush1.msra.mxu0 0.0
        %3327 = vmatprep.subr.mxu0 0.0
        %3328 = vmatpush1.msra.mxu0 0.0
        %3329 = vmatprep.subr.mxu0 0.0
        %3330 = vmatpush1.msra.mxu0 0.0
        %3331 = vmatprep.subr.mxu0 0.0
        %3332 = vmatpush1.msra.mxu0 0.0
        %3333 = vmatprep.subr.mxu0 0.0
        %3334 = vmatpush1.msra.mxu0 0.0
        %3335 = vmatprep.subr.mxu0 0.0
        %3336 = vmatpush1.msra.mxu0 0.0
        %3337 = vmatprep.subr.mxu0 0.0
        %3338 = vmatpush1.msra.mxu0 0.0
        %3339 = vmatprep.subr.mxu0 0.0
        %3340 = vmatpush1.msra.mxu0 0.0
        %3341 = vmatprep.subr.mxu0 0.0
        %3342 = vmatpush1.msra.mxu0 0.0
        %3343 = vmatprep.subr.mxu0 0.0
        %3344 = vmatpush1.msra.mxu0 0.0
        %3345 = vmatprep.subr.mxu0 0.0
        %3346 = vmatpush1.msra.mxu0 0.0
        %3347 = vmatprep.subr.mxu0 0.0
        %3348 = vmatpush1.msra.mxu0 0.0
        %3349 = vmatprep.subr.mxu0 0.0
        %3350 = vmatpush1.msra.mxu0 0.0
        %3351 = vmatprep.subr.mxu0 0.0
        %3352 = vmatpush1.msra.mxu0 0.0
        %3353 = vmatprep.subr.mxu0 0.0
        %3354 = vmatpush1.msra.mxu0 0.0
        %3355 = vmatprep.subr.mxu0 0.0
        %3356 = vmatpush1.msra.mxu0 0.0
        %3357 = vmatprep.subr.mxu0 0.0
        %3358 = vmatpush1.msra.mxu0 0.0
        %3359 = vmatprep.subr.mxu0 0.0
        %3360 = vmatpush1.msra.mxu0 0.0
        %3361 = vmatprep.subr.mxu0 0.0
        %3362 = vmatpush1.msra.mxu0 0.0
        %3363 = vmatprep.mubr.f32.mxu0 0.0
        %3364 = vmatmul.mubr.f32.gmra.mrb[0].mxu0 %v3288
        %v3365 = vpop.f32.mrb[0].mxu0
        %v3366 = vadd.f32 %v3272, %v3365
        %v3367 = vpop.f32.mrb[0].mxu0
        %v3368 = vadd.f32 %v3272, %v3367
        %3369 = vmatprep.mubr.f32.mxu0 0.0
        %3370 = vmatmul.mubr.f32.gmra.mrb[0].mxu0 %v3291
        %v3371 = vpop.f32.mrb[0].mxu0
        %v3372 = vadd.f32 %v3276, %v3371
        %v3373 = vpop.f32.mrb[0].mxu0
        %v3374 = vadd.f32 %v3276, %v3373
        %3375 = vmatprep.mubr.f32.mxu0 0.0
        %3376 = vmatmul.mubr.f32.gmra.mrb[0].mxu0 %v3294
        %v3377 = vpop.f32.mrb[0].mxu0
        %v3378 = vadd.f32 %v3280, %v3377
        %v3379 = vpop.f32.mrb[0].mxu0
        %v3380 = vadd.f32 %v3280, %v3379
        %3381 = vmatprep.mubr.f32.mxu0 0.0
        %3382 = vmatmul.mubr.f32.gmra.mrb[0].mxu0 %v3297
        %v3383 = vpop.f32.mrb[0].mxu0
        %v3384 = vadd.f32 %v3284, %v3383
        %v3385 = vpop.f32.mrb[0].mxu0
        %v3386 = vadd.f32 %v3284, %v3385
        %3387 = vdwg.mxu0
        %3388 = vmatprep.subr.mxu0 %v3253
        %3389 = vmatpush1.msra.mxu0 %v3252
        %3390 = vmatprep.subr.mxu0 %v3257
        %3391 = vmatpush1.msra.mxu0 %v3256
        %3392 = vmatprep.subr.mxu0 %v3261
        %3393 = vmatpush1.msra.mxu0 %v3260
        %3394 = vmatprep.subr.mxu0 %v3265
        %3395 = vmatpush1.msra.mxu0 %v3264
        %3396 = vmatprep.subr.mxu0 0.0
        %3397 = vmatpush1.msra.mxu0 0.0
        %3398 = vmatprep.subr.mxu0 0.0
        %3399 = vmatpush1.msra.mxu0 0.0
        %3400 = vmatprep.subr.mxu0 0.0
        %3401 = vmatpush1.msra.mxu0 0.0
        %3402 = vmatprep.subr.mxu0 0.0
        %3403 = vmatpush1.msra.mxu0 0.0
        %3404 = vmatprep.subr.mxu0 0.0
        %3405 = vmatpush1.msra.mxu0 0.0
        %3406 = vmatprep.subr.mxu0 0.0
        %3407 = vmatpush1.msra.mxu0 0.0
        %3408 = vmatprep.subr.mxu0 0.0
        %3409 = vmatpush1.msra.mxu0 0.0
        %3410 = vmatprep.subr.mxu0 0.0
        %3411 = vmatpush1.msra.mxu0 0.0
        %3412 = vmatprep.subr.mxu0 0.0
        %3413 = vmatpush1.msra.mxu0 0.0
        %3414 = vmatprep.subr.mxu0 0.0
        %3415 = vmatpush1.msra.mxu0 0.0
        %3416 = vmatprep.subr.mxu0 0.0
        %3417 = vmatpush1.msra.mxu0 0.0
        %3418 = vmatprep.subr.mxu0 0.0
        %3419 = vmatpush1.msra.mxu0 0.0
        %3420 = vmatprep.subr.mxu0 0.0
        %3421 = vmatpush1.msra.mxu0 0.0
        %3422 = vmatprep.subr.mxu0 0.0
        %3423 = vmatpush1.msra.mxu0 0.0
        %3424 = vmatprep.subr.mxu0 0.0
        %3425 = vmatpush1.msra.mxu0 0.0
        %3426 = vmatprep.subr.mxu0 0.0
        %3427 = vmatpush1.msra.mxu0 0.0
        %3428 = vmatprep.subr.mxu0 0.0
        %3429 = vmatpush1.msra.mxu0 0.0
        %3430 = vmatprep.subr.mxu0 0.0
        %3431 = vmatpush1.msra.mxu0 0.0
        %3432 = vmatprep.subr.mxu0 0.0
        %3433 = vmatpush1.msra.mxu0 0.0
        %3434 = vmatprep.subr.mxu0 0.0
        %3435 = vmatpush1.msra.mxu0 0.0
        %3436 = vmatprep.subr.mxu0 0.0
        %3437 = vmatpush1.msra.mxu0 0.0
        %3438 = vmatprep.subr.mxu0 0.0
        %3439 = vmatpush1.msra.mxu0 0.0
        %3440 = vmatprep.subr.mxu0 0.0
        %3441 = vmatpush1.msra.mxu0 0.0
        %3442 = vmatprep.subr.mxu0 0.0
        %3443 = vmatpush1.msra.mxu0 0.0
        %3444 = vmatprep.subr.mxu0 0.0
        %3445 = vmatpush1.msra.mxu0 0.0
        %3446 = vmatprep.subr.mxu0 0.0
        %3447 = vmatpush1.msra.mxu0 0.0
        %3448 = vmatprep.subr.mxu0 0.0
        %3449 = vmatpush1.msra.mxu0 0.0
        %3450 = vmatprep.subr.mxu0 0.0
        %3451 = vmatpush1.msra.mxu0 0.0
        %3452 = vmatprep.mubr.f32.mxu0 0.0
        %3453 = vmatmul.mubr.f32.gmra.mrb[0].mxu0 %v3288
        %v3454 = vpop.f32.mrb[0].mxu0
        %v3455 = vadd.f32 %v3272, %v3454
        %v3456 = vpop.f32.mrb[0].mxu0
        %v3457 = vadd.f32 %v3272, %v3456
        %3458 = vmatprep.mubr.f32.mxu0 0.0
        %3459 = vmatmul.mubr.f32.gmra.mrb[0].mxu0 %v3291
        %v3460 = vpop.f32.mrb[0].mxu0
        %v3461 = vadd.f32 %v3276, %v3460
        %v3462 = vpop.f32.mrb[0].mxu0
        %v3463 = vadd.f32 %v3276, %v3462
        %3464 = vmatprep.mubr.f32.mxu0 0.0
        %3465 = vmatmul.mubr.f32.gmra.mrb[0].mxu0 %v3294
        %v3466 = vpop.f32.mrb[0].mxu0
        %v3467 = vadd.f32 %v3280, %v3466
        %v3468 = vpop.f32.mrb[0].mxu0
        %v3469 = vadd.f32 %v3280, %v3468
        %3470 = vmatprep.mubr.f32.mxu0 0.0
        %3471 = vmatmul.mubr.f32.gmra.mrb[0].mxu0 %v3297
        %v3472 = vpop.f32.mrb[0].mxu0
        %v3473 = vadd.f32 %v3284, %v3472
        %v3474 = vpop.f32.mrb[0].mxu0
        %v3475 = vadd.f32 %v3284, %v3474
        %3476 = vdwg.mxu0
        %v3477 = vadd.f32 %v3366, %v3372
        %v3478 = vadd.f32 %v3477, %v3378
        %v3479 = vadd.f32 %v3478, %v3384
        %v3480 = vrot.slane %v3479, 4
        %v3481 = vadd.f32 %v3479, %v3480
        %v3482 = vrot.slane %v3481, 2
        %v3483 = vadd.f32 %v3481, %v3482
        %v3484 = vrot.slane %v3483, 1
        %v3485 = vadd.f32 %v3483, %v3484
        %v3486 = vadd.f32 %v3368, %v3374
        %v3487 = vadd.f32 %v3486, %v3380
        %v3488 = vadd.f32 %v3487, %v3386
        %v3489 = vrot.slane %v3488, 4
        %v3490 = vadd.f32 %v3488, %v3489
        %v3491 = vrot.slane %v3490, 2
        %v3492 = vadd.f32 %v3490, %v3491
        %v3493 = vrot.slane %v3492, 1
        %v3494 = vadd.f32 %v3492, %v3493
        %v3495 = vadd.f32 %v3455, %v3461
        %v3496 = vadd.f32 %v3495, %v3467
        %v3497 = vadd.f32 %v3496, %v3473
        %v3498 = vrot.slane %v3497, 4
        %v3499 = vadd.f32 %v3497, %v3498
        %v3500 = vrot.slane %v3499, 2
        %v3501 = vadd.f32 %v3499, %v3500
        %v3502 = vrot.slane %v3501, 1
        %v3503 = vadd.f32 %v3501, %v3502
        %v3504 = vadd.f32 %v3457, %v3463
        %v3505 = vadd.f32 %v3504, %v3469
        %v3506 = vadd.f32 %v3505, %v3475
        %v3507 = vrot.slane %v3506, 4
        %v3508 = vadd.f32 %v3506, %v3507
        %v3509 = vrot.slane %v3508, 2
        %v3510 = vadd.f32 %v3508, %v3509
        %v3511 = vrot.slane %v3510, 1
        %v3512 = vadd.f32 %v3510, %v3511
        %v3513 = vmul.f32 %v3485, 0.03125
        %v3514 = vmul.f32 %v3494, 0.03125
        %v3515 = vmul.f32 %v3503, 0.03125
        %v3516 = vmul.f32 %v3512, 0.03125
        %v3517 = vmul.f32 %v3366, %v3366
        %v3518 = vmul.f32 %v3368, %v3368
        %v3519 = vmul.f32 %v3455, %v3455
        %v3520 = vmul.f32 %v3457, %v3457
        %v3521 = vmul.f32 %v3372, %v3372
        %v3522 = vmul.f32 %v3374, %v3374
        %v3523 = vmul.f32 %v3461, %v3461
        %v3524 = vmul.f32 %v3463, %v3463
        %v3525 = vmul.f32 %v3378, %v3378
        %v3526 = vmul.f32 %v3380, %v3380
        %v3527 = vmul.f32 %v3467, %v3467
        %v3528 = vmul.f32 %v3469, %v3469
        %v3529 = vmul.f32 %v3384, %v3384
        %v3530 = vmul.f32 %v3386, %v3386
        %v3531 = vmul.f32 %v3473, %v3473
        %v3532 = vmul.f32 %v3475, %v3475
        %v3533 = vadd.f32 %v3517, %v3521
        %v3534 = vadd.f32 %v3533, %v3525
        %v3535 = vadd.f32 %v3534, %v3529
        %v3536 = vrot.slane %v3535, 4
        %v3537 = vadd.f32 %v3535, %v3536
        %v3538 = vrot.slane %v3537, 2
        %v3539 = vadd.f32 %v3537, %v3538
        %v3540 = vrot.slane %v3539, 1
        %v3541 = vadd.f32 %v3539, %v3540
        %v3542 = vadd.f32 %v3518, %v3522
        %v3543 = vadd.f32 %v3542, %v3526
        %v3544 = vadd.f32 %v3543, %v3530
        %v3545 = vrot.slane %v3544, 4
        %v3546 = vadd.f32 %v3544, %v3545
        %v3547 = vrot.slane %v3546, 2
        %v3548 = vadd.f32 %v3546, %v3547
        %v3549 = vrot.slane %v3548, 1
        %v3550 = vadd.f32 %v3548, %v3549
        %v3551 = vadd.f32 %v3519, %v3523
        %v3552 = vadd.f32 %v3551, %v3527
        %v3553 = vadd.f32 %v3552, %v3531
        %v3554 = vrot.slane %v3553, 4
        %v3555 = vadd.f32 %v3553, %v3554
        %v3556 = vrot.slane %v3555, 2
        %v3557 = vadd.f32 %v3555, %v3556
        %v3558 = vrot.slane %v3557, 1
        %v3559 = vadd.f32 %v3557, %v3558
        %v3560 = vadd.f32 %v3520, %v3524
        %v3561 = vadd.f32 %v3560, %v3528
        %v3562 = vadd.f32 %v3561, %v3532
        %v3563 = vrot.slane %v3562, 4
        %v3564 = vadd.f32 %v3562, %v3563
        %v3565 = vrot.slane %v3564, 2
        %v3566 = vadd.f32 %v3564, %v3565
        %v3567 = vrot.slane %v3566, 1
        %v3568 = vadd.f32 %v3566, %v3567
        %v3569 = vmul.f32 %v3541, 0.03125
        %v3570 = vmul.f32 %v3550, 0.03125
        %v3571 = vmul.f32 %v3559, 0.03125
        %v3572 = vmul.f32 %v3568, 0.03125
        %v3573 = vmul.f32 %v3513, %v3513
        %v3574 = vmul.f32 %v3514, %v3514
        %v3575 = vmul.f32 %v3515, %v3515
        %v3576 = vmul.f32 %v3516, %v3516
        %v3577 = vsub.f32 %v3569, %v3573
        %v3578 = vsub.f32 %v3570, %v3574
        %v3579 = vsub.f32 %v3571, %v3575
        %v3580 = vsub.f32 %v3572, %v3576
        %v3581 = vsub.f32 %v3366, %v3513
        %v3582 = vsub.f32 %v3368, %v3514
        %v3583 = vsub.f32 %v3455, %v3515
        %v3584 = vsub.f32 %v3457, %v3516
        %v3585 = vsub.f32 %v3372, %v3513
        %v3586 = vsub.f32 %v3374, %v3514
        %v3587 = vsub.f32 %v3461, %v3515
        %v3588 = vsub.f32 %v3463, %v3516
        %v3589 = vsub.f32 %v3378, %v3513
        %v3590 = vsub.f32 %v3380, %v3514
        %v3591 = vsub.f32 %v3467, %v3515
        %v3592 = vsub.f32 %v3469, %v3516
        %v3593 = vsub.f32 %v3384, %v3513
        %v3594 = vsub.f32 %v3386, %v3514
        %v3595 = vsub.f32 %v3473, %v3515
        %v3596 = vsub.f32 %v3475, %v3516
        %v3597 = vadd.f32 %v3577, 1e-05
        %v3598 = vadd.f32 %v3578, 1e-05
        %v3599 = vadd.f32 %v3579, 1e-05
        %v3600 = vadd.f32 %v3580, 1e-05
        %v3601 = vrsqrt.pop %v3597
        %v3602 = vrsqrt.pop %v3598
        %v3603 = vrsqrt.pop %v3599
        %v3604 = vrsqrt.pop %v3600
        %v3605 = vmul.f32 %v3581, %v3601
        %v3606 = vmul.f32 %v3582, %v3602
        %v3607 = vmul.f32 %v3583, %v3603
        %v3608 = vmul.f32 %v3584, %v3604
        %v3609 = vmul.f32 %v3585, %v3601
        %v3610 = vmul.f32 %v3586, %v3602
        %v3611 = vmul.f32 %v3587, %v3603
        %v3612 = vmul.f32 %v3588, %v3604
        %v3613 = vmul.f32 %v3589, %v3601
        %v3614 = vmul.f32 %v3590, %v3602
        %v3615 = vmul.f32 %v3591, %v3603
        %v3616 = vmul.f32 %v3592, %v3604
        %v3617 = vmul.f32 %v3593, %v3601
        %v3618 = vmul.f32 %v3594, %v3602
        %v3619 = vmul.f32 %v3595, %v3603
        %v3620 = vmul.f32 %v3596, %v3604
        %3621 = vset.pattern.permute.xlu0 4
        %3622 = vperm.xlu0 %3621, %v227
        %v3623 = vpop.permute.xlu0 %3622
        %3625 = vset.pattern.permute.xlu0 4
        %3626 = vperm.xlu0 %3625, %v228
        %v3627 = vpop.permute.xlu0 %3626
        %3629 = vset.pattern.permute.xlu0 4
        %3630 = vperm.xlu0 %3629, %v229
        %v3631 = vpop.permute.xlu0 %3630
        %3633 = vset.pattern.permute.xlu0 4
        %3634 = vperm.xlu0 %3633, %v230
        %v3635 = vpop.permute.xlu0 %3634
        %v3637 = vmul.f32 %v3605, %v3623
        %v3638 = vmul.f32 %v3606, %v3623
        %v3639 = vmul.f32 %v3607, %v3623
        %v3640 = vmul.f32 %v3608, %v3623
        %v3641 = vmul.f32 %v3609, %v3627
        %v3642 = vmul.f32 %v3610, %v3627
        %v3643 = vmul.f32 %v3611, %v3627
        %v3644 = vmul.f32 %v3612, %v3627
        %v3645 = vmul.f32 %v3613, %v3631
        %v3646 = vmul.f32 %v3614, %v3631
        %v3647 = vmul.f32 %v3615, %v3631
        %v3648 = vmul.f32 %v3616, %v3631
        %v3649 = vmul.f32 %v3617, %v3635
        %v3650 = vmul.f32 %v3618, %v3635
        %v3651 = vmul.f32 %v3619, %v3635
        %v3652 = vmul.f32 %v3620, %v3635
        %3653 = vset.pattern.permute.xlu0 5
        %3654 = vperm.xlu0 %3653, %v227
        %v3655 = vpop.permute.xlu0 %3654
        %3657 = vset.pattern.permute.xlu0 5
        %3658 = vperm.xlu0 %3657, %v228
        %v3659 = vpop.permute.xlu0 %3658
        %3661 = vset.pattern.permute.xlu0 5
        %3662 = vperm.xlu0 %3661, %v229
        %v3663 = vpop.permute.xlu0 %3662
        %3665 = vset.pattern.permute.xlu0 5
        %3666 = vperm.xlu0 %3665, %v230
        %v3667 = vpop.permute.xlu0 %3666
        %v3669 = vadd.f32 %v3637, %v3655
        %v3670 = vadd.f32 %v3638, %v3655
        %v3671 = vadd.f32 %v3639, %v3655
        %v3672 = vadd.f32 %v3640, %v3655
        %v3673 = vadd.f32 %v3641, %v3659
        %v3674 = vadd.f32 %v3642, %v3659
        %v3675 = vadd.f32 %v3643, %v3659
        %v3676 = vadd.f32 %v3644, %v3659
        %v3677 = vadd.f32 %v3645, %v3663
        %v3678 = vadd.f32 %v3646, %v3663
        %v3679 = vadd.f32 %v3647, %v3663
        %v3680 = vadd.f32 %v3648, %v3663
        %v3681 = vadd.f32 %v3649, %v3667
        %v3682 = vadd.f32 %v3650, %v3667
        %v3683 = vadd.f32 %v3651, %v3667
        %v3684 = vadd.f32 %v3652, %v3667
        %v3685 = vtanh.pop %v3669
        %v3686 = vtanh.pop %v3670
        %v3687 = vtanh.pop %v3671
        %v3688 = vtanh.pop %v3672
        %v3689 = vtanh.pop %v3673
        %v3690 = vtanh.pop %v3674
        %v3691 = vtanh.pop %v3675
        %v3692 = vtanh.pop %v3676
        %v3693 = vtanh.pop %v3677
        %v3694 = vtanh.pop %v3678
        %v3695 = vtanh.pop %v3679
        %v3696 = vtanh.pop %v3680
        %v3697 = vtanh.pop %v3681
        %v3698 = vtanh.pop %v3682
        %v3699 = vtanh.pop %v3683
        %v3700 = vtanh.pop %v3684
        %3701 = vset.pattern.permute.xlu0 6
        %3702 = vperm.xlu0 %3701, %v227
        %v3703 = vpop.permute.xlu0 %3702
        %3705 = vset.pattern.permute.xlu0 6
        %3706 = vperm.xlu0 %3705, %v228
        %v3707 = vpop.permute.xlu0 %3706
        %3709 = vset.pattern.permute.xlu0 6
        %3710 = vperm.xlu0 %3709, %v229
        %v3711 = vpop.permute.xlu0 %3710
        %3713 = vset.pattern.permute.xlu0 6
        %3714 = vperm.xlu0 %3713, %v230
        %v3715 = vpop.permute.xlu0 %3714
        %v3717 = vmul.f32 %v3685, %v3703
        %v3718 = vmul.f32 %v3686, %v3703
        %v3719 = vmul.f32 %v3687, %v3703
        %v3720 = vmul.f32 %v3688, %v3703
        %v3721 = vmul.f32 %v3689, %v3707
        %v3722 = vmul.f32 %v3690, %v3707
        %v3723 = vmul.f32 %v3691, %v3707
        %v3724 = vmul.f32 %v3692, %v3707
        %v3725 = vmul.f32 %v3693, %v3711
        %v3726 = vmul.f32 %v3694, %v3711
        %v3727 = vmul.f32 %v3695, %v3711
        %v3728 = vmul.f32 %v3696, %v3711
        %v3729 = vmul.f32 %v3697, %v3715
        %v3730 = vmul.f32 %v3698, %v3715
        %v3731 = vmul.f32 %v3699, %v3715
        %v3732 = vmul.f32 %v3700, %v3715
        %v3733 = vadd.f32 %v3717, %v3721
        %v3734 = vadd.f32 %v3733, %v3725
        %v3735 = vadd.f32 %v3734, %v3729
        %v3736 = vrot.slane %v3735, 4
        %v3737 = vadd.f32 %v3735, %v3736
        %v3738 = vrot.slane %v3737, 2
        %v3739 = vadd.f32 %v3737, %v3738
        %v3740 = vrot.slane %v3739, 1
        %v3741 = vadd.f32 %v3739, %v3740
        %v3742 = vadd.f32 %v3718, %v3722
        %v3743 = vadd.f32 %v3742, %v3726
        %v3744 = vadd.f32 %v3743, %v3730
        %v3745 = vrot.slane %v3744, 4
        %v3746 = vadd.f32 %v3744, %v3745
        %v3747 = vrot.slane %v3746, 2
        %v3748 = vadd.f32 %v3746, %v3747
        %v3749 = vrot.slane %v3748, 1
        %v3750 = vadd.f32 %v3748, %v3749
        %v3751 = vadd.f32 %v3719, %v3723
        %v3752 = vadd.f32 %v3751, %v3727
        %v3753 = vadd.f32 %v3752, %v3731
        %v3754 = vrot.slane %v3753, 4
        %v3755 = vadd.f32 %v3753, %v3754
        %v3756 = vrot.slane %v3755, 2
        %v3757 = vadd.f32 %v3755, %v3756
        %v3758 = vrot.slane %v3757, 1
        %v3759 = vadd.f32 %v3757, %v3758
        %v3760 = vadd.f32 %v3720, %v3724
        %v3761 = vadd.f32 %v3760, %v3728
        %v3762 = vadd.f32 %v3761, %v3732
        %v3763 = vrot.slane %v3762, 4
        %v3764 = vadd.f32 %v3762, %v3763
        %v3765 = vrot.slane %v3764, 2
        %v3766 = vadd.f32 %v3764, %v3765
        %v3767 = vrot.slane %v3766, 1
        %v3768 = vadd.f32 %v3766, %v3767
        %v3769 = vstv %s231
        %v3770 = vadd.f32 %v3741, %v3769
        %v3771 = vadd.f32 %v3750, %v3769
        %v3772 = vadd.f32 %v3759, %v3769
        %v3773 = vadd.f32 %v3768, %v3769
        %v3778 = vcombine.low %v3770, %v3771
        %v3779 = vcombine.low %v3772, %v3773
        %v3781 = vunpack.c.l.s4 1966171168
        %v3782 = vunpack.c.0.s8 %v3781
        %v3783 = vlaneseq
        %v3784 = vshrl.u32 %v3783, 7
        %v3785 = vsub.s32 %v3782, %v3784
        %v3786 = vrot.slane %v3778, %v3785
        %v3788 = vunpack.c.l.s4 1966171168
        %v3789 = vunpack.c.0.s8 %v3788
        %v3790 = vlaneseq
        %v3791 = vshrl.u32 %v3790, 7
        %v3792 = vsub.s32 %v3789, %v3791
        %v3793 = vrot.slane %v3779, %v3792
        %v3794 = vcombine.low %v3786, %v3793
        %v3796 = vunpack.c.l.s4 1966171168
        %v3797 = vunpack.c.0.s8 %v3796
        %v3798 = vlaneseq
        %v3799 = vshrl.u32 %v3798, 7
        %v3800 = vsub.s32 %v3797, %v3799
        %v3801 = vrot.slane %v3794, %v3800
        %v3803 = vlaneseq
        %vm3804 = vcmp.ge.s32.totalorder %v3803, 0
        %vm3805 = vcmp.lt.s32.totalorder %v3803, 512
        %vm3806 = vmand %vm3804, %vm3805
        %3807 = vst.msk [vmem:[%s219] sm:$0xf] %vm3806, %v3801
        %s3808 = sand.u32 %s138, 1
        %s3809 = scalar_lea.sflag [#allocation4], %s3808
        %s3810 = sand.u32 %s138, 1
        %s3811 = smul.addr %s3810, 4
        %s3812 = scalar_lea.vmem [#allocation3], %s3811
        // Predicated region
        $region41: #{_edge_network_pallas.1} parent=39 // pred_check
          %p3813 = pneg %p148
        $region42: #{_edge_network_pallas.1} parent=39 // pred_check_branch
          %3815 = sbr.rel (%p3813) target = $region44
        $region43: #{_edge_network_pallas.1} parent=39 // pred_region
          %s3816 = smul.u32 4, %s20
          %s3818 = ssub.s32 64, 64
          %3819 = vsyncadd %s3809, %s3818
          %s3820 = smul.addr %s3816, 16
          %s3821 = scalar_lea.hbm %s5, %s3820
          %s3823 = sshll.u32 %s3812, 4
          %s3824 = int_to_ptr.vmem [resolvable:$true] %s3823
          %3826 = dma.vmem_to_hbm [thread:$0]  %s3824, 64, %s3821, %s3809
        $region44: #{_edge_network_pallas.1} parent=39 // pred_fallthru
          _
      $region40: #{_edge_network_pallas.1} parent=5 // pred_fallthru
        _
      %p3827 = scmp.le.s32.totalorder 2, %s15
      // Predicated region
      $region45: #{_edge_network_pallas.1} parent=5 // pred_check
        %p3828 = pneg %p3827
      $region46: #{_edge_network_pallas.1} parent=5 // pred_check_branch
        %3830 = sbr.rel (%p3828) target = $region48
      $region47: #{_edge_network_pallas.1} parent=5 // pred_region
        %s3831 = ssub.s32 %s15, 2
        // Predicated region
        $region49: #{_edge_network_pallas.1} parent=47 // pred_check
          %p3832 = pneg %p154
        $region50: #{_edge_network_pallas.1} parent=47 // pred_check_branch
          %3834 = sbr.rel (%p3832) target = $region52
        $region51: #{_edge_network_pallas.1} parent=47 // pred_region
          %s3835 = sand.u32 %s139, 1
          %s3836 = scalar_lea.sflag [#allocation4], %s3835
          %s3837 = sand.u32 %s139, 1
          %s3838 = smul.addr %s3837, 4
          %s3839 = scalar_lea.vmem [#allocation3], %s3838
          %3840 = dma.done %s3836, 64
        $region52: #{_edge_network_pallas.1} parent=47 // pred_fallthru
          _
      $region48: #{_edge_network_pallas.1} parent=5 // pred_fallthru
        _
    $region6: #{_edge_network_pallas.1} parent=1 // loop_footer
      %s19 = sadd.s32 1, %s15
    $region7: #{_edge_network_pallas.1} parent=1 // loop_footer_branch
      %14 = sbr.rel target = $region3
    $region8: #{_edge_network_pallas.1} parent=1 // loop_exit
      _
    %3841 = vsyncpa [#allocation4], 1
    %s3842 = scalar_lea.sflag [#allocation4], 1
    %3843 = vsyncpa %s3842, 1

</llo_original>
